<compile_context>
chip_gen: v6e
topology: v6e:2x2x1
jax: 0.10.0
libtpu: 0.0.40
codegen_flags: <defaults>
</compile_context>

<pallas_src>
import jax
import jax.numpy as jnp
from jax.experimental import pallas as pl
from jax.experimental.pallas import tpu as pltpu


# ----------------------------- configuration --------------------------------
LATENT_DIM = 32
CHANNELS = 4
IMG_SIZE = 16
IMG_FLAT = CHANNELS * IMG_SIZE * IMG_SIZE  # 1024
HIDDEN = (128, 256, 512, 1024)
BN_EPS = 0.8
LRELU_SLOPE = 0.2


# ------------------------------- kernel -------------------------------------
def _leaky_relu(x):
    return jnp.where(x > 0, x, LRELU_SLOPE * x)


def _bn_lrelu(x, gamma, beta):
    """Fused training-mode BatchNorm1d (biased var) + LeakyReLU, f32 math.

    One reduction pass builds E[x] and E[x^2]; the normalization is then a
    single per-feature scale/shift applied in one FMA sweep.
    """
    inv_b = jnp.float32(1.0 / x.shape[0])
    mu = jnp.sum(x, axis=0, keepdims=True) * inv_b
    ex2 = jnp.sum(x * x, axis=0, keepdims=True) * inv_b
    var = ex2 - mu * mu
    s = gamma * jax.lax.rsqrt(var + BN_EPS)
    t = beta - mu * s
    y = x * s + t
    return jnp.where(y > 0, y, LRELU_SLOPE * y)


def generator_kernel(
    z_ref,
    w1_ref, b1_ref,
    w2_ref, g2_ref, be2_ref,
    w3_ref, g3_ref, be3_ref,
    w4_ref, g4_ref, be4_ref,
    w5_ref, b5_ref,
    out_ref,
):
    def dot_bf16(x, w_ref):
        # bf16 operands on the MXU, f32 accumulation.
        return jnp.dot(
            x.astype(jnp.bfloat16), w_ref[...], preferred_element_type=jnp.float32
        )

    z = z_ref[...]

    # Block 1: Linear (+bias) -> LeakyReLU (no norm)
    h = dot_bf16(z, w1_ref) + b1_ref[...]
    h = _leaky_relu(h)

    # Blocks 2-4: Linear (bias dropped: cancelled by BN mean) -> fused BN + LeakyReLU
    h = _bn_lrelu(dot_bf16(h, w2_ref), g2_ref[...], be2_ref[...])
    h = _bn_lrelu(dot_bf16(h, w3_ref), g3_ref[...], be3_ref[...])
    h = _bn_lrelu(dot_bf16(h, w4_ref), g4_ref[...], be4_ref[...])

    # Output head: Linear (+bias) -> Tanh
    h = dot_bf16(h, w5_ref) + b5_ref[...]
    out_ref[...] = jnp.tanh(h)


# ------------------------------- wrapper -------------------------------------
@jax.jit
def generator_forward(z, params):
    """z: (B, LATENT_DIM) float32 -> img: (B, C, H, W) float32."""
    B = z.shape[0]
    flat_args = (
        z,
        params["w1"], params["b1"],
        params["w2"], params["g2"], params["be2"],
        params["w3"], params["g3"], params["be3"],
        params["w4"], params["g4"], params["be4"],
        params["w5"], params["b5"],
    )
    vmem_spec = pl.BlockSpec(memory_space=pltpu.MemorySpace.VMEM)
    img_flat = pl.pallas_call(
        generator_kernel,
        out_shape=jax.ShapeDtypeStruct((B, IMG_FLAT), jnp.float32),
        in_specs=[vmem_spec] * len(flat_args),
        out_specs=vmem_spec,
        # Right-sized scoped VMEM: ~3.5 MB bf16 weights + small f32 activations.
        # 16 MiB is valid on v5e/v6e/v7x (v7x physical VMEM is only 64 MiB).
        compiler_params=pltpu.CompilerParams(vmem_limit_bytes=16 * 1024 * 1024),
    )(*flat_args)
    # NCHW image layout, matching the PyTorch view(img.size(0), *img_shape).
    return img_flat.reshape(B, CHANNELS, IMG_SIZE, IMG_SIZE)


# ------------------------- deterministic init --------------------------------
def init_params(key):
    """PyTorch-style Linear init: U(-1/sqrt(fan_in), 1/sqrt(fan_in)); BN gamma=1, beta=0.

    Weights are stored in bf16 (kernel quantization choice); biases / BN params
    stay f32.  b2/b3/b4 are kept only for the pure-JAX reference — the kernel
    drops them because training-mode BN cancels them exactly.
    """
    dims = (LATENT_DIM,) + HIDDEN + (IMG_FLAT,)
    keys = jax.random.split(key, 2 * (len(dims) - 1))
    params = {}

    def linear(kw, kb, fan_in, fan_out):
        bound = 1.0 / jnp.sqrt(jnp.float32(fan_in))
        w = jax.random.uniform(kw, (fan_in, fan_out), jnp.float32, -bound, bound)
        b = jax.random.uniform(kb, (1, fan_out), jnp.float32, -bound, bound)
        return w.astype(jnp.bfloat16), b

    params["w1"], params["b1"] = linear(keys[0], keys[1], dims[0], dims[1])
    params["w2"], params["b2"] = linear(keys[2], keys[3], dims[1], dims[2])
    params["w3"], params["b3"] = linear(keys[4], keys[5], dims[2], dims[3])
    params["w4"], params["b4"] = linear(keys[6], keys[7], dims[3], dims[4])
    params["w5"], params["b5"] = linear(keys[8], keys[9], dims[4], dims[5])
    for i, f in zip((2, 3, 4), HIDDEN[1:]):
        params[f"g{i}"] = jnp.ones((1, f), jnp.float32)
        params[f"be{i}"] = jnp.zeros((1, f), jnp.float32)
    return params


# --------------------------- pure-JAX reference -------------------------------
def reference_forward(z, p):
    """Mirrors the PyTorch module structure (biases before BN, two-pass BN),
    with the same bf16 matmul operands / f32 accumulation as the kernel."""

    def dot_bf16(x, w):
        return jnp.dot(
            x.astype(jnp.bfloat16), w.astype(jnp.bfloat16),
            preferred_element_type=jnp.float32,
        )

    def bn(x, g, b):
        mu = x.mean(0, keepdims=True)
        var = ((x - mu) ** 2).mean(0, keepdims=True)
        return (x - mu) / jnp.sqrt(var + BN_EPS) * g + b

    def lrelu(x):
        return jnp.where(x > 0, x, LRELU_SLOPE * x)

    h = lrelu(dot_bf16(z, p["w1"]) + p["b1"])
    h = lrelu(bn(dot_bf16(h, p["w2"]) + p["b2"], p["g2"], p["be2"]))
    h = lrelu(bn(dot_bf16(h, p["w3"]) + p["b3"], p["g3"], p["be3"]))
    h = lrelu(bn(dot_bf16(h, p["w4"]) + p["b4"], p["g4"], p["be4"]))
    h = jnp.tanh(dot_bf16(h, p["w5"]) + p["b5"])
    return h.reshape(z.shape[0], CHANNELS, IMG_SIZE, IMG_SIZE)


# --------------------------------- main --------------------------------------
if __name__ == "__main__":
    key = jax.random.PRNGKey(0)
    k_param, k_z = jax.random.split(key)
    params = init_params(k_param)

    # B=16 so bf16 activations fill a (16,128) sublane-packed vreg;
    # training-mode BN also needs B > 1.
    B = 16
    z = jax.random.normal(k_z, (B, LATENT_DIM), jnp.float32)

    img = generator_forward(z, params)
    img = jax.block_until_ready(img)

    assert img.shape == (B, CHANNELS, IMG_SIZE, IMG_SIZE), img.shape

    ref = reference_forward(z, params)
    # Looser tolerance than pure-f32 because the kernel fuses BN (E[x^2]-mu^2,
    # rsqrt) and drops the BN-cancelled biases; outputs are tanh-bounded.
    assert jnp.allclose(img, ref, atol=2e-2, rtol=2e-2), float(
        jnp.max(jnp.abs(img - ref))
    )

    print("KERNEL_OK")
</pallas_src>

<mosaic_0001>
module attributes {stable_mosaic.version = 11 : i64} {
  func.func @generator_kernel(%arg0: memref<16x32xf32, #tpu.memory_space<vmem>>, %arg1: memref<32x128xbf16, #tpu.memory_space<vmem>>, %arg2: memref<1x128xf32, #tpu.memory_space<vmem>>, %arg3: memref<128x256xbf16, #tpu.memory_space<vmem>>, %arg4: memref<1x256xf32, #tpu.memory_space<vmem>>, %arg5: memref<1x256xf32, #tpu.memory_space<vmem>>, %arg6: memref<256x512xbf16, #tpu.memory_space<vmem>>, %arg7: memref<1x512xf32, #tpu.memory_space<vmem>>, %arg8: memref<1x512xf32, #tpu.memory_space<vmem>>, %arg9: memref<512x1024xbf16, #tpu.memory_space<vmem>>, %arg10: memref<1x1024xf32, #tpu.memory_space<vmem>>, %arg11: memref<1x1024xf32, #tpu.memory_space<vmem>>, %arg12: memref<1024x1024xbf16, #tpu.memory_space<vmem>>, %arg13: memref<1x1024xf32, #tpu.memory_space<vmem>>, %arg14: memref<16x1024xf32, #tpu.memory_space<vmem>>) attributes {dimension_semantics = [], scalar_prefetch = 0 : i64, scratch_operands = 0 : i64, tpu.core_type = #tpu.core_type<tc>} {
    %c0 = arith.constant 0 : index
    %c0_0 = arith.constant 0 : index
    %0 = vector.load %arg0[%c0, %c0_0] : memref<16x32xf32, #tpu.memory_space<vmem>>, vector<16x32xf32>
    %1 = arith.truncf %0 : vector<16x32xf32> to vector<16x32xbf16>
    %c0_1 = arith.constant 0 : index
    %c0_2 = arith.constant 0 : index
    %2 = vector.load %arg1[%c0_1, %c0_2] : memref<32x128xbf16, #tpu.memory_space<vmem>>, vector<32x128xbf16>
    %cst = arith.constant dense<0.000000e+00> : vector<16x128xf32>
    %3 = tpu.matmul %1, %2, %cst {dimension_numbers = #tpu.dot_dimension_numbers<[1], [0], [0], [1], [0, 0, 1, 1], [], []>} : vector<16x32xbf16>, vector<32x128xbf16>, vector<16x128xf32> -> vector<16x128xf32>
    %c0_3 = arith.constant 0 : index
    %c0_4 = arith.constant 0 : index
    %4 = vector.load %arg2[%c0_3, %c0_4] : memref<1x128xf32, #tpu.memory_space<vmem>>, vector<1x128xf32>
    %5 = vector.broadcast %4 : vector<1x128xf32> to vector<16x128xf32>
    %6 = arith.addf %3, %5 : vector<16x128xf32>
    %cst_5 = arith.constant 0.000000e+00 : f32
    %7 = vector.broadcast %cst_5 : f32 to vector<16x128xf32>
    %8 = arith.cmpf ogt, %6, %7 : vector<16x128xf32>
    %cst_6 = arith.constant 2.000000e-01 : f32
    %9 = vector.broadcast %cst_6 : f32 to vector<16x128xf32>
    %10 = arith.mulf %9, %6 : vector<16x128xf32>
    %11 = arith.select %8, %6, %10 : vector<16x128xi1>, vector<16x128xf32>
    %12 = arith.truncf %11 : vector<16x128xf32> to vector<16x128xbf16>
    %c0_7 = arith.constant 0 : index
    %c0_8 = arith.constant 0 : index
    %13 = vector.load %arg3[%c0_7, %c0_8] : memref<128x256xbf16, #tpu.memory_space<vmem>>, vector<128x256xbf16>
    %cst_9 = arith.constant dense<0.000000e+00> : vector<16x256xf32>
    %14 = tpu.matmul %12, %13, %cst_9 {dimension_numbers = #tpu.dot_dimension_numbers<[1], [0], [0], [1], [0, 0, 1, 1], [], []>} : vector<16x128xbf16>, vector<128x256xbf16>, vector<16x256xf32> -> vector<16x256xf32>
    %c0_10 = arith.constant 0 : index
    %c0_11 = arith.constant 0 : index
    %15 = vector.load %arg4[%c0_10, %c0_11] : memref<1x256xf32, #tpu.memory_space<vmem>>, vector<1x256xf32>
    %c0_12 = arith.constant 0 : index
    %c0_13 = arith.constant 0 : index
    %16 = vector.load %arg5[%c0_12, %c0_13] : memref<1x256xf32, #tpu.memory_space<vmem>>, vector<1x256xf32>
    %cst_14 = arith.constant dense<0.000000e+00> : vector<256xf32>
    %17 = vector.multi_reduction <add>, %14, %cst_14 [0] : vector<16x256xf32> to vector<256xf32>
    %18 = vector.shape_cast %17 : vector<256xf32> to vector<1x256xf32>
    %cst_15 = arith.constant 6.250000e-02 : f32
    %19 = vector.broadcast %cst_15 : f32 to vector<1x256xf32>
    %20 = arith.mulf %18, %19 : vector<1x256xf32>
    %21 = arith.mulf %14, %14 : vector<16x256xf32>
    %cst_16 = arith.constant dense<0.000000e+00> : vector<256xf32>
    %22 = vector.multi_reduction <add>, %21, %cst_16 [0] : vector<16x256xf32> to vector<256xf32>
    %23 = vector.shape_cast %22 : vector<256xf32> to vector<1x256xf32>
    %cst_17 = arith.constant 6.250000e-02 : f32
    %24 = vector.broadcast %cst_17 : f32 to vector<1x256xf32>
    %25 = arith.mulf %23, %24 : vector<1x256xf32>
    %26 = arith.mulf %20, %20 : vector<1x256xf32>
    %27 = arith.subf %25, %26 : vector<1x256xf32>
    %cst_18 = arith.constant 8.000000e-01 : f32
    %28 = vector.broadcast %cst_18 : f32 to vector<1x256xf32>
    %29 = arith.addf %27, %28 : vector<1x256xf32>
    %30 = math.rsqrt %29 : vector<1x256xf32>
    %31 = arith.mulf %15, %30 : vector<1x256xf32>
    %32 = arith.mulf %20, %31 : vector<1x256xf32>
    %33 = arith.subf %16, %32 : vector<1x256xf32>
    %34 = vector.broadcast %31 : vector<1x256xf32> to vector<16x256xf32>
    %35 = arith.mulf %14, %34 : vector<16x256xf32>
    %36 = vector.broadcast %33 : vector<1x256xf32> to vector<16x256xf32>
    %37 = arith.addf %35, %36 : vector<16x256xf32>
    %cst_19 = arith.constant 0.000000e+00 : f32
    %38 = vector.broadcast %cst_19 : f32 to vector<16x256xf32>
    %39 = arith.cmpf ogt, %37, %38 : vector<16x256xf32>
    %cst_20 = arith.constant 2.000000e-01 : f32
    %40 = vector.broadcast %cst_20 : f32 to vector<16x256xf32>
    %41 = arith.mulf %40, %37 : vector<16x256xf32>
    %42 = arith.select %39, %37, %41 : vector<16x256xi1>, vector<16x256xf32>
    %43 = arith.truncf %42 : vector<16x256xf32> to vector<16x256xbf16>
    %c0_21 = arith.constant 0 : index
    %c0_22 = arith.constant 0 : index
    %44 = vector.load %arg6[%c0_21, %c0_22] : memref<256x512xbf16, #tpu.memory_space<vmem>>, vector<256x512xbf16>
    %cst_23 = arith.constant dense<0.000000e+00> : vector<16x512xf32>
    %45 = tpu.matmul %43, %44, %cst_23 {dimension_numbers = #tpu.dot_dimension_numbers<[1], [0], [0], [1], [0, 0, 1, 1], [], []>} : vector<16x256xbf16>, vector<256x512xbf16>, vector<16x512xf32> -> vector<16x512xf32>
    %c0_24 = arith.constant 0 : index
    %c0_25 = arith.constant 0 : index
    %46 = vector.load %arg7[%c0_24, %c0_25] : memref<1x512xf32, #tpu.memory_space<vmem>>, vector<1x512xf32>
    %c0_26 = arith.constant 0 : index
    %c0_27 = arith.constant 0 : index
    %47 = vector.load %arg8[%c0_26, %c0_27] : memref<1x512xf32, #tpu.memory_space<vmem>>, vector<1x512xf32>
    %cst_28 = arith.constant dense<0.000000e+00> : vector<512xf32>
    %48 = vector.multi_reduction <add>, %45, %cst_28 [0] : vector<16x512xf32> to vector<512xf32>
    %49 = vector.shape_cast %48 : vector<512xf32> to vector<1x512xf32>
    %cst_29 = arith.constant 6.250000e-02 : f32
    %50 = vector.broadcast %cst_29 : f32 to vector<1x512xf32>
    %51 = arith.mulf %49, %50 : vector<1x512xf32>
    %52 = arith.mulf %45, %45 : vector<16x512xf32>
    %cst_30 = arith.constant dense<0.000000e+00> : vector<512xf32>
    %53 = vector.multi_reduction <add>, %52, %cst_30 [0] : vector<16x512xf32> to vector<512xf32>
    %54 = vector.shape_cast %53 : vector<512xf32> to vector<1x512xf32>
    %cst_31 = arith.constant 6.250000e-02 : f32
    %55 = vector.broadcast %cst_31 : f32 to vector<1x512xf32>
    %56 = arith.mulf %54, %55 : vector<1x512xf32>
    %57 = arith.mulf %51, %51 : vector<1x512xf32>
    %58 = arith.subf %56, %57 : vector<1x512xf32>
    %cst_32 = arith.constant 8.000000e-01 : f32
    %59 = vector.broadcast %cst_32 : f32 to vector<1x512xf32>
    %60 = arith.addf %58, %59 : vector<1x512xf32>
    %61 = math.rsqrt %60 : vector<1x512xf32>
    %62 = arith.mulf %46, %61 : vector<1x512xf32>
    %63 = arith.mulf %51, %62 : vector<1x512xf32>
    %64 = arith.subf %47, %63 : vector<1x512xf32>
    %65 = vector.broadcast %62 : vector<1x512xf32> to vector<16x512xf32>
    %66 = arith.mulf %45, %65 : vector<16x512xf32>
    %67 = vector.broadcast %64 : vector<1x512xf32> to vector<16x512xf32>
    %68 = arith.addf %66, %67 : vector<16x512xf32>
    %cst_33 = arith.constant 0.000000e+00 : f32
    %69 = vector.broadcast %cst_33 : f32 to vector<16x512xf32>
    %70 = arith.cmpf ogt, %68, %69 : vector<16x512xf32>
    %cst_34 = arith.constant 2.000000e-01 : f32
    %71 = vector.broadcast %cst_34 : f32 to vector<16x512xf32>
    %72 = arith.mulf %71, %68 : vector<16x512xf32>
    %73 = arith.select %70, %68, %72 : vector<16x512xi1>, vector<16x512xf32>
    %74 = arith.truncf %73 : vector<16x512xf32> to vector<16x512xbf16>
    %c0_35 = arith.constant 0 : index
    %c0_36 = arith.constant 0 : index
    %75 = vector.load %arg9[%c0_35, %c0_36] : memref<512x1024xbf16, #tpu.memory_space<vmem>>, vector<512x1024xbf16>
    %cst_37 = arith.constant dense<0.000000e+00> : vector<16x1024xf32>
    %76 = tpu.matmul %74, %75, %cst_37 {dimension_numbers = #tpu.dot_dimension_numbers<[1], [0], [0], [1], [0, 0, 1, 1], [], []>} : vector<16x512xbf16>, vector<512x1024xbf16>, vector<16x1024xf32> -> vector<16x1024xf32>
    %c0_38 = arith.constant 0 : index
    %c0_39 = arith.constant 0 : index
    %77 = vector.load %arg10[%c0_38, %c0_39] : memref<1x1024xf32, #tpu.memory_space<vmem>>, vector<1x1024xf32>
    %c0_40 = arith.constant 0 : index
    %c0_41 = arith.constant 0 : index
    %78 = vector.load %arg11[%c0_40, %c0_41] : memref<1x1024xf32, #tpu.memory_space<vmem>>, vector<1x1024xf32>
    %cst_42 = arith.constant dense<0.000000e+00> : vector<1024xf32>
    %79 = vector.multi_reduction <add>, %76, %cst_42 [0] : vector<16x1024xf32> to vector<1024xf32>
    %80 = vector.shape_cast %79 : vector<1024xf32> to vector<1x1024xf32>
    %cst_43 = arith.constant 6.250000e-02 : f32
    %81 = vector.broadcast %cst_43 : f32 to vector<1x1024xf32>
    %82 = arith.mulf %80, %81 : vector<1x1024xf32>
    %83 = arith.mulf %76, %76 : vector<16x1024xf32>
    %cst_44 = arith.constant dense<0.000000e+00> : vector<1024xf32>
    %84 = vector.multi_reduction <add>, %83, %cst_44 [0] : vector<16x1024xf32> to vector<1024xf32>
    %85 = vector.shape_cast %84 : vector<1024xf32> to vector<1x1024xf32>
    %cst_45 = arith.constant 6.250000e-02 : f32
    %86 = vector.broadcast %cst_45 : f32 to vector<1x1024xf32>
    %87 = arith.mulf %85, %86 : vector<1x1024xf32>
    %88 = arith.mulf %82, %82 : vector<1x1024xf32>
    %89 = arith.subf %87, %88 : vector<1x1024xf32>
    %cst_46 = arith.constant 8.000000e-01 : f32
    %90 = vector.broadcast %cst_46 : f32 to vector<1x1024xf32>
    %91 = arith.addf %89, %90 : vector<1x1024xf32>
    %92 = math.rsqrt %91 : vector<1x1024xf32>
    %93 = arith.mulf %77, %92 : vector<1x1024xf32>
    %94 = arith.mulf %82, %93 : vector<1x1024xf32>
    %95 = arith.subf %78, %94 : vector<1x1024xf32>
    %96 = vector.broadcast %93 : vector<1x1024xf32> to vector<16x1024xf32>
    %97 = arith.mulf %76, %96 : vector<16x1024xf32>
    %98 = vector.broadcast %95 : vector<1x1024xf32> to vector<16x1024xf32>
    %99 = arith.addf %97, %98 : vector<16x1024xf32>
    %cst_47 = arith.constant 0.000000e+00 : f32
    %100 = vector.broadcast %cst_47 : f32 to vector<16x1024xf32>
    %101 = arith.cmpf ogt, %99, %100 : vector<16x1024xf32>
    %cst_48 = arith.constant 2.000000e-01 : f32
    %102 = vector.broadcast %cst_48 : f32 to vector<16x1024xf32>
    %103 = arith.mulf %102, %99 : vector<16x1024xf32>
    %104 = arith.select %101, %99, %103 : vector<16x1024xi1>, vector<16x1024xf32>
    %105 = arith.truncf %104 : vector<16x1024xf32> to vector<16x1024xbf16>
    %c0_49 = arith.constant 0 : index
    %c0_50 = arith.constant 0 : index
    %106 = vector.load %arg12[%c0_49, %c0_50] : memref<1024x1024xbf16, #tpu.memory_space<vmem>>, vector<1024x1024xbf16>
    %cst_51 = arith.constant dense<0.000000e+00> : vector<16x1024xf32>
    %107 = tpu.matmul %105, %106, %cst_51 {dimension_numbers = #tpu.dot_dimension_numbers<[1], [0], [0], [1], [0, 0, 1, 1], [], []>} : vector<16x1024xbf16>, vector<1024x1024xbf16>, vector<16x1024xf32> -> vector<16x1024xf32>
    %c0_52 = arith.constant 0 : index
    %c0_53 = arith.constant 0 : index
    %108 = vector.load %arg13[%c0_52, %c0_53] : memref<1x1024xf32, #tpu.memory_space<vmem>>, vector<1x1024xf32>
    %109 = vector.broadcast %108 : vector<1x1024xf32> to vector<16x1024xf32>
    %110 = arith.addf %107, %109 : vector<16x1024xf32>
    %111 = math.tanh %110 : vector<16x1024xf32>
    %c0_54 = arith.constant 0 : index
    %c0_55 = arith.constant 0 : index
    %112 = vector.load %arg14[%c0_54, %c0_55] : memref<16x1024xf32, #tpu.memory_space<vmem>>, vector<16x1024xf32>
    tpu.vector_store %arg14[%c0_54, %c0_55], %111 {strides = array<i32>} : memref<16x1024xf32, #tpu.memory_space<vmem>>, vector<16x1024xf32>,
    return
  }
}

</mosaic_0001>

<llo_original>
// kernel: generator_forward.1
$region0: #{generator_forward.1}
  #allocation0 [shape = 'u32[]', space=smem, size = 0x4, offset = 0x4, fixed_abs, tag = 'smem constant byte address 0x4 - core index']
  #allocation1 [shape = 'u32[144,128]{1,0:T(1,128)}', space=vmem, size = 0x12000, scoped, tag = 'internal scratch']
  %s0 = inlined_call_operand.hbm [shape: f32[16,32], index: 0, kind: input, shape index: {}]
  %s1 = inlined_call_operand.hbm [shape: bf16[32,128], index: 1, kind: input, shape index: {}]
  %s2 = inlined_call_operand.hbm [shape: f32[1,128], index: 2, kind: input, shape index: {}]
  %s3 = inlined_call_operand.hbm [shape: bf16[128,256], index: 3, kind: input, shape index: {}]
  %s4 = inlined_call_operand.hbm [shape: f32[1,256], index: 4, kind: input, shape index: {}]
  %s5 = inlined_call_operand.hbm [shape: f32[1,256], index: 5, kind: input, shape index: {}]
  %s6 = inlined_call_operand.hbm [shape: bf16[256,512], index: 6, kind: input, shape index: {}]
  %s7 = inlined_call_operand.hbm [shape: f32[1,512], index: 7, kind: input, shape index: {}]
  %s8 = inlined_call_operand.hbm [shape: f32[1,512], index: 8, kind: input, shape index: {}]
  %s9 = inlined_call_operand.hbm [shape: bf16[512,1024], index: 9, kind: input, shape index: {}]
  %s10 = inlined_call_operand.hbm [shape: f32[1,1024], index: 10, kind: input, shape index: {}]
  %s11 = inlined_call_operand.hbm [shape: f32[1,1024], index: 11, kind: input, shape index: {}]
  %s12 = inlined_call_operand.hbm [shape: bf16[1024,1024], index: 12, kind: input, shape index: {}]
  %s13 = inlined_call_operand.hbm [shape: f32[1,1024], index: 13, kind: input, shape index: {}]
  %s14 = inlined_call_operand.vmem [shape: f32[16,1024], index: 14, kind: output, shape index: {}]
  %s15 = sld [smem:[#allocation0]]
  $region122: #{generator_forward.1} parent=0
    _
  %s17 = ssub.s32 1, %s15
  %s18 = scalar_select 0, %s17, %s15
  $region1: #{generator_forward.1} parent=0
    #allocation2 [shape = 'u8[8192]{0}', space=vmem, size = 0x2000, scoped, tag = 'input window, operand 0, single buffered']
    #allocation3 [shape = 's32[1]{0}', space=sflag, size = 0x4, scoped, tag = 'scoped memory for generator_forward.1']
    #allocation4 [shape = 'u8[8192]{0}', space=vmem, size = 0x2000, scoped, tag = 'input window, operand 1, single buffered']
    #allocation5 [shape = 's32[1]{0}', space=sflag, size = 0x4, scoped, tag = 'scoped memory for generator_forward.1']
    #allocation6 [shape = 'u8[512]{0}', space=vmem, size = 0x400, scoped, tag = 'input window, operand 2, single buffered']
    #allocation7 [shape = 'u8[65536]{0}', space=vmem, size = 0x10000, scoped, tag = 'input window, operand 3, single buffered']
    #allocation8 [shape = 's32[1]{0}', space=sflag, size = 0x4, scoped, tag = 'scoped memory for generator_forward.1']
    #allocation9 [shape = 'u8[1024]{0}', space=vmem, size = 0x400, scoped, tag = 'input window, operand 4, single buffered']
    #allocation10 [shape = 'u8[1024]{0}', space=vmem, size = 0x400, scoped, tag = 'input window, operand 5, single buffered']
    #allocation11 [shape = 's32[1]{0}', space=sflag, size = 0x4, scoped, tag = 'scoped memory for generator_forward.1']
    #allocation12 [shape = 'u8[262144]{0}', space=vmem, size = 0x40000, scoped, tag = 'input window, operand 6, single buffered']
    #allocation13 [shape = 'u8[2048]{0}', space=vmem, size = 0x800, scoped, tag = 'input window, operand 7, single buffered']
    #allocation14 [shape = 's32[1]{0}', space=sflag, size = 0x4, scoped, tag = 'scoped memory for generator_forward.1']
    #allocation15 [shape = 'u8[2048]{0}', space=vmem, size = 0x800, scoped, tag = 'input window, operand 8, single buffered']
    #allocation16 [shape = 'u8[1048576]{0}', space=vmem, size = 0x100000, scoped, tag = 'input window, operand 9, single buffered']
    #allocation17 [shape = 's32[1]{0}', space=sflag, size = 0x4, scoped, tag = 'scoped memory for generator_forward.1']
    #allocation18 [shape = 'u8[4096]{0}', space=vmem, size = 0x1000, scoped, tag = 'input window, operand 10, single buffered']
    #allocation19 [shape = 'u8[4096]{0}', space=vmem, size = 0x1000, scoped, tag = 'input window, operand 11, single buffered']
    #allocation20 [shape = 's32[1]{0}', space=sflag, size = 0x4, scoped, tag = 'scoped memory for generator_forward.1']
    #allocation21 [shape = 'u8[2097152]{0}', space=vmem, size = 0x200000, scoped, tag = 'input window, operand 12, single buffered']
    #allocation22 [shape = 'u8[4096]{0}', space=vmem, size = 0x1000, scoped, tag = 'input window, operand 13, single buffered']
    #allocation23 [shape = 's32[1]{0}', space=sflag, size = 0x4, scoped, tag = 'scoped memory for generator_forward.1']
    %19 = vsyncpa [#allocation3], 0
    %20 = vsyncpa [#allocation5], 0
    %21 = vsyncpa [#allocation8], 0
    %22 = vsyncpa [#allocation11], 0
    %23 = vsyncpa [#allocation14], 0
    %24 = vsyncpa [#allocation17], 0
    %25 = vsyncpa [#allocation20], 0
    %26 = vsyncpa [#allocation23], 0
    // Predicated region
    $region2: #{generator_forward.1} parent=1 // pred_check
      _
    $region3: #{generator_forward.1} parent=1 // pred_check_branch
      %28 = sbr.rel (0) target = $region5
    $region4: #{generator_forward.1} parent=1 // pred_region
      %s30 = ssub.s32 256, 256
      %31 = vsyncadd [#allocation3], %s30
      %s32 = sshll.u32 [#allocation2], 4
      %s33 = int_to_ptr.vmem [resolvable:$true] %s32
      %38 = dma.hbm_to_vmem [thread:$0]  %s0, 256, %s33, [#allocation3], 128, 128, 8
    $region5: #{generator_forward.1} parent=1 // pred_fallthru
      _
    // Predicated region
    $region6: #{generator_forward.1} parent=1 // pred_check
      _
    $region7: #{generator_forward.1} parent=1 // pred_check_branch
      %40 = sbr.rel (0) target = $region9
    $region8: #{generator_forward.1} parent=1 // pred_region
      %s42 = ssub.s32 256, 256
      %43 = vsyncadd [#allocation5], %s42
      %s44 = sshll.u32 [#allocation4], 4
      %s45 = int_to_ptr.vmem [resolvable:$true] %s44
      %50 = dma.hbm_to_vmem [thread:$0]  %s1, 256, %s45, [#allocation5], 64, 64, 4
    $region9: #{generator_forward.1} parent=1 // pred_fallthru
      _
    // Predicated region
    $region10: #{generator_forward.1} parent=1 // pred_check
      _
    $region11: #{generator_forward.1} parent=1 // pred_check_branch
      %52 = sbr.rel (0) target = $region13
    $region12: #{generator_forward.1} parent=1 // pred_region
      %s54 = ssub.s32 16, 16
      %55 = vsyncadd [#allocation5], %s54
      %s57 = sshll.u32 [#allocation6], 4
      %s58 = int_to_ptr.vmem [resolvable:$true] %s57
      %60 = dma.hbm_to_vmem [thread:$0]  %s2, 16, %s58, [#allocation5]
    $region13: #{generator_forward.1} parent=1 // pred_fallthru
      _
    // Predicated region
    $region14: #{generator_forward.1} parent=1 // pred_check
      _
    $region15: #{generator_forward.1} parent=1 // pred_check_branch
      %62 = sbr.rel (0) target = $region17
    $region16: #{generator_forward.1} parent=1 // pred_region
      %s64 = ssub.s32 2048, 2048
      %65 = vsyncadd [#allocation8], %s64
      %s66 = sshll.u32 [#allocation7], 4
      %s67 = int_to_ptr.vmem [resolvable:$true] %s66
      %72 = dma.hbm_to_vmem [thread:$0]  %s3, 2048, %s67, [#allocation8], 128, 128, 8
    $region17: #{generator_forward.1} parent=1 // pred_fallthru
      _
    // Predicated region
    $region18: #{generator_forward.1} parent=1 // pred_check
      _
    $region19: #{generator_forward.1} parent=1 // pred_check_branch
      %74 = sbr.rel (0) target = $region21
    $region20: #{generator_forward.1} parent=1 // pred_region
      %s76 = ssub.s32 32, 32
      %77 = vsyncadd [#allocation8], %s76
      %s79 = sshll.u32 [#allocation9], 4
      %s80 = int_to_ptr.vmem [resolvable:$true] %s79
      %82 = dma.hbm_to_vmem [thread:$0]  %s4, 32, %s80, [#allocation8]
    $region21: #{generator_forward.1} parent=1 // pred_fallthru
      _
    // Predicated region
    $region22: #{generator_forward.1} parent=1 // pred_check
      _
    $region23: #{generator_forward.1} parent=1 // pred_check_branch
      %84 = sbr.rel (0) target = $region25
    $region24: #{generator_forward.1} parent=1 // pred_region
      %s86 = ssub.s32 32, 32
      %87 = vsyncadd [#allocation11], %s86
      %s89 = sshll.u32 [#allocation10], 4
      %s90 = int_to_ptr.vmem [resolvable:$true] %s89
      %92 = dma.hbm_to_vmem [thread:$0]  %s5, 32, %s90, [#allocation11]
    $region25: #{generator_forward.1} parent=1 // pred_fallthru
      _
    // Predicated region
    $region26: #{generator_forward.1} parent=1 // pred_check
      _
    $region27: #{generator_forward.1} parent=1 // pred_check_branch
      %94 = sbr.rel (0) target = $region29
    $region28: #{generator_forward.1} parent=1 // pred_region
      %s96 = ssub.s32 8192, 8192
      %97 = vsyncadd [#allocation11], %s96
      %s98 = sshll.u32 [#allocation12], 4
      %s99 = int_to_ptr.vmem [resolvable:$true] %s98
      %104 = dma.hbm_to_vmem [thread:$0]  %s6, 8192, %s99, [#allocation11], 256, 256, 16
    $region29: #{generator_forward.1} parent=1 // pred_fallthru
      _
    // Predicated region
    $region30: #{generator_forward.1} parent=1 // pred_check
      _
    $region31: #{generator_forward.1} parent=1 // pred_check_branch
      %106 = sbr.rel (0) target = $region33
    $region32: #{generator_forward.1} parent=1 // pred_region
      %s108 = ssub.s32 64, 64
      %109 = vsyncadd [#allocation14], %s108
      %s111 = sshll.u32 [#allocation13], 4
      %s112 = int_to_ptr.vmem [resolvable:$true] %s111
      %114 = dma.hbm_to_vmem [thread:$0]  %s7, 64, %s112, [#allocation14]
    $region33: #{generator_forward.1} parent=1 // pred_fallthru
      _
    // Predicated region
    $region34: #{generator_forward.1} parent=1 // pred_check
      _
    $region35: #{generator_forward.1} parent=1 // pred_check_branch
      %116 = sbr.rel (0) target = $region37
    $region36: #{generator_forward.1} parent=1 // pred_region
      %s118 = ssub.s32 64, 64
      %119 = vsyncadd [#allocation14], %s118
      %s121 = sshll.u32 [#allocation15], 4
      %s122 = int_to_ptr.vmem [resolvable:$true] %s121
      %124 = dma.hbm_to_vmem [thread:$0]  %s8, 64, %s122, [#allocation14]
    $region37: #{generator_forward.1} parent=1 // pred_fallthru
      _
    // Predicated region
    $region38: #{generator_forward.1} parent=1 // pred_check
      _
    $region39: #{generator_forward.1} parent=1 // pred_check_branch
      %126 = sbr.rel (0) target = $region41
    $region40: #{generator_forward.1} parent=1 // pred_region
      %s128 = ssub.s32 32768, 32768
      %129 = vsyncadd [#allocation17], %s128
      %s130 = sshll.u32 [#allocation16], 4
      %s131 = int_to_ptr.vmem [resolvable:$true] %s130
      %136 = dma.hbm_to_vmem [thread:$0]  %s9, 32768, %s131, [#allocation17], 512, 512, 32
    $region41: #{generator_forward.1} parent=1 // pred_fallthru
      _
    // Predicated region
    $region42: #{generator_forward.1} parent=1 // pred_check
      _
    $region43: #{generator_forward.1} parent=1 // pred_check_branch
      %138 = sbr.rel (0) target = $region45
    $region44: #{generator_forward.1} parent=1 // pred_region
      %s140 = ssub.s32 128, 128
      %141 = vsyncadd [#allocation17], %s140
      %s143 = sshll.u32 [#allocation18], 4
      %s144 = int_to_ptr.vmem [resolvable:$true] %s143
      %146 = dma.hbm_to_vmem [thread:$0]  %s10, 128, %s144, [#allocation17]
    $region45: #{generator_forward.1} parent=1 // pred_fallthru
      _
    // Predicated region
    $region46: #{generator_forward.1} parent=1 // pred_check
      _
    $region47: #{generator_forward.1} parent=1 // pred_check_branch
      %148 = sbr.rel (0) target = $region49
    $region48: #{generator_forward.1} parent=1 // pred_region
      %s150 = ssub.s32 128, 128
      %151 = vsyncadd [#allocation20], %s150
      %s153 = sshll.u32 [#allocation19], 4
      %s154 = int_to_ptr.vmem [resolvable:$true] %s153
      %156 = dma.hbm_to_vmem [thread:$0]  %s11, 128, %s154, [#allocation20]
    $region49: #{generator_forward.1} parent=1 // pred_fallthru
      _
    // Predicated region
    $region50: #{generator_forward.1} parent=1 // pred_check
      _
    $region51: #{generator_forward.1} parent=1 // pred_check_branch
      %158 = sbr.rel (0) target = $region53
    $region52: #{generator_forward.1} parent=1 // pred_region
      %s160 = ssub.s32 65536, 65536
      %161 = vsyncadd [#allocation20], %s160
      %s162 = sshll.u32 [#allocation21], 4
      %s163 = int_to_ptr.vmem [resolvable:$true] %s162
      %168 = dma.hbm_to_vmem [thread:$0]  %s12, 65536, %s163, [#allocation20], 512, 512, 32
    $region53: #{generator_forward.1} parent=1 // pred_fallthru
      _
    // Predicated region
    $region54: #{generator_forward.1} parent=1 // pred_check
      _
    $region55: #{generator_forward.1} parent=1 // pred_check_branch
      %170 = sbr.rel (0) target = $region57
    $region56: #{generator_forward.1} parent=1 // pred_region
      %s172 = ssub.s32 128, 128
      %173 = vsyncadd [#allocation23], %s172
      %s175 = sshll.u32 [#allocation22], 4
      %s176 = int_to_ptr.vmem [resolvable:$true] %s175
      %178 = dma.hbm_to_vmem [thread:$0]  %s13, 128, %s176, [#allocation23]
    $region57: #{generator_forward.1} parent=1 // pred_fallthru
      _
    // Predicated region
    $region58: #{generator_forward.1} parent=1 // pred_check
      _
    $region59: #{generator_forward.1} parent=1 // pred_check_branch
      %180 = sbr.rel (0) target = $region61
    $region60: #{generator_forward.1} parent=1 // pred_region
      %181 = dma.done [#allocation3], 256
    $region61: #{generator_forward.1} parent=1 // pred_fallthru
      _
    // Predicated region
    $region62: #{generator_forward.1} parent=1 // pred_check
      _
    $region63: #{generator_forward.1} parent=1 // pred_check_branch
      %183 = sbr.rel (0) target = $region65
    $region64: #{generator_forward.1} parent=1 // pred_region
      %184 = dma.done [#allocation5], 256
    $region65: #{generator_forward.1} parent=1 // pred_fallthru
      _
    // Predicated region
    $region66: #{generator_forward.1} parent=1 // pred_check
      _
    $region67: #{generator_forward.1} parent=1 // pred_check_branch
      %186 = sbr.rel (0) target = $region69
    $region68: #{generator_forward.1} parent=1 // pred_region
      %187 = dma.done [#allocation5], 16
    $region69: #{generator_forward.1} parent=1 // pred_fallthru
      _
    // Predicated region
    $region70: #{generator_forward.1} parent=1 // pred_check
      _
    $region71: #{generator_forward.1} parent=1 // pred_check_branch
      %189 = sbr.rel (0) target = $region73
    $region72: #{generator_forward.1} parent=1 // pred_region
      %190 = dma.done [#allocation8], 2048
    $region73: #{generator_forward.1} parent=1 // pred_fallthru
      _
    // Predicated region
    $region74: #{generator_forward.1} parent=1 // pred_check
      _
    $region75: #{generator_forward.1} parent=1 // pred_check_branch
      %192 = sbr.rel (0) target = $region77
    $region76: #{generator_forward.1} parent=1 // pred_region
      %193 = dma.done [#allocation8], 32
    $region77: #{generator_forward.1} parent=1 // pred_fallthru
      _
    // Predicated region
    $region78: #{generator_forward.1} parent=1 // pred_check
      _
    $region79: #{generator_forward.1} parent=1 // pred_check_branch
      %195 = sbr.rel (0) target = $region81
    $region80: #{generator_forward.1} parent=1 // pred_region
      %196 = dma.done [#allocation11], 32
    $region81: #{generator_forward.1} parent=1 // pred_fallthru
      _
    // Predicated region
    $region82: #{generator_forward.1} parent=1 // pred_check
      _
    $region83: #{generator_forward.1} parent=1 // pred_check_branch
      %198 = sbr.rel (0) target = $region85
    $region84: #{generator_forward.1} parent=1 // pred_region
      %199 = dma.done [#allocation11], 8192
    $region85: #{generator_forward.1} parent=1 // pred_fallthru
      _
    // Predicated region
    $region86: #{generator_forward.1} parent=1 // pred_check
      _
    $region87: #{generator_forward.1} parent=1 // pred_check_branch
      %201 = sbr.rel (0) target = $region89
    $region88: #{generator_forward.1} parent=1 // pred_region
      %202 = dma.done [#allocation14], 64
    $region89: #{generator_forward.1} parent=1 // pred_fallthru
      _
    // Predicated region
    $region90: #{generator_forward.1} parent=1 // pred_check
      _
    $region91: #{generator_forward.1} parent=1 // pred_check_branch
      %204 = sbr.rel (0) target = $region93
    $region92: #{generator_forward.1} parent=1 // pred_region
      %205 = dma.done [#allocation14], 64
    $region93: #{generator_forward.1} parent=1 // pred_fallthru
      _
    // Predicated region
    $region94: #{generator_forward.1} parent=1 // pred_check
      _
    $region95: #{generator_forward.1} parent=1 // pred_check_branch
      %207 = sbr.rel (0) target = $region97
    $region96: #{generator_forward.1} parent=1 // pred_region
      %208 = dma.done [#allocation17], 32768
    $region97: #{generator_forward.1} parent=1 // pred_fallthru
      _
    // Predicated region
    $region98: #{generator_forward.1} parent=1 // pred_check
      _
    $region99: #{generator_forward.1} parent=1 // pred_check_branch
      %210 = sbr.rel (0) target = $region101
    $region100: #{generator_forward.1} parent=1 // pred_region
      %211 = dma.done [#allocation17], 128
    $region101: #{generator_forward.1} parent=1 // pred_fallthru
      _
    // Predicated region
    $region102: #{generator_forward.1} parent=1 // pred_check
      _
    $region103: #{generator_forward.1} parent=1 // pred_check_branch
      %213 = sbr.rel (0) target = $region105
    $region104: #{generator_forward.1} parent=1 // pred_region
      %214 = dma.done [#allocation20], 128
    $region105: #{generator_forward.1} parent=1 // pred_fallthru
      _
    // Predicated region
    $region106: #{generator_forward.1} parent=1 // pred_check
      _
    $region107: #{generator_forward.1} parent=1 // pred_check_branch
      %216 = sbr.rel (0) target = $region109
    $region108: #{generator_forward.1} parent=1 // pred_region
      %217 = dma.done [#allocation20], 65536
    $region109: #{generator_forward.1} parent=1 // pred_fallthru
      _
    // Predicated region
    $region110: #{generator_forward.1} parent=1 // pred_check
      _
    $region111: #{generator_forward.1} parent=1 // pred_check_branch
      %219 = sbr.rel (0) target = $region113
    $region112: #{generator_forward.1} parent=1 // pred_region
      %220 = dma.done [#allocation23], 128
    $region113: #{generator_forward.1} parent=1 // pred_fallthru
      _
    %v222 = vld [vmem:[#allocation2] sm:$0xff]
    %v223 = vld [vmem:[#allocation2 + $0x8] sm:$0xff]
    %v224 = vpack.c.bf16 %v223, %v222
    %v225 = vld [vmem:[#allocation4] sm:$0xf]
    %v226 = vld [vmem:[#allocation4 + $0x4] sm:$0xf]
    %v227 = vld [vmem:[#allocation4 + $0x8] sm:$0xf]
    %v228 = vld [vmem:[#allocation4 + $0xc] sm:$0xf]
    %v229 = vld [vmem:[#allocation6] sm:$0x1]
    %v231 = vlaneseq
    %v232 = vshrl.u32 %v231, 7
    %v233 = vsub.s32 0, %v232
    %v234 = vrot.slane %v229, %v233
    %v240 = vunpack.c.l.b16 %v225
    %v241 = vunpack.c.l.b16 %v226
    %v242 = vunpack.c.l.b16 %v227
    %v243 = vunpack.c.l.b16 %v228
    %v244 = vpack.c.b16 %v241, %v240
    %v245 = vpack.c.b16 %v243, %v242
    %vm248 = vcmask 261120
    %v250 = vsel %vm248, %v224, 0
    %252 = vmatprep.subr.bf16.mxu0 0
    %253 = vmatpush1.bf16.msra.mxu0 0
    %254 = vmatprep.subr.bf16.mxu0 0
    %255 = vmatpush1.bf16.msra.mxu0 0
    %256 = vmatprep.subr.bf16.mxu0 0
    %257 = vmatpush1.bf16.msra.mxu0 0
    %258 = vmatprep.subr.bf16.mxu0 0
    %259 = vmatpush1.bf16.msra.mxu0 0
    %260 = vmatprep.subr.bf16.mxu0 0
    %261 = vmatpush1.bf16.msra.mxu0 0
    %262 = vmatprep.subr.bf16.mxu0 0
    %263 = vmatpush1.bf16.msra.mxu0 0
    %264 = vmatprep.subr.bf16.mxu0 0
    %265 = vmatpush1.bf16.msra.mxu0 %v245
    %266 = vmatprep.subr.bf16.mxu0 0
    %267 = vmatpush1.bf16.msra.mxu0 %v244
    %268 = vmatprep.subr.bf16.mxu0 0
    %269 = vmatpush2.bf16.msra.mxu0 0
    %270 = vmatprep.subr.bf16.mxu0 0
    %271 = vmatpush2.bf16.msra.mxu0 0
    %272 = vmatprep.subr.bf16.mxu0 0
    %273 = vmatpush2.bf16.msra.mxu0 0
    %274 = vmatprep.subr.bf16.mxu0 0
    %275 = vmatpush2.bf16.msra.mxu0 0
    %276 = vmatprep.subr.bf16.mxu0 0
    %277 = vmatpush2.bf16.msra.mxu0 0
    %278 = vmatprep.subr.bf16.mxu0 0
    %279 = vmatpush2.bf16.msra.mxu0 0
    %280 = vmatprep.subr.bf16.mxu0 0
    %281 = vmatpush2.bf16.msra.mxu0 0
    %282 = vmatprep.subr.bf16.mxu0 0
    %283 = vmatpush2.bf16.msra.mxu0 0
    %284 = vmatprep.mubr.bf16.mxu0 0
    %285 = vmatmul.mubr.bf16.gmra.mxu0 %v250
    %v286 = vpop.f32.mrf.mxu0
    %v287 = vadd.f32 %v234, %v286
    %v288 = vpop.f32.mrf.mxu0
    %v289 = vpop.f32.mrf.mxu0
    %v290 = vadd.f32 %v234, %v289
    %v291 = vpop.f32.mrf.mxu0
    %292 = vdwg.mxu0
    %vm293 = vcmp.gt.f32.partialorder %v287, 0.0
    %vm294 = vcmp.gt.f32.partialorder %v290, 0.0
    %v295 = vmul.f32 %v287, 0.2
    %v296 = vmul.f32 %v290, 0.2
    %v297 = vsel %vm293, %v287, %v295
    %v298 = vsel %vm294, %v290, %v296
    %v299 = vpack.c.bf16 %v298, %v297
    %v300 = vld [vmem:[#allocation7] sm:$0xff]
    %v301 = vld [vmem:[#allocation7 + $0x8] sm:$0xff]
    %v302 = vld [vmem:[#allocation7 + $0x10] sm:$0xff]
    %v303 = vld [vmem:[#allocation7 + $0x18] sm:$0xff]
    %v304 = vld [vmem:[#allocation7 + $0x20] sm:$0xff]
    %v305 = vld [vmem:[#allocation7 + $0x28] sm:$0xff]
    %v306 = vld [vmem:[#allocation7 + $0x30] sm:$0xff]
    %v307 = vld [vmem:[#allocation7 + $0x38] sm:$0xff]
    %v308 = vld [vmem:[#allocation7 + $0x40] sm:$0xff]
    %v309 = vld [vmem:[#allocation7 + $0x48] sm:$0xff]
    %v310 = vld [vmem:[#allocation7 + $0x50] sm:$0xff]
    %v311 = vld [vmem:[#allocation7 + $0x58] sm:$0xff]
    %v312 = vld [vmem:[#allocation7 + $0x60] sm:$0xff]
    %v313 = vld [vmem:[#allocation7 + $0x68] sm:$0xff]
    %v314 = vld [vmem:[#allocation7 + $0x70] sm:$0xff]
    %v315 = vld [vmem:[#allocation7 + $0x78] sm:$0xff]
    %v332 = vunpack.c.l.b16 %v300
    %v333 = vunpack.c.h.b16 %v300
    %v334 = vunpack.c.l.b16 %v301
    %v335 = vunpack.c.h.b16 %v301
    %v336 = vunpack.c.l.b16 %v302
    %v337 = vunpack.c.h.b16 %v302
    %v338 = vunpack.c.l.b16 %v303
    %v339 = vunpack.c.h.b16 %v303
    %v340 = vunpack.c.l.b16 %v304
    %v341 = vunpack.c.h.b16 %v304
    %v342 = vunpack.c.l.b16 %v305
    %v343 = vunpack.c.h.b16 %v305
    %v344 = vunpack.c.l.b16 %v306
    %v345 = vunpack.c.h.b16 %v306
    %v346 = vunpack.c.l.b16 %v307
    %v347 = vunpack.c.h.b16 %v307
    %v348 = vunpack.c.l.b16 %v308
    %v349 = vunpack.c.h.b16 %v308
    %v350 = vunpack.c.l.b16 %v309
    %v351 = vunpack.c.h.b16 %v309
    %v352 = vunpack.c.l.b16 %v310
    %v353 = vunpack.c.h.b16 %v310
    %v354 = vunpack.c.l.b16 %v311
    %v355 = vunpack.c.h.b16 %v311
    %v356 = vunpack.c.l.b16 %v312
    %v357 = vunpack.c.h.b16 %v312
    %v358 = vunpack.c.l.b16 %v313
    %v359 = vunpack.c.h.b16 %v313
    %v360 = vunpack.c.l.b16 %v314
    %v361 = vunpack.c.h.b16 %v314
    %v362 = vunpack.c.l.b16 %v315
    %v363 = vunpack.c.h.b16 %v315
    %v364 = vpack.c.b16 %v334, %v332
    %v365 = vpack.c.b16 %v335, %v333
    %v366 = vpack.c.b16 %v338, %v336
    %v367 = vpack.c.b16 %v339, %v337
    %v368 = vpack.c.b16 %v342, %v340
    %v369 = vpack.c.b16 %v343, %v341
    %v370 = vpack.c.b16 %v346, %v344
    %v371 = vpack.c.b16 %v347, %v345
    %v372 = vpack.c.b16 %v350, %v348
    %v373 = vpack.c.b16 %v351, %v349
    %v374 = vpack.c.b16 %v354, %v352
    %v375 = vpack.c.b16 %v355, %v353
    %v376 = vpack.c.b16 %v358, %v356
    %v377 = vpack.c.b16 %v359, %v357
    %v378 = vpack.c.b16 %v362, %v360
    %v379 = vpack.c.b16 %v363, %v361
    %396 = vmatprep.subr.bf16.mxu0 %v379
    %397 = vmatpush1.bf16.msra.mxu0 %v378
    %398 = vmatprep.subr.bf16.mxu0 %v377
    %399 = vmatpush1.bf16.msra.mxu0 %v376
    %400 = vmatprep.subr.bf16.mxu0 %v375
    %401 = vmatpush1.bf16.msra.mxu0 %v374
    %402 = vmatprep.subr.bf16.mxu0 %v373
    %403 = vmatpush1.bf16.msra.mxu0 %v372
    %404 = vmatprep.subr.bf16.mxu0 %v371
    %405 = vmatpush1.bf16.msra.mxu0 %v370
    %406 = vmatprep.subr.bf16.mxu0 %v369
    %407 = vmatpush1.bf16.msra.mxu0 %v368
    %408 = vmatprep.subr.bf16.mxu0 %v367
    %409 = vmatpush1.bf16.msra.mxu0 %v366
    %410 = vmatprep.subr.bf16.mxu0 %v365
    %411 = vmatpush1.bf16.msra.mxu0 %v364
    %412 = vmatprep.subr.bf16.mxu0 0
    %413 = vmatpush2.bf16.msra.mxu0 0
    %414 = vmatprep.subr.bf16.mxu0 0
    %415 = vmatpush2.bf16.msra.mxu0 0
    %416 = vmatprep.subr.bf16.mxu0 0
    %417 = vmatpush2.bf16.msra.mxu0 0
    %418 = vmatprep.subr.bf16.mxu0 0
    %419 = vmatpush2.bf16.msra.mxu0 0
    %420 = vmatprep.subr.bf16.mxu0 0
    %421 = vmatpush2.bf16.msra.mxu0 0
    %422 = vmatprep.subr.bf16.mxu0 0
    %423 = vmatpush2.bf16.msra.mxu0 0
    %424 = vmatprep.subr.bf16.mxu0 0
    %425 = vmatpush2.bf16.msra.mxu0 0
    %426 = vmatprep.subr.bf16.mxu0 0
    %427 = vmatpush2.bf16.msra.mxu0 0
    %428 = vmatprep.mubr.bf16.mxu0 0
    %429 = vmatmul.mubr.bf16.gmra.mxu0 %v299
    %v430 = vpop.f32.mrf.mxu0
    %v431 = vadd.f32 0.0, %v430
    %v432 = vpop.f32.mrf.mxu0
    %v433 = vadd.f32 0.0, %v432
    %v434 = vpop.f32.mrf.mxu0
    %v435 = vadd.f32 0.0, %v434
    %v436 = vpop.f32.mrf.mxu0
    %v437 = vadd.f32 0.0, %v436
    %438 = vdwg.mxu0
    %v439 = vld [vmem:[#allocation9] sm:$0x3]
    %v440 = vld [vmem:[#allocation10] sm:$0x3]
    %v441 = vadd.f32 %v431, %v435
    %v442 = vrot.slane %v441, 4
    %v443 = vadd.f32 %v441, %v442
    %v444 = vrot.slane %v443, 2
    %v445 = vadd.f32 %v443, %v444
    %v446 = vrot.slane %v445, 1
    %v447 = vadd.f32 %v445, %v446
    %v448 = vadd.f32 %v433, %v437
    %v449 = vrot.slane %v448, 4
    %v450 = vadd.f32 %v448, %v449
    %v451 = vrot.slane %v450, 2
    %v452 = vadd.f32 %v450, %v451
    %v453 = vrot.slane %v452, 1
    %v454 = vadd.f32 %v452, %v453
    %v455 = vmul.f32 %v447, 0.0625
    %v456 = vmul.f32 %v454, 0.0625
    %v457 = vmul.f32 %v431, %v431
    %v458 = vmul.f32 %v433, %v433
    %v459 = vmul.f32 %v435, %v435
    %v460 = vmul.f32 %v437, %v437
    %v461 = vadd.f32 %v457, %v459
    %v462 = vrot.slane %v461, 4
    %v463 = vadd.f32 %v461, %v462
    %v464 = vrot.slane %v463, 2
    %v465 = vadd.f32 %v463, %v464
    %v466 = vrot.slane %v465, 1
    %v467 = vadd.f32 %v465, %v466
    %v468 = vadd.f32 %v458, %v460
    %v469 = vrot.slane %v468, 4
    %v470 = vadd.f32 %v468, %v469
    %v471 = vrot.slane %v470, 2
    %v472 = vadd.f32 %v470, %v471
    %v473 = vrot.slane %v472, 1
    %v474 = vadd.f32 %v472, %v473
    %v475 = vmul.f32 %v467, 0.0625
    %v476 = vmul.f32 %v474, 0.0625
    %v477 = vmul.f32 %v455, %v455
    %v478 = vmul.f32 %v456, %v456
    %v479 = vsub.f32 %v475, %v477
    %v480 = vsub.f32 %v476, %v478
    %v481 = vadd.f32 %v479, 0.8
    %v482 = vadd.f32 %v480, 0.8
    %v483 = vrsqrt.pop %v481
    %v484 = vrsqrt.pop %v482
    %v487 = vcombine.low %v483, %v484
    %v489 = vunpack.c.l.s4 1966171168
    %v490 = vunpack.c.0.s8 %v489
    %v491 = vlaneseq
    %v492 = vshrl.u32 %v491, 7
    %v493 = vsub.s32 %v490, %v492
    %v494 = vrot.slane %v487, %v493
    %v496 = vunpack.c.l.s4 1966171168
    %v497 = vunpack.c.0.s8 %v496
    %v498 = vlaneseq
    %v499 = vshrl.u32 %v498, 7
    %v500 = vsub.s32 %v497, %v499
    %v501 = vrot.slane %v494, %v500
    %v503 = vmul.f32 %v439, %v501
    %v505 = vlaneseq
    %v506 = vshrl.u32 %v505, 7
    %v507 = vsub.s32 0, %v506
    %v508 = vrot.slane %v503, %v507
    %v509 = vlaneseq
    %v510 = vshrl.u32 %v509, 7
    %v511 = vsub.s32 1, %v510
    %v512 = vrot.slane %v503, %v511
    %v515 = vmul.f32 %v455, %v508
    %v516 = vmul.f32 %v456, %v512
    %v519 = vcombine.low %v515, %v516
    %v521 = vunpack.c.l.s4 1966171168
    %v522 = vunpack.c.0.s8 %v521
    %v523 = vlaneseq
    %v524 = vshrl.u32 %v523, 7
    %v525 = vsub.s32 %v522, %v524
    %v526 = vrot.slane %v519, %v525
    %v528 = vunpack.c.l.s4 1966171168
    %v529 = vunpack.c.0.s8 %v528
    %v530 = vlaneseq
    %v531 = vshrl.u32 %v530, 7
    %v532 = vsub.s32 %v529, %v531
    %v533 = vrot.slane %v526, %v532
    %v535 = vsub.f32 %v440, %v533
    %v536 = vmul.f32 %v431, %v508
    %v537 = vmul.f32 %v433, %v512
    %v538 = vmul.f32 %v435, %v508
    %v539 = vmul.f32 %v437, %v512
    %v541 = vlaneseq
    %v542 = vshrl.u32 %v541, 7
    %v543 = vsub.s32 0, %v542
    %v544 = vrot.slane %v535, %v543
    %v545 = vlaneseq
    %v546 = vshrl.u32 %v545, 7
    %v547 = vsub.s32 1, %v546
    %v548 = vrot.slane %v535, %v547
    %v551 = vadd.f32 %v536, %v544
    %v552 = vadd.f32 %v537, %v548
    %v553 = vadd.f32 %v538, %v544
    %v554 = vadd.f32 %v539, %v548
    %vm555 = vcmp.gt.f32.partialorder %v551, 0.0
    %vm556 = vcmp.gt.f32.partialorder %v552, 0.0
    %vm557 = vcmp.gt.f32.partialorder %v553, 0.0
    %vm558 = vcmp.gt.f32.partialorder %v554, 0.0
    %v559 = vmul.f32 %v551, 0.2
    %v560 = vmul.f32 %v552, 0.2
    %v561 = vmul.f32 %v553, 0.2
    %v562 = vmul.f32 %v554, 0.2
    %v563 = vsel %vm555, %v551, %v559
    %v564 = vsel %vm556, %v552, %v560
    %v565 = vsel %vm557, %v553, %v561
    %v566 = vsel %vm558, %v554, %v562
    %v567 = vpack.c.bf16 %v565, %v563
    %v568 = vpack.c.bf16 %v566, %v564
    %v569 = vld [vmem:[#allocation12] sm:$0xff]
    %v570 = vld [vmem:[#allocation12 + $0x8] sm:$0xff]
    %v571 = vld [vmem:[#allocation12 + $0x10] sm:$0xff]
    %v572 = vld [vmem:[#allocation12 + $0x18] sm:$0xff]
    %v573 = vld [vmem:[#allocation12 + $0x20] sm:$0xff]
    %v574 = vld [vmem:[#allocation12 + $0x28] sm:$0xff]
    %v575 = vld [vmem:[#allocation12 + $0x30] sm:$0xff]
    %v576 = vld [vmem:[#allocation12 + $0x38] sm:$0xff]
    %v577 = vld [vmem:[#allocation12 + $0x40] sm:$0xff]
    %v578 = vld [vmem:[#allocation12 + $0x48] sm:$0xff]
    %v579 = vld [vmem:[#allocation12 + $0x50] sm:$0xff]
    %v580 = vld [vmem:[#allocation12 + $0x58] sm:$0xff]
    %v581 = vld [vmem:[#allocation12 + $0x60] sm:$0xff]
    %v582 = vld [vmem:[#allocation12 + $0x68] sm:$0xff]
    %v583 = vld [vmem:[#allocation12 + $0x70] sm:$0xff]
    %v584 = vld [vmem:[#allocation12 + $0x78] sm:$0xff]
    %v585 = vld [vmem:[#allocation12 + $0x80] sm:$0xff]
    %v586 = vld [vmem:[#allocation12 + $0x88] sm:$0xff]
    %v587 = vld [vmem:[#allocation12 + $0x90] sm:$0xff]
    %v588 = vld [vmem:[#allocation12 + $0x98] sm:$0xff]
    %v589 = vld [vmem:[#allocation12 + $0xa0] sm:$0xff]
    %v590 = vld [vmem:[#allocation12 + $0xa8] sm:$0xff]
    %v591 = vld [vmem:[#allocation12 + $0xb0] sm:$0xff]
    %v592 = vld [vmem:[#allocation12 + $0xb8] sm:$0xff]
    %v593 = vld [vmem:[#allocation12 + $0xc0] sm:$0xff]
    %v594 = vld [vmem:[#allocation12 + $0xc8] sm:$0xff]
    %v595 = vld [vmem:[#allocation12 + $0xd0] sm:$0xff]
    %v596 = vld [vmem:[#allocation12 + $0xd8] sm:$0xff]
    %v597 = vld [vmem:[#allocation12 + $0xe0] sm:$0xff]
    %v598 = vld [vmem:[#allocation12 + $0xe8] sm:$0xff]
    %v599 = vld [vmem:[#allocation12 + $0xf0] sm:$0xff]
    %v600 = vld [vmem:[#allocation12 + $0xf8] sm:$0xff]
    %v601 = vld [vmem:[#allocation12 + $0x100] sm:$0xff]
    %v602 = vld [vmem:[#allocation12 + $0x108] sm:$0xff]
    %v603 = vld [vmem:[#allocation12 + $0x110] sm:$0xff]
    %v604 = vld [vmem:[#allocation12 + $0x118] sm:$0xff]
    %v605 = vld [vmem:[#allocation12 + $0x120] sm:$0xff]
    %v606 = vld [vmem:[#allocation12 + $0x128] sm:$0xff]
    %v607 = vld [vmem:[#allocation12 + $0x130] sm:$0xff]
    %v608 = vld [vmem:[#allocation12 + $0x138] sm:$0xff]
    %v609 = vld [vmem:[#allocation12 + $0x140] sm:$0xff]
    %v610 = vld [vmem:[#allocation12 + $0x148] sm:$0xff]
    %v611 = vld [vmem:[#allocation12 + $0x150] sm:$0xff]
    %v612 = vld [vmem:[#allocation12 + $0x158] sm:$0xff]
    %v613 = vld [vmem:[#allocation12 + $0x160] sm:$0xff]
    %v614 = vld [vmem:[#allocation12 + $0x168] sm:$0xff]
    %v615 = vld [vmem:[#allocation12 + $0x170] sm:$0xff]
    %v616 = vld [vmem:[#allocation12 + $0x178] sm:$0xff]
    %v617 = vld [vmem:[#allocation12 + $0x180] sm:$0xff]
    %v618 = vld [vmem:[#allocation12 + $0x188] sm:$0xff]
    %v619 = vld [vmem:[#allocation12 + $0x190] sm:$0xff]
    %v620 = vld [vmem:[#allocation12 + $0x198] sm:$0xff]
    %v621 = vld [vmem:[#allocation12 + $0x1a0] sm:$0xff]
    %v622 = vld [vmem:[#allocation12 + $0x1a8] sm:$0xff]
    %v623 = vld [vmem:[#allocation12 + $0x1b0] sm:$0xff]
    %v624 = vld [vmem:[#allocation12 + $0x1b8] sm:$0xff]
    %v625 = vld [vmem:[#allocation12 + $0x1c0] sm:$0xff]
    %v626 = vld [vmem:[#allocation12 + $0x1c8] sm:$0xff]
    %v627 = vld [vmem:[#allocation12 + $0x1d0] sm:$0xff]
    %v628 = vld [vmem:[#allocation12 + $0x1d8] sm:$0xff]
    %v629 = vld [vmem:[#allocation12 + $0x1e0] sm:$0xff]
    %v630 = vld [vmem:[#allocation12 + $0x1e8] sm:$0xff]
    %v631 = vld [vmem:[#allocation12 + $0x1f0] sm:$0xff]
    %v632 = vld [vmem:[#allocation12 + $0x1f8] sm:$0xff]
    %v697 = vunpack.c.l.b16 %v569
    %v698 = vunpack.c.h.b16 %v569
    %v699 = vunpack.c.l.b16 %v570
    %v700 = vunpack.c.h.b16 %v570
    %v701 = vunpack.c.l.b16 %v571
    %v702 = vunpack.c.h.b16 %v571
    %v703 = vunpack.c.l.b16 %v572
    %v704 = vunpack.c.h.b16 %v572
    %v705 = vunpack.c.l.b16 %v573
    %v706 = vunpack.c.h.b16 %v573
    %v707 = vunpack.c.l.b16 %v574
    %v708 = vunpack.c.h.b16 %v574
    %v709 = vunpack.c.l.b16 %v575
    %v710 = vunpack.c.h.b16 %v575
    %v711 = vunpack.c.l.b16 %v576
    %v712 = vunpack.c.h.b16 %v576
    %v713 = vunpack.c.l.b16 %v577
    %v714 = vunpack.c.h.b16 %v577
    %v715 = vunpack.c.l.b16 %v578
    %v716 = vunpack.c.h.b16 %v578
    %v717 = vunpack.c.l.b16 %v579
    %v718 = vunpack.c.h.b16 %v579
    %v719 = vunpack.c.l.b16 %v580
    %v720 = vunpack.c.h.b16 %v580
    %v721 = vunpack.c.l.b16 %v581
    %v722 = vunpack.c.h.b16 %v581
    %v723 = vunpack.c.l.b16 %v582
    %v724 = vunpack.c.h.b16 %v582
    %v725 = vunpack.c.l.b16 %v583
    %v726 = vunpack.c.h.b16 %v583
    %v727 = vunpack.c.l.b16 %v584
    %v728 = vunpack.c.h.b16 %v584
    %v729 = vunpack.c.l.b16 %v585
    %v730 = vunpack.c.h.b16 %v585
    %v731 = vunpack.c.l.b16 %v586
    %v732 = vunpack.c.h.b16 %v586
    %v733 = vunpack.c.l.b16 %v587
    %v734 = vunpack.c.h.b16 %v587
    %v735 = vunpack.c.l.b16 %v588
    %v736 = vunpack.c.h.b16 %v588
    %v737 = vunpack.c.l.b16 %v589
    %v738 = vunpack.c.h.b16 %v589
    %v739 = vunpack.c.l.b16 %v590
    %v740 = vunpack.c.h.b16 %v590
    %v741 = vunpack.c.l.b16 %v591
    %v742 = vunpack.c.h.b16 %v591
    %v743 = vunpack.c.l.b16 %v592
    %v744 = vunpack.c.h.b16 %v592
    %v745 = vunpack.c.l.b16 %v593
    %v746 = vunpack.c.h.b16 %v593
    %v747 = vunpack.c.l.b16 %v594
    %v748 = vunpack.c.h.b16 %v594
    %v749 = vunpack.c.l.b16 %v595
    %v750 = vunpack.c.h.b16 %v595
    %v751 = vunpack.c.l.b16 %v596
    %v752 = vunpack.c.h.b16 %v596
    %v753 = vunpack.c.l.b16 %v597
    %v754 = vunpack.c.h.b16 %v597
    %v755 = vunpack.c.l.b16 %v598
    %v756 = vunpack.c.h.b16 %v598
    %v757 = vunpack.c.l.b16 %v599
    %v758 = vunpack.c.h.b16 %v599
    %v759 = vunpack.c.l.b16 %v600
    %v760 = vunpack.c.h.b16 %v600
    %v761 = vunpack.c.l.b16 %v601
    %v762 = vunpack.c.h.b16 %v601
    %v763 = vunpack.c.l.b16 %v602
    %v764 = vunpack.c.h.b16 %v602
    %v765 = vunpack.c.l.b16 %v603
    %v766 = vunpack.c.h.b16 %v603
    %v767 = vunpack.c.l.b16 %v604
    %v768 = vunpack.c.h.b16 %v604
    %v769 = vunpack.c.l.b16 %v605
    %v770 = vunpack.c.h.b16 %v605
    %v771 = vunpack.c.l.b16 %v606
    %v772 = vunpack.c.h.b16 %v606
    %v773 = vunpack.c.l.b16 %v607
    %v774 = vunpack.c.h.b16 %v607
    %v775 = vunpack.c.l.b16 %v608
    %v776 = vunpack.c.h.b16 %v608
    %v777 = vunpack.c.l.b16 %v609
    %v778 = vunpack.c.h.b16 %v609
    %v779 = vunpack.c.l.b16 %v610
    %v780 = vunpack.c.h.b16 %v610
    %v781 = vunpack.c.l.b16 %v611
    %v782 = vunpack.c.h.b16 %v611
    %v783 = vunpack.c.l.b16 %v612
    %v784 = vunpack.c.h.b16 %v612
    %v785 = vunpack.c.l.b16 %v613
    %v786 = vunpack.c.h.b16 %v613
    %v787 = vunpack.c.l.b16 %v614
    %v788 = vunpack.c.h.b16 %v614
    %v789 = vunpack.c.l.b16 %v615
    %v790 = vunpack.c.h.b16 %v615
    %v791 = vunpack.c.l.b16 %v616
    %v792 = vunpack.c.h.b16 %v616
    %v793 = vunpack.c.l.b16 %v617
    %v794 = vunpack.c.h.b16 %v617
    %v795 = vunpack.c.l.b16 %v618
    %v796 = vunpack.c.h.b16 %v618
    %v797 = vunpack.c.l.b16 %v619
    %v798 = vunpack.c.h.b16 %v619
    %v799 = vunpack.c.l.b16 %v620
    %v800 = vunpack.c.h.b16 %v620
    %v801 = vunpack.c.l.b16 %v621
    %v802 = vunpack.c.h.b16 %v621
    %v803 = vunpack.c.l.b16 %v622
    %v804 = vunpack.c.h.b16 %v622
    %v805 = vunpack.c.l.b16 %v623
    %v806 = vunpack.c.h.b16 %v623
    %v807 = vunpack.c.l.b16 %v624
    %v808 = vunpack.c.h.b16 %v624
    %v809 = vunpack.c.l.b16 %v625
    %v810 = vunpack.c.h.b16 %v625
    %v811 = vunpack.c.l.b16 %v626
    %v812 = vunpack.c.h.b16 %v626
    %v813 = vunpack.c.l.b16 %v627
    %v814 = vunpack.c.h.b16 %v627
    %v815 = vunpack.c.l.b16 %v628
    %v816 = vunpack.c.h.b16 %v628
    %v817 = vunpack.c.l.b16 %v629
    %v818 = vunpack.c.h.b16 %v629
    %v819 = vunpack.c.l.b16 %v630
    %v820 = vunpack.c.h.b16 %v630
    %v821 = vunpack.c.l.b16 %v631
    %v822 = vunpack.c.h.b16 %v631
    %v823 = vunpack.c.l.b16 %v632
    %v824 = vunpack.c.h.b16 %v632
    %v825 = vpack.c.b16 %v701, %v697
    %v826 = vpack.c.b16 %v702, %v698
    %v827 = vpack.c.b16 %v703, %v699
    %v828 = vpack.c.b16 %v704, %v700
    %v829 = vpack.c.b16 %v709, %v705
    %v830 = vpack.c.b16 %v710, %v706
    %v831 = vpack.c.b16 %v711, %v707
    %v832 = vpack.c.b16 %v712, %v708
    %v833 = vpack.c.b16 %v717, %v713
    %v834 = vpack.c.b16 %v718, %v714
    %v835 = vpack.c.b16 %v719, %v715
    %v836 = vpack.c.b16 %v720, %v716
    %v837 = vpack.c.b16 %v725, %v721
    %v838 = vpack.c.b16 %v726, %v722
    %v839 = vpack.c.b16 %v727, %v723
    %v840 = vpack.c.b16 %v728, %v724
    %v841 = vpack.c.b16 %v733, %v729
    %v842 = vpack.c.b16 %v734, %v730
    %v843 = vpack.c.b16 %v735, %v731
    %v844 = vpack.c.b16 %v736, %v732
    %v845 = vpack.c.b16 %v741, %v737
    %v846 = vpack.c.b16 %v742, %v738
    %v847 = vpack.c.b16 %v743, %v739
    %v848 = vpack.c.b16 %v744, %v740
    %v849 = vpack.c.b16 %v749, %v745
    %v850 = vpack.c.b16 %v750, %v746
    %v851 = vpack.c.b16 %v751, %v747
    %v852 = vpack.c.b16 %v752, %v748
    %v853 = vpack.c.b16 %v757, %v753
    %v854 = vpack.c.b16 %v758, %v754
    %v855 = vpack.c.b16 %v759, %v755
    %v856 = vpack.c.b16 %v760, %v756
    %v857 = vpack.c.b16 %v765, %v761
    %v858 = vpack.c.b16 %v766, %v762
    %v859 = vpack.c.b16 %v767, %v763
    %v860 = vpack.c.b16 %v768, %v764
    %v861 = vpack.c.b16 %v773, %v769
    %v862 = vpack.c.b16 %v774, %v770
    %v863 = vpack.c.b16 %v775, %v771
    %v864 = vpack.c.b16 %v776, %v772
    %v865 = vpack.c.b16 %v781, %v777
    %v866 = vpack.c.b16 %v782, %v778
    %v867 = vpack.c.b16 %v783, %v779
    %v868 = vpack.c.b16 %v784, %v780
    %v869 = vpack.c.b16 %v789, %v785
    %v870 = vpack.c.b16 %v790, %v786
    %v871 = vpack.c.b16 %v791, %v787
    %v872 = vpack.c.b16 %v792, %v788
    %v873 = vpack.c.b16 %v797, %v793
    %v874 = vpack.c.b16 %v798, %v794
    %v875 = vpack.c.b16 %v799, %v795
    %v876 = vpack.c.b16 %v800, %v796
    %v877 = vpack.c.b16 %v805, %v801
    %v878 = vpack.c.b16 %v806, %v802
    %v879 = vpack.c.b16 %v807, %v803
    %v880 = vpack.c.b16 %v808, %v804
    %v881 = vpack.c.b16 %v813, %v809
    %v882 = vpack.c.b16 %v814, %v810
    %v883 = vpack.c.b16 %v815, %v811
    %v884 = vpack.c.b16 %v816, %v812
    %v885 = vpack.c.b16 %v821, %v817
    %v886 = vpack.c.b16 %v822, %v818
    %v887 = vpack.c.b16 %v823, %v819
    %v888 = vpack.c.b16 %v824, %v820
    %953 = vmatprep.subr.bf16.mxu0 %v854
    %954 = vmatpush1.bf16.msra.mxu0 %v853
    %955 = vmatprep.subr.bf16.mxu0 %v850
    %956 = vmatpush1.bf16.msra.mxu0 %v849
    %957 = vmatprep.subr.bf16.mxu0 %v846
    %958 = vmatpush1.bf16.msra.mxu0 %v845
    %959 = vmatprep.subr.bf16.mxu0 %v842
    %960 = vmatpush1.bf16.msra.mxu0 %v841
    %961 = vmatprep.subr.bf16.mxu0 %v838
    %962 = vmatpush1.bf16.msra.mxu0 %v837
    %963 = vmatprep.subr.bf16.mxu0 %v834
    %964 = vmatpush1.bf16.msra.mxu0 %v833
    %965 = vmatprep.subr.bf16.mxu0 %v830
    %966 = vmatpush1.bf16.msra.mxu0 %v829
    %967 = vmatprep.subr.bf16.mxu0 %v826
    %968 = vmatpush1.bf16.msra.mxu0 %v825
    %969 = vmatprep.subr.bf16.mxu0 %v886
    %970 = vmatpush2.bf16.msra.mxu0 %v885
    %971 = vmatprep.subr.bf16.mxu0 %v882
    %972 = vmatpush2.bf16.msra.mxu0 %v881
    %973 = vmatprep.subr.bf16.mxu0 %v878
    %974 = vmatpush2.bf16.msra.mxu0 %v877
    %975 = vmatprep.subr.bf16.mxu0 %v874
    %976 = vmatpush2.bf16.msra.mxu0 %v873
    %977 = vmatprep.subr.bf16.mxu0 %v870
    %978 = vmatpush2.bf16.msra.mxu0 %v869
    %979 = vmatprep.subr.bf16.mxu0 %v866
    %980 = vmatpush2.bf16.msra.mxu0 %v865
    %981 = vmatprep.subr.bf16.mxu0 %v862
    %982 = vmatpush2.bf16.msra.mxu0 %v861
    %983 = vmatprep.subr.bf16.mxu0 %v858
    %984 = vmatpush2.bf16.msra.mxu0 %v857
    %985 = vmatprep.mubr.bf16.mxu0 %v568
    %986 = vmatmul.mubr.bf16.gmra.mxu0 %v567
    %v987 = vpop.f32.mrf.mxu0
    %v988 = vadd.f32 0.0, %v987
    %v989 = vpop.f32.mrf.mxu0
    %v990 = vadd.f32 0.0, %v989
    %v991 = vpop.f32.mrf.mxu0
    %v992 = vadd.f32 0.0, %v991
    %v993 = vpop.f32.mrf.mxu0
    %v994 = vadd.f32 0.0, %v993
    %995 = vdwg.mxu0
    %996 = vmatprep.subr.bf16.mxu0 %v856
    %997 = vmatpush1.bf16.msra.mxu0 %v855
    %998 = vmatprep.subr.bf16.mxu0 %v852
    %999 = vmatpush1.bf16.msra.mxu0 %v851
    %1000 = vmatprep.subr.bf16.mxu0 %v848
    %1001 = vmatpush1.bf16.msra.mxu0 %v847
    %1002 = vmatprep.subr.bf16.mxu0 %v844
    %1003 = vmatpush1.bf16.msra.mxu0 %v843
    %1004 = vmatprep.subr.bf16.mxu0 %v840
    %1005 = vmatpush1.bf16.msra.mxu0 %v839
    %1006 = vmatprep.subr.bf16.mxu0 %v836
    %1007 = vmatpush1.bf16.msra.mxu0 %v835
    %1008 = vmatprep.subr.bf16.mxu0 %v832
    %1009 = vmatpush1.bf16.msra.mxu0 %v831
    %1010 = vmatprep.subr.bf16.mxu0 %v828
    %1011 = vmatpush1.bf16.msra.mxu0 %v827
    %1012 = vmatprep.subr.bf16.mxu0 %v888
    %1013 = vmatpush2.bf16.msra.mxu0 %v887
    %1014 = vmatprep.subr.bf16.mxu0 %v884
    %1015 = vmatpush2.bf16.msra.mxu0 %v883
    %1016 = vmatprep.subr.bf16.mxu0 %v880
    %1017 = vmatpush2.bf16.msra.mxu0 %v879
    %1018 = vmatprep.subr.bf16.mxu0 %v876
    %1019 = vmatpush2.bf16.msra.mxu0 %v875
    %1020 = vmatprep.subr.bf16.mxu0 %v872
    %1021 = vmatpush2.bf16.msra.mxu0 %v871
    %1022 = vmatprep.subr.bf16.mxu0 %v868
    %1023 = vmatpush2.bf16.msra.mxu0 %v867
    %1024 = vmatprep.subr.bf16.mxu0 %v864
    %1025 = vmatpush2.bf16.msra.mxu0 %v863
    %1026 = vmatprep.subr.bf16.mxu0 %v860
    %1027 = vmatpush2.bf16.msra.mxu0 %v859
    %1028 = vmatprep.mubr.bf16.mxu0 %v568
    %1029 = vmatmul.mubr.bf16.gmra.mxu0 %v567
    %v1030 = vpop.f32.mrf.mxu0
    %v1031 = vadd.f32 0.0, %v1030
    %v1032 = vpop.f32.mrf.mxu0
    %v1033 = vadd.f32 0.0, %v1032
    %v1034 = vpop.f32.mrf.mxu0
    %v1035 = vadd.f32 0.0, %v1034
    %v1036 = vpop.f32.mrf.mxu0
    %v1037 = vadd.f32 0.0, %v1036
    %1038 = vdwg.mxu0
    %v1039 = vld [vmem:[#allocation13] sm:$0xf]
    %v1040 = vld [vmem:[#allocation15] sm:$0xf]
    %v1041 = vadd.f32 %v988, %v992
    %v1042 = vrot.slane %v1041, 4
    %v1043 = vadd.f32 %v1041, %v1042
    %v1044 = vrot.slane %v1043, 2
    %v1045 = vadd.f32 %v1043, %v1044
    %v1046 = vrot.slane %v1045, 1
    %v1047 = vadd.f32 %v1045, %v1046
    %v1048 = vadd.f32 %v990, %v994
    %v1049 = vrot.slane %v1048, 4
    %v1050 = vadd.f32 %v1048, %v1049
    %v1051 = vrot.slane %v1050, 2
    %v1052 = vadd.f32 %v1050, %v1051
    %v1053 = vrot.slane %v1052, 1
    %v1054 = vadd.f32 %v1052, %v1053
    %v1055 = vadd.f32 %v1031, %v1035
    %v1056 = vrot.slane %v1055, 4
    %v1057 = vadd.f32 %v1055, %v1056
    %v1058 = vrot.slane %v1057, 2
    %v1059 = vadd.f32 %v1057, %v1058
    %v1060 = vrot.slane %v1059, 1
    %v1061 = vadd.f32 %v1059, %v1060
    %v1062 = vadd.f32 %v1033, %v1037
    %v1063 = vrot.slane %v1062, 4
    %v1064 = vadd.f32 %v1062, %v1063
    %v1065 = vrot.slane %v1064, 2
    %v1066 = vadd.f32 %v1064, %v1065
    %v1067 = vrot.slane %v1066, 1
    %v1068 = vadd.f32 %v1066, %v1067
    %v1069 = vmul.f32 %v1047, 0.0625
    %v1070 = vmul.f32 %v1054, 0.0625
    %v1071 = vmul.f32 %v1061, 0.0625
    %v1072 = vmul.f32 %v1068, 0.0625
    %v1073 = vmul.f32 %v988, %v988
    %v1074 = vmul.f32 %v990, %v990
    %v1075 = vmul.f32 %v1031, %v1031
    %v1076 = vmul.f32 %v1033, %v1033
    %v1077 = vmul.f32 %v992, %v992
    %v1078 = vmul.f32 %v994, %v994
    %v1079 = vmul.f32 %v1035, %v1035
    %v1080 = vmul.f32 %v1037, %v1037
    %v1081 = vadd.f32 %v1073, %v1077
    %v1082 = vrot.slane %v1081, 4
    %v1083 = vadd.f32 %v1081, %v1082
    %v1084 = vrot.slane %v1083, 2
    %v1085 = vadd.f32 %v1083, %v1084
    %v1086 = vrot.slane %v1085, 1
    %v1087 = vadd.f32 %v1085, %v1086
    %v1088 = vadd.f32 %v1074, %v1078
    %v1089 = vrot.slane %v1088, 4
    %v1090 = vadd.f32 %v1088, %v1089
    %v1091 = vrot.slane %v1090, 2
    %v1092 = vadd.f32 %v1090, %v1091
    %v1093 = vrot.slane %v1092, 1
    %v1094 = vadd.f32 %v1092, %v1093
    %v1095 = vadd.f32 %v1075, %v1079
    %v1096 = vrot.slane %v1095, 4
    %v1097 = vadd.f32 %v1095, %v1096
    %v1098 = vrot.slane %v1097, 2
    %v1099 = vadd.f32 %v1097, %v1098
    %v1100 = vrot.slane %v1099, 1
    %v1101 = vadd.f32 %v1099, %v1100
    %v1102 = vadd.f32 %v1076, %v1080
    %v1103 = vrot.slane %v1102, 4
    %v1104 = vadd.f32 %v1102, %v1103
    %v1105 = vrot.slane %v1104, 2
    %v1106 = vadd.f32 %v1104, %v1105
    %v1107 = vrot.slane %v1106, 1
    %v1108 = vadd.f32 %v1106, %v1107
    %v1109 = vmul.f32 %v1087, 0.0625
    %v1110 = vmul.f32 %v1094, 0.0625
    %v1111 = vmul.f32 %v1101, 0.0625
    %v1112 = vmul.f32 %v1108, 0.0625
    %v1113 = vmul.f32 %v1069, %v1069
    %v1114 = vmul.f32 %v1070, %v1070
    %v1115 = vmul.f32 %v1071, %v1071
    %v1116 = vmul.f32 %v1072, %v1072
    %v1117 = vsub.f32 %v1109, %v1113
    %v1118 = vsub.f32 %v1110, %v1114
    %v1119 = vsub.f32 %v1111, %v1115
    %v1120 = vsub.f32 %v1112, %v1116
    %v1121 = vadd.f32 %v1117, 0.8
    %v1122 = vadd.f32 %v1118, 0.8
    %v1123 = vadd.f32 %v1119, 0.8
    %v1124 = vadd.f32 %v1120, 0.8
    %v1125 = vrsqrt.pop %v1121
    %v1126 = vrsqrt.pop %v1122
    %v1127 = vrsqrt.pop %v1123
    %v1128 = vrsqrt.pop %v1124
    %v1133 = vcombine.low %v1125, %v1126
    %v1134 = vcombine.low %v1127, %v1128
    %v1136 = vunpack.c.l.s4 1966171168
    %v1137 = vunpack.c.0.s8 %v1136
    %v1138 = vlaneseq
    %v1139 = vshrl.u32 %v1138, 7
    %v1140 = vsub.s32 %v1137, %v1139
    %v1141 = vrot.slane %v1133, %v1140
    %v1143 = vunpack.c.l.s4 1966171168
    %v1144 = vunpack.c.0.s8 %v1143
    %v1145 = vlaneseq
    %v1146 = vshrl.u32 %v1145, 7
    %v1147 = vsub.s32 %v1144, %v1146
    %v1148 = vrot.slane %v1134, %v1147
    %v1149 = vcombine.low %v1141, %v1148
    %v1151 = vunpack.c.l.s4 1966171168
    %v1152 = vunpack.c.0.s8 %v1151
    %v1153 = vlaneseq
    %v1154 = vshrl.u32 %v1153, 7
    %v1155 = vsub.s32 %v1152, %v1154
    %v1156 = vrot.slane %v1149, %v1155
    %v1158 = vmul.f32 %v1039, %v1156
    %v1160 = vlaneseq
    %v1161 = vshrl.u32 %v1160, 7
    %v1162 = vsub.s32 0, %v1161
    %v1163 = vrot.slane %v1158, %v1162
    %v1164 = vlaneseq
    %v1165 = vshrl.u32 %v1164, 7
    %v1166 = vsub.s32 1, %v1165
    %v1167 = vrot.slane %v1158, %v1166
    %v1168 = vlaneseq
    %v1169 = vshrl.u32 %v1168, 7
    %v1170 = vsub.s32 2, %v1169
    %v1171 = vrot.slane %v1158, %v1170
    %v1172 = vlaneseq
    %v1173 = vshrl.u32 %v1172, 7
    %v1174 = vsub.s32 3, %v1173
    %v1175 = vrot.slane %v1158, %v1174
    %v1180 = vmul.f32 %v1069, %v1163
    %v1181 = vmul.f32 %v1070, %v1167
    %v1182 = vmul.f32 %v1071, %v1171
    %v1183 = vmul.f32 %v1072, %v1175
    %v1188 = vcombine.low %v1180, %v1181
    %v1189 = vcombine.low %v1182, %v1183
    %v1191 = vunpack.c.l.s4 1966171168
    %v1192 = vunpack.c.0.s8 %v1191
    %v1193 = vlaneseq
    %v1194 = vshrl.u32 %v1193, 7
    %v1195 = vsub.s32 %v1192, %v1194
    %v1196 = vrot.slane %v1188, %v1195
    %v1198 = vunpack.c.l.s4 1966171168
    %v1199 = vunpack.c.0.s8 %v1198
    %v1200 = vlaneseq
    %v1201 = vshrl.u32 %v1200, 7
    %v1202 = vsub.s32 %v1199, %v1201
    %v1203 = vrot.slane %v1189, %v1202
    %v1204 = vcombine.low %v1196, %v1203
    %v1206 = vunpack.c.l.s4 1966171168
    %v1207 = vunpack.c.0.s8 %v1206
    %v1208 = vlaneseq
    %v1209 = vshrl.u32 %v1208, 7
    %v1210 = vsub.s32 %v1207, %v1209
    %v1211 = vrot.slane %v1204, %v1210
    %v1213 = vsub.f32 %v1040, %v1211
    %v1214 = vmul.f32 %v988, %v1163
    %v1215 = vmul.f32 %v990, %v1167
    %v1216 = vmul.f32 %v1031, %v1171
    %v1217 = vmul.f32 %v1033, %v1175
    %v1218 = vmul.f32 %v992, %v1163
    %v1219 = vmul.f32 %v994, %v1167
    %v1220 = vmul.f32 %v1035, %v1171
    %v1221 = vmul.f32 %v1037, %v1175
    %v1223 = vlaneseq
    %v1224 = vshrl.u32 %v1223, 7
    %v1225 = vsub.s32 0, %v1224
    %v1226 = vrot.slane %v1213, %v1225
    %v1227 = vlaneseq
    %v1228 = vshrl.u32 %v1227, 7
    %v1229 = vsub.s32 1, %v1228
    %v1230 = vrot.slane %v1213, %v1229
    %v1231 = vlaneseq
    %v1232 = vshrl.u32 %v1231, 7
    %v1233 = vsub.s32 2, %v1232
    %v1234 = vrot.slane %v1213, %v1233
    %v1235 = vlaneseq
    %v1236 = vshrl.u32 %v1235, 7
    %v1237 = vsub.s32 3, %v1236
    %v1238 = vrot.slane %v1213, %v1237
    %v1243 = vadd.f32 %v1214, %v1226
    %v1244 = vadd.f32 %v1215, %v1230
    %v1245 = vadd.f32 %v1216, %v1234
    %v1246 = vadd.f32 %v1217, %v1238
    %v1247 = vadd.f32 %v1218, %v1226
    %v1248 = vadd.f32 %v1219, %v1230
    %v1249 = vadd.f32 %v1220, %v1234
    %v1250 = vadd.f32 %v1221, %v1238
    %vm1251 = vcmp.gt.f32.partialorder %v1243, 0.0
    %vm1252 = vcmp.gt.f32.partialorder %v1244, 0.0
    %vm1253 = vcmp.gt.f32.partialorder %v1245, 0.0
    %vm1254 = vcmp.gt.f32.partialorder %v1246, 0.0
    %vm1255 = vcmp.gt.f32.partialorder %v1247, 0.0
    %vm1256 = vcmp.gt.f32.partialorder %v1248, 0.0
    %vm1257 = vcmp.gt.f32.partialorder %v1249, 0.0
    %vm1258 = vcmp.gt.f32.partialorder %v1250, 0.0
    %v1259 = vmul.f32 %v1243, 0.2
    %v1260 = vmul.f32 %v1244, 0.2
    %v1261 = vmul.f32 %v1245, 0.2
    %v1262 = vmul.f32 %v1246, 0.2
    %v1263 = vmul.f32 %v1247, 0.2
    %v1264 = vmul.f32 %v1248, 0.2
    %v1265 = vmul.f32 %v1249, 0.2
    %v1266 = vmul.f32 %v1250, 0.2
    %v1267 = vsel %vm1251, %v1243, %v1259
    %v1268 = vsel %vm1252, %v1244, %v1260
    %v1269 = vsel %vm1253, %v1245, %v1261
    %v1270 = vsel %vm1254, %v1246, %v1262
    %v1271 = vsel %vm1255, %v1247, %v1263
    %v1272 = vsel %vm1256, %v1248, %v1264
    %v1273 = vsel %vm1257, %v1249, %v1265
    %v1274 = vsel %vm1258, %v1250, %v1266
    %v1275 = vpack.c.bf16 %v1271, %v1267
    %v1276 = vpack.c.bf16 %v1272, %v1268
    %v1277 = vpack.c.bf16 %v1273, %v1269
    %v1278 = vpack.c.bf16 %v1274, %v1270
    %v1279 = vld [vmem:[#allocation16] sm:$0xff]
    %v1280 = vld [vmem:[#allocation16 + $0x8] sm:$0xff]
    %v1281 = vld [vmem:[#allocation16 + $0x10] sm:$0xff]
    %v1282 = vld [vmem:[#allocation16 + $0x18] sm:$0xff]
    %v1283 = vld [vmem:[#allocation16 + $0x20] sm:$0xff]
    %v1284 = vld [vmem:[#allocation16 + $0x28] sm:$0xff]
    %v1285 = vld [vmem:[#allocation16 + $0x30] sm:$0xff]
    %v1286 = vld [vmem:[#allocation16 + $0x38] sm:$0xff]
    %v1287 = vld [vmem:[#allocation16 + $0x40] sm:$0xff]
    %v1288 = vld [vmem:[#allocation16 + $0x48] sm:$0xff]
    %v1289 = vld [vmem:[#allocation16 + $0x50] sm:$0xff]
    %v1290 = vld [vmem:[#allocation16 + $0x58] sm:$0xff]
    %v1291 = vld [vmem:[#allocation16 + $0x60] sm:$0xff]
    %v1292 = vld [vmem:[#allocation16 + $0x68] sm:$0xff]
    %v1293 = vld [vmem:[#allocation16 + $0x70] sm:$0xff]
    %v1294 = vld [vmem:[#allocation16 + $0x78] sm:$0xff]
    %v1295 = vld [vmem:[#allocation16 + $0x80] sm:$0xff]
    %v1296 = vld [vmem:[#allocation16 + $0x88] sm:$0xff]
    %v1297 = vld [vmem:[#allocation16 + $0x90] sm:$0xff]
    %v1298 = vld [vmem:[#allocation16 + $0x98] sm:$0xff]
    %v1299 = vld [vmem:[#allocation16 + $0xa0] sm:$0xff]
    %v1300 = vld [vmem:[#allocation16 + $0xa8] sm:$0xff]
    %v1301 = vld [vmem:[#allocation16 + $0xb0] sm:$0xff]
    %v1302 = vld [vmem:[#allocation16 + $0xb8] sm:$0xff]
    %v1303 = vld [vmem:[#allocation16 + $0xc0] sm:$0xff]
    %v1304 = vld [vmem:[#allocation16 + $0xc8] sm:$0xff]
    %v1305 = vld [vmem:[#allocation16 + $0xd0] sm:$0xff]
    %v1306 = vld [vmem:[#allocation16 + $0xd8] sm:$0xff]
    %v1307 = vld [vmem:[#allocation16 + $0xe0] sm:$0xff]
    %v1308 = vld [vmem:[#allocation16 + $0xe8] sm:$0xff]
    %v1309 = vld [vmem:[#allocation16 + $0xf0] sm:$0xff]
    %v1310 = vld [vmem:[#allocation16 + $0xf8] sm:$0xff]
    %v1311 = vld [vmem:[#allocation16 + $0x100] sm:$0xff]
    %v1312 = vld [vmem:[#allocation16 + $0x108] sm:$0xff]
    %v1313 = vld [vmem:[#allocation16 + $0x110] sm:$0xff]
    %v1314 = vld [vmem:[#allocation16 + $0x118] sm:$0xff]
    %v1315 = vld [vmem:[#allocation16 + $0x120] sm:$0xff]
    %v1316 = vld [vmem:[#allocation16 + $0x128] sm:$0xff]
    %v1317 = vld [vmem:[#allocation16 + $0x130] sm:$0xff]
    %v1318 = vld [vmem:[#allocation16 + $0x138] sm:$0xff]
    %v1319 = vld [vmem:[#allocation16 + $0x140] sm:$0xff]
    %v1320 = vld [vmem:[#allocation16 + $0x148] sm:$0xff]
    %v1321 = vld [vmem:[#allocation16 + $0x150] sm:$0xff]
    %v1322 = vld [vmem:[#allocation16 + $0x158] sm:$0xff]
    %v1323 = vld [vmem:[#allocation16 + $0x160] sm:$0xff]
    %v1324 = vld [vmem:[#allocation16 + $0x168] sm:$0xff]
    %v1325 = vld [vmem:[#allocation16 + $0x170] sm:$0xff]
    %v1326 = vld [vmem:[#allocation16 + $0x178] sm:$0xff]
    %v1327 = vld [vmem:[#allocation16 + $0x180] sm:$0xff]
    %v1328 = vld [vmem:[#allocation16 + $0x188] sm:$0xff]
    %v1329 = vld [vmem:[#allocation16 + $0x190] sm:$0xff]
    %v1330 = vld [vmem:[#allocation16 + $0x198] sm:$0xff]
    %v1331 = vld [vmem:[#allocation16 + $0x1a0] sm:$0xff]
    %v1332 = vld [vmem:[#allocation16 + $0x1a8] sm:$0xff]
    %v1333 = vld [vmem:[#allocation16 + $0x1b0] sm:$0xff]
    %v1334 = vld [vmem:[#allocation16 + $0x1b8] sm:$0xff]
    %v1335 = vld [vmem:[#allocation16 + $0x1c0] sm:$0xff]
    %v1336 = vld [vmem:[#allocation16 + $0x1c8] sm:$0xff]
    %v1337 = vld [vmem:[#allocation16 + $0x1d0] sm:$0xff]
    %v1338 = vld [vmem:[#allocation16 + $0x1d8] sm:$0xff]
    %v1339 = vld [vmem:[#allocation16 + $0x1e0] sm:$0xff]
    %v1340 = vld [vmem:[#allocation16 + $0x1e8] sm:$0xff]
    %v1341 = vld [vmem:[#allocation16 + $0x1f0] sm:$0xff]
    %v1342 = vld [vmem:[#allocation16 + $0x1f8] sm:$0xff]
    %v1343 = vld [vmem:[#allocation16 + $0x200] sm:$0xff]
    %v1344 = vld [vmem:[#allocation16 + $0x208] sm:$0xff]
    %v1345 = vld [vmem:[#allocation16 + $0x210] sm:$0xff]
    %v1346 = vld [vmem:[#allocation16 + $0x218] sm:$0xff]
    %v1347 = vld [vmem:[#allocation16 + $0x220] sm:$0xff]
    %v1348 = vld [vmem:[#allocation16 + $0x228] sm:$0xff]
    %v1349 = vld [vmem:[#allocation16 + $0x230] sm:$0xff]
    %v1350 = vld [vmem:[#allocation16 + $0x238] sm:$0xff]
    %v1351 = vld [vmem:[#allocation16 + $0x240] sm:$0xff]
    %v1352 = vld [vmem:[#allocation16 + $0x248] sm:$0xff]
    %v1353 = vld [vmem:[#allocation16 + $0x250] sm:$0xff]
    %v1354 = vld [vmem:[#allocation16 + $0x258] sm:$0xff]
    %v1355 = vld [vmem:[#allocation16 + $0x260] sm:$0xff]
    %v1356 = vld [vmem:[#allocation16 + $0x268] sm:$0xff]
    %v1357 = vld [vmem:[#allocation16 + $0x270] sm:$0xff]
    %v1358 = vld [vmem:[#allocation16 + $0x278] sm:$0xff]
    %v1359 = vld [vmem:[#allocation16 + $0x280] sm:$0xff]
    %v1360 = vld [vmem:[#allocation16 + $0x288] sm:$0xff]
    %v1361 = vld [vmem:[#allocation16 + $0x290] sm:$0xff]
    %v1362 = vld [vmem:[#allocation16 + $0x298] sm:$0xff]
    %v1363 = vld [vmem:[#allocation16 + $0x2a0] sm:$0xff]
    %v1364 = vld [vmem:[#allocation16 + $0x2a8] sm:$0xff]
    %v1365 = vld [vmem:[#allocation16 + $0x2b0] sm:$0xff]
    %v1366 = vld [vmem:[#allocation16 + $0x2b8] sm:$0xff]
    %v1367 = vld [vmem:[#allocation16 + $0x2c0] sm:$0xff]
    %v1368 = vld [vmem:[#allocation16 + $0x2c8] sm:$0xff]
    %v1369 = vld [vmem:[#allocation16 + $0x2d0] sm:$0xff]
    %v1370 = vld [vmem:[#allocation16 + $0x2d8] sm:$0xff]
    %v1371 = vld [vmem:[#allocation16 + $0x2e0] sm:$0xff]
    %v1372 = vld [vmem:[#allocation16 + $0x2e8] sm:$0xff]
    %v1373 = vld [vmem:[#allocation16 + $0x2f0] sm:$0xff]
    %v1374 = vld [vmem:[#allocation16 + $0x2f8] sm:$0xff]
    %v1375 = vld [vmem:[#allocation16 + $0x300] sm:$0xff]
    %v1376 = vld [vmem:[#allocation16 + $0x308] sm:$0xff]
    %v1377 = vld [vmem:[#allocation16 + $0x310] sm:$0xff]
    %v1378 = vld [vmem:[#allocation16 + $0x318] sm:$0xff]
    %v1379 = vld [vmem:[#allocation16 + $0x320] sm:$0xff]
    %v1380 = vld [vmem:[#allocation16 + $0x328] sm:$0xff]
    %v1381 = vld [vmem:[#allocation16 + $0x330] sm:$0xff]
    %v1382 = vld [vmem:[#allocation16 + $0x338] sm:$0xff]
    %v1383 = vld [vmem:[#allocation16 + $0x340] sm:$0xff]
    %v1384 = vld [vmem:[#allocation16 + $0x348] sm:$0xff]
    %v1385 = vld [vmem:[#allocation16 + $0x350] sm:$0xff]
    %v1386 = vld [vmem:[#allocation16 + $0x358] sm:$0xff]
    %v1387 = vld [vmem:[#allocation16 + $0x360] sm:$0xff]
    %v1388 = vld [vmem:[#allocation16 + $0x368] sm:$0xff]
    %v1389 = vld [vmem:[#allocation16 + $0x370] sm:$0xff]
    %v1390 = vld [vmem:[#allocation16 + $0x378] sm:$0xff]
    %v1391 = vld [vmem:[#allocation16 + $0x380] sm:$0xff]
    %v1392 = vld [vmem:[#allocation16 + $0x388] sm:$0xff]
    %v1393 = vld [vmem:[#allocation16 + $0x390] sm:$0xff]
    %v1394 = vld [vmem:[#allocation16 + $0x398] sm:$0xff]
    %v1395 = vld [vmem:[#allocation16 + $0x3a0] sm:$0xff]
    %v1396 = vld [vmem:[#allocation16 + $0x3a8] sm:$0xff]
    %v1397 = vld [vmem:[#allocation16 + $0x3b0] sm:$0xff]
    %v1398 = vld [vmem:[#allocation16 + $0x3b8] sm:$0xff]
    %v1399 = vld [vmem:[#allocation16 + $0x3c0] sm:$0xff]
    %v1400 = vld [vmem:[#allocation16 + $0x3c8] sm:$0xff]
    %v1401 = vld [vmem:[#allocation16 + $0x3d0] sm:$0xff]
    %v1402 = vld [vmem:[#allocation16 + $0x3d8] sm:$0xff]
    %v1403 = vld [vmem:[#allocation16 + $0x3e0] sm:$0xff]
    %v1404 = vld [vmem:[#allocation16 + $0x3e8] sm:$0xff]
    %v1405 = vld [vmem:[#allocation16 + $0x3f0] sm:$0xff]
    %v1406 = vld [vmem:[#allocation16 + $0x3f8] sm:$0xff]
    %v1407 = vld [vmem:[#allocation16 + $0x400] sm:$0xff]
    %v1408 = vld [vmem:[#allocation16 + $0x408] sm:$0xff]
    %v1409 = vld [vmem:[#allocation16 + $0x410] sm:$0xff]
    %v1410 = vld [vmem:[#allocation16 + $0x418] sm:$0xff]
    %v1411 = vld [vmem:[#allocation16 + $0x420] sm:$0xff]
    %v1412 = vld [vmem:[#allocation16 + $0x428] sm:$0xff]
    %v1413 = vld [vmem:[#allocation16 + $0x430] sm:$0xff]
    %v1414 = vld [vmem:[#allocation16 + $0x438] sm:$0xff]
    %v1415 = vld [vmem:[#allocation16 + $0x440] sm:$0xff]
    %v1416 = vld [vmem:[#allocation16 + $0x448] sm:$0xff]
    %v1417 = vld [vmem:[#allocation16 + $0x450] sm:$0xff]
    %v1418 = vld [vmem:[#allocation16 + $0x458] sm:$0xff]
    %v1419 = vld [vmem:[#allocation16 + $0x460] sm:$0xff]
    %v1420 = vld [vmem:[#allocation16 + $0x468] sm:$0xff]
    %v1421 = vld [vmem:[#allocation16 + $0x470] sm:$0xff]
    %v1422 = vld [vmem:[#allocation16 + $0x478] sm:$0xff]
    %v1423 = vld [vmem:[#allocation16 + $0x480] sm:$0xff]
    %v1424 = vld [vmem:[#allocation16 + $0x488] sm:$0xff]
    %v1425 = vld [vmem:[#allocation16 + $0x490] sm:$0xff]
    %v1426 = vld [vmem:[#allocation16 + $0x498] sm:$0xff]
    %v1427 = vld [vmem:[#allocation16 + $0x4a0] sm:$0xff]
    %v1428 = vld [vmem:[#allocation16 + $0x4a8] sm:$0xff]
    %v1429 = vld [vmem:[#allocation16 + $0x4b0] sm:$0xff]
    %v1430 = vld [vmem:[#allocation16 + $0x4b8] sm:$0xff]
    %v1431 = vld [vmem:[#allocation16 + $0x4c0] sm:$0xff]
    %v1432 = vld [vmem:[#allocation16 + $0x4c8] sm:$0xff]
    %v1433 = vld [vmem:[#allocation16 + $0x4d0] sm:$0xff]
    %v1434 = vld [vmem:[#allocation16 + $0x4d8] sm:$0xff]
    %v1435 = vld [vmem:[#allocation16 + $0x4e0] sm:$0xff]
    %v1436 = vld [vmem:[#allocation16 + $0x4e8] sm:$0xff]
    %v1437 = vld [vmem:[#allocation16 + $0x4f0] sm:$0xff]
    %v1438 = vld [vmem:[#allocation16 + $0x4f8] sm:$0xff]
    %v1439 = vld [vmem:[#allocation16 + $0x500] sm:$0xff]
    %v1440 = vld [vmem:[#allocation16 + $0x508] sm:$0xff]
    %v1441 = vld [vmem:[#allocation16 + $0x510] sm:$0xff]
    %v1442 = vld [vmem:[#allocation16 + $0x518] sm:$0xff]
    %v1443 = vld [vmem:[#allocation16 + $0x520] sm:$0xff]
    %v1444 = vld [vmem:[#allocation16 + $0x528] sm:$0xff]
    %v1445 = vld [vmem:[#allocation16 + $0x530] sm:$0xff]
    %v1446 = vld [vmem:[#allocation16 + $0x538] sm:$0xff]
    %v1447 = vld [vmem:[#allocation16 + $0x540] sm:$0xff]
    %v1448 = vld [vmem:[#allocation16 + $0x548] sm:$0xff]
    %v1449 = vld [vmem:[#allocation16 + $0x550] sm:$0xff]
    %v1450 = vld [vmem:[#allocation16 + $0x558] sm:$0xff]
    %v1451 = vld [vmem:[#allocation16 + $0x560] sm:$0xff]
    %v1452 = vld [vmem:[#allocation16 + $0x568] sm:$0xff]
    %v1453 = vld [vmem:[#allocation16 + $0x570] sm:$0xff]
    %v1454 = vld [vmem:[#allocation16 + $0x578] sm:$0xff]
    %v1455 = vld [vmem:[#allocation16 + $0x580] sm:$0xff]
    %v1456 = vld [vmem:[#allocation16 + $0x588] sm:$0xff]
    %v1457 = vld [vmem:[#allocation16 + $0x590] sm:$0xff]
    %v1458 = vld [vmem:[#allocation16 + $0x598] sm:$0xff]
    %v1459 = vld [vmem:[#allocation16 + $0x5a0] sm:$0xff]
    %v1460 = vld [vmem:[#allocation16 + $0x5a8] sm:$0xff]
    %v1461 = vld [vmem:[#allocation16 + $0x5b0] sm:$0xff]
    %v1462 = vld [vmem:[#allocation16 + $0x5b8] sm:$0xff]
    %v1463 = vld [vmem:[#allocation16 + $0x5c0] sm:$0xff]
    %v1464 = vld [vmem:[#allocation16 + $0x5c8] sm:$0xff]
    %v1465 = vld [vmem:[#allocation16 + $0x5d0] sm:$0xff]
    %v1466 = vld [vmem:[#allocation16 + $0x5d8] sm:$0xff]
    %v1467 = vld [vmem:[#allocation16 + $0x5e0] sm:$0xff]
    %v1468 = vld [vmem:[#allocation16 + $0x5e8] sm:$0xff]
    %v1469 = vld [vmem:[#allocation16 + $0x5f0] sm:$0xff]
    %v1470 = vld [vmem:[#allocation16 + $0x5f8] sm:$0xff]
    %v1471 = vld [vmem:[#allocation16 + $0x600] sm:$0xff]
    %v1472 = vld [vmem:[#allocation16 + $0x608] sm:$0xff]
    %v1473 = vld [vmem:[#allocation16 + $0x610] sm:$0xff]
    %v1474 = vld [vmem:[#allocation16 + $0x618] sm:$0xff]
    %v1475 = vld [vmem:[#allocation16 + $0x620] sm:$0xff]
    %v1476 = vld [vmem:[#allocation16 + $0x628] sm:$0xff]
    %v1477 = vld [vmem:[#allocation16 + $0x630] sm:$0xff]
    %v1478 = vld [vmem:[#allocation16 + $0x638] sm:$0xff]
    %v1479 = vld [vmem:[#allocation16 + $0x640] sm:$0xff]
    %v1480 = vld [vmem:[#allocation16 + $0x648] sm:$0xff]
    %v1481 = vld [vmem:[#allocation16 + $0x650] sm:$0xff]
    %v1482 = vld [vmem:[#allocation16 + $0x658] sm:$0xff]
    %v1483 = vld [vmem:[#allocation16 + $0x660] sm:$0xff]
    %v1484 = vld [vmem:[#allocation16 + $0x668] sm:$0xff]
    %v1485 = vld [vmem:[#allocation16 + $0x670] sm:$0xff]
    %v1486 = vld [vmem:[#allocation16 + $0x678] sm:$0xff]
    %v1487 = vld [vmem:[#allocation16 + $0x680] sm:$0xff]
    %v1488 = vld [vmem:[#allocation16 + $0x688] sm:$0xff]
    %v1489 = vld [vmem:[#allocation16 + $0x690] sm:$0xff]
    %v1490 = vld [vmem:[#allocation16 + $0x698] sm:$0xff]
    %v1491 = vld [vmem:[#allocation16 + $0x6a0] sm:$0xff]
    %v1492 = vld [vmem:[#allocation16 + $0x6a8] sm:$0xff]
    %v1493 = vld [vmem:[#allocation16 + $0x6b0] sm:$0xff]
    %v1494 = vld [vmem:[#allocation16 + $0x6b8] sm:$0xff]
    %v1495 = vld [vmem:[#allocation16 + $0x6c0] sm:$0xff]
    %v1496 = vld [vmem:[#allocation16 + $0x6c8] sm:$0xff]
    %v1497 = vld [vmem:[#allocation16 + $0x6d0] sm:$0xff]
    %v1498 = vld [vmem:[#allocation16 + $0x6d8] sm:$0xff]
    %v1499 = vld [vmem:[#allocation16 + $0x6e0] sm:$0xff]
    %v1500 = vld [vmem:[#allocation16 + $0x6e8] sm:$0xff]
    %v1501 = vld [vmem:[#allocation16 + $0x6f0] sm:$0xff]
    %v1502 = vld [vmem:[#allocation16 + $0x6f8] sm:$0xff]
    %v1503 = vld [vmem:[#allocation16 + $0x700] sm:$0xff]
    %v1504 = vld [vmem:[#allocation16 + $0x708] sm:$0xff]
    %v1505 = vld [vmem:[#allocation16 + $0x710] sm:$0xff]
    %v1506 = vld [vmem:[#allocation16 + $0x718] sm:$0xff]
    %v1507 = vld [vmem:[#allocation16 + $0x720] sm:$0xff]
    %v1508 = vld [vmem:[#allocation16 + $0x728] sm:$0xff]
    %v1509 = vld [vmem:[#allocation16 + $0x730] sm:$0xff]
    %v1510 = vld [vmem:[#allocation16 + $0x738] sm:$0xff]
    %v1511 = vld [vmem:[#allocation16 + $0x740] sm:$0xff]
    %v1512 = vld [vmem:[#allocation16 + $0x748] sm:$0xff]
    %v1513 = vld [vmem:[#allocation16 + $0x750] sm:$0xff]
    %v1514 = vld [vmem:[#allocation16 + $0x758] sm:$0xff]
    %v1515 = vld [vmem:[#allocation16 + $0x760] sm:$0xff]
    %v1516 = vld [vmem:[#allocation16 + $0x768] sm:$0xff]
    %v1517 = vld [vmem:[#allocation16 + $0x770] sm:$0xff]
    %v1518 = vld [vmem:[#allocation16 + $0x778] sm:$0xff]
    %v1519 = vld [vmem:[#allocation16 + $0x780] sm:$0xff]
    %v1520 = vld [vmem:[#allocation16 + $0x788] sm:$0xff]
    %v1521 = vld [vmem:[#allocation16 + $0x790] sm:$0xff]
    %v1522 = vld [vmem:[#allocation16 + $0x798] sm:$0xff]
    %v1523 = vld [vmem:[#allocation16 + $0x7a0] sm:$0xff]
    %v1524 = vld [vmem:[#allocation16 + $0x7a8] sm:$0xff]
    %v1525 = vld [vmem:[#allocation16 + $0x7b0] sm:$0xff]
    %v1526 = vld [vmem:[#allocation16 + $0x7b8] sm:$0xff]
    %v1527 = vld [vmem:[#allocation16 + $0x7c0] sm:$0xff]
    %v1528 = vld [vmem:[#allocation16 + $0x7c8] sm:$0xff]
    %v1529 = vld [vmem:[#allocation16 + $0x7d0] sm:$0xff]
    %v1530 = vld [vmem:[#allocation16 + $0x7d8] sm:$0xff]
    %v1531 = vld [vmem:[#allocation16 + $0x7e0] sm:$0xff]
    %v1532 = vld [vmem:[#allocation16 + $0x7e8] sm:$0xff]
    %v1533 = vld [vmem:[#allocation16 + $0x7f0] sm:$0xff]
    %v1534 = vld [vmem:[#allocation16 + $0x7f8] sm:$0xff]
    %v1791 = vunpack.c.l.b16 %v1279
    %v1792 = vunpack.c.h.b16 %v1279
    %v1793 = vunpack.c.l.b16 %v1280
    %v1794 = vunpack.c.h.b16 %v1280
    %v1795 = vunpack.c.l.b16 %v1281
    %v1796 = vunpack.c.h.b16 %v1281
    %v1797 = vunpack.c.l.b16 %v1282
    %v1798 = vunpack.c.h.b16 %v1282
    %v1799 = vunpack.c.l.b16 %v1283
    %v1800 = vunpack.c.h.b16 %v1283
    %v1801 = vunpack.c.l.b16 %v1284
    %v1802 = vunpack.c.h.b16 %v1284
    %v1803 = vunpack.c.l.b16 %v1285
    %v1804 = vunpack.c.h.b16 %v1285
    %v1805 = vunpack.c.l.b16 %v1286
    %v1806 = vunpack.c.h.b16 %v1286
    %v1807 = vunpack.c.l.b16 %v1287
    %v1808 = vunpack.c.h.b16 %v1287
    %v1809 = vunpack.c.l.b16 %v1288
    %v1810 = vunpack.c.h.b16 %v1288
    %v1811 = vunpack.c.l.b16 %v1289
    %v1812 = vunpack.c.h.b16 %v1289
    %v1813 = vunpack.c.l.b16 %v1290
    %v1814 = vunpack.c.h.b16 %v1290
    %v1815 = vunpack.c.l.b16 %v1291
    %v1816 = vunpack.c.h.b16 %v1291
    %v1817 = vunpack.c.l.b16 %v1292
    %v1818 = vunpack.c.h.b16 %v1292
    %v1819 = vunpack.c.l.b16 %v1293
    %v1820 = vunpack.c.h.b16 %v1293
    %v1821 = vunpack.c.l.b16 %v1294
    %v1822 = vunpack.c.h.b16 %v1294
    %v1823 = vunpack.c.l.b16 %v1295
    %v1824 = vunpack.c.h.b16 %v1295
    %v1825 = vunpack.c.l.b16 %v1296
    %v1826 = vunpack.c.h.b16 %v1296
    %v1827 = vunpack.c.l.b16 %v1297
    %v1828 = vunpack.c.h.b16 %v1297
    %v1829 = vunpack.c.l.b16 %v1298
    %v1830 = vunpack.c.h.b16 %v1298
    %v1831 = vunpack.c.l.b16 %v1299
    %v1832 = vunpack.c.h.b16 %v1299
    %v1833 = vunpack.c.l.b16 %v1300
    %v1834 = vunpack.c.h.b16 %v1300
    %v1835 = vunpack.c.l.b16 %v1301
    %v1836 = vunpack.c.h.b16 %v1301
    %v1837 = vunpack.c.l.b16 %v1302
    %v1838 = vunpack.c.h.b16 %v1302
    %v1839 = vunpack.c.l.b16 %v1303
    %v1840 = vunpack.c.h.b16 %v1303
    %v1841 = vunpack.c.l.b16 %v1304
    %v1842 = vunpack.c.h.b16 %v1304
    %v1843 = vunpack.c.l.b16 %v1305
    %v1844 = vunpack.c.h.b16 %v1305
    %v1845 = vunpack.c.l.b16 %v1306
    %v1846 = vunpack.c.h.b16 %v1306
    %v1847 = vunpack.c.l.b16 %v1307
    %v1848 = vunpack.c.h.b16 %v1307
    %v1849 = vunpack.c.l.b16 %v1308
    %v1850 = vunpack.c.h.b16 %v1308
    %v1851 = vunpack.c.l.b16 %v1309
    %v1852 = vunpack.c.h.b16 %v1309
    %v1853 = vunpack.c.l.b16 %v1310
    %v1854 = vunpack.c.h.b16 %v1310
    %v1855 = vunpack.c.l.b16 %v1311
    %v1856 = vunpack.c.h.b16 %v1311
    %v1857 = vunpack.c.l.b16 %v1312
    %v1858 = vunpack.c.h.b16 %v1312
    %v1859 = vunpack.c.l.b16 %v1313
    %v1860 = vunpack.c.h.b16 %v1313
    %v1861 = vunpack.c.l.b16 %v1314
    %v1862 = vunpack.c.h.b16 %v1314
    %v1863 = vunpack.c.l.b16 %v1315
    %v1864 = vunpack.c.h.b16 %v1315
    %v1865 = vunpack.c.l.b16 %v1316
    %v1866 = vunpack.c.h.b16 %v1316
    %v1867 = vunpack.c.l.b16 %v1317
    %v1868 = vunpack.c.h.b16 %v1317
    %v1869 = vunpack.c.l.b16 %v1318
    %v1870 = vunpack.c.h.b16 %v1318
    %v1871 = vunpack.c.l.b16 %v1319
    %v1872 = vunpack.c.h.b16 %v1319
    %v1873 = vunpack.c.l.b16 %v1320
    %v1874 = vunpack.c.h.b16 %v1320
    %v1875 = vunpack.c.l.b16 %v1321
    %v1876 = vunpack.c.h.b16 %v1321
    %v1877 = vunpack.c.l.b16 %v1322
    %v1878 = vunpack.c.h.b16 %v1322
    %v1879 = vunpack.c.l.b16 %v1323
    %v1880 = vunpack.c.h.b16 %v1323
    %v1881 = vunpack.c.l.b16 %v1324
    %v1882 = vunpack.c.h.b16 %v1324
    %v1883 = vunpack.c.l.b16 %v1325
    %v1884 = vunpack.c.h.b16 %v1325
    %v1885 = vunpack.c.l.b16 %v1326
    %v1886 = vunpack.c.h.b16 %v1326
    %v1887 = vunpack.c.l.b16 %v1327
    %v1888 = vunpack.c.h.b16 %v1327
    %v1889 = vunpack.c.l.b16 %v1328
    %v1890 = vunpack.c.h.b16 %v1328
    %v1891 = vunpack.c.l.b16 %v1329
    %v1892 = vunpack.c.h.b16 %v1329
    %v1893 = vunpack.c.l.b16 %v1330
    %v1894 = vunpack.c.h.b16 %v1330
    %v1895 = vunpack.c.l.b16 %v1331
    %v1896 = vunpack.c.h.b16 %v1331
    %v1897 = vunpack.c.l.b16 %v1332
    %v1898 = vunpack.c.h.b16 %v1332
    %v1899 = vunpack.c.l.b16 %v1333
    %v1900 = vunpack.c.h.b16 %v1333
    %v1901 = vunpack.c.l.b16 %v1334
    %v1902 = vunpack.c.h.b16 %v1334
    %v1903 = vunpack.c.l.b16 %v1335
    %v1904 = vunpack.c.h.b16 %v1335
    %v1905 = vunpack.c.l.b16 %v1336
    %v1906 = vunpack.c.h.b16 %v1336
    %v1907 = vunpack.c.l.b16 %v1337
    %v1908 = vunpack.c.h.b16 %v1337
    %v1909 = vunpack.c.l.b16 %v1338
    %v1910 = vunpack.c.h.b16 %v1338
    %v1911 = vunpack.c.l.b16 %v1339
    %v1912 = vunpack.c.h.b16 %v1339
    %v1913 = vunpack.c.l.b16 %v1340
    %v1914 = vunpack.c.h.b16 %v1340
    %v1915 = vunpack.c.l.b16 %v1341
    %v1916 = vunpack.c.h.b16 %v1341
    %v1917 = vunpack.c.l.b16 %v1342
    %v1918 = vunpack.c.h.b16 %v1342
    %v1919 = vunpack.c.l.b16 %v1343
    %v1920 = vunpack.c.h.b16 %v1343
    %v1921 = vunpack.c.l.b16 %v1344
    %v1922 = vunpack.c.h.b16 %v1344
    %v1923 = vunpack.c.l.b16 %v1345
    %v1924 = vunpack.c.h.b16 %v1345
    %v1925 = vunpack.c.l.b16 %v1346
    %v1926 = vunpack.c.h.b16 %v1346
    %v1927 = vunpack.c.l.b16 %v1347
    %v1928 = vunpack.c.h.b16 %v1347
    %v1929 = vunpack.c.l.b16 %v1348
    %v1930 = vunpack.c.h.b16 %v1348
    %v1931 = vunpack.c.l.b16 %v1349
    %v1932 = vunpack.c.h.b16 %v1349
    %v1933 = vunpack.c.l.b16 %v1350
    %v1934 = vunpack.c.h.b16 %v1350
    %v1935 = vunpack.c.l.b16 %v1351
    %v1936 = vunpack.c.h.b16 %v1351
    %v1937 = vunpack.c.l.b16 %v1352
    %v1938 = vunpack.c.h.b16 %v1352
    %v1939 = vunpack.c.l.b16 %v1353
    %v1940 = vunpack.c.h.b16 %v1353
    %v1941 = vunpack.c.l.b16 %v1354
    %v1942 = vunpack.c.h.b16 %v1354
    %v1943 = vunpack.c.l.b16 %v1355
    %v1944 = vunpack.c.h.b16 %v1355
    %v1945 = vunpack.c.l.b16 %v1356
    %v1946 = vunpack.c.h.b16 %v1356
    %v1947 = vunpack.c.l.b16 %v1357
    %v1948 = vunpack.c.h.b16 %v1357
    %v1949 = vunpack.c.l.b16 %v1358
    %v1950 = vunpack.c.h.b16 %v1358
    %v1951 = vunpack.c.l.b16 %v1359
    %v1952 = vunpack.c.h.b16 %v1359
    %v1953 = vunpack.c.l.b16 %v1360
    %v1954 = vunpack.c.h.b16 %v1360
    %v1955 = vunpack.c.l.b16 %v1361
    %v1956 = vunpack.c.h.b16 %v1361
    %v1957 = vunpack.c.l.b16 %v1362
    %v1958 = vunpack.c.h.b16 %v1362
    %v1959 = vunpack.c.l.b16 %v1363
    %v1960 = vunpack.c.h.b16 %v1363
    %v1961 = vunpack.c.l.b16 %v1364
    %v1962 = vunpack.c.h.b16 %v1364
    %v1963 = vunpack.c.l.b16 %v1365
    %v1964 = vunpack.c.h.b16 %v1365
    %v1965 = vunpack.c.l.b16 %v1366
    %v1966 = vunpack.c.h.b16 %v1366
    %v1967 = vunpack.c.l.b16 %v1367
    %v1968 = vunpack.c.h.b16 %v1367
    %v1969 = vunpack.c.l.b16 %v1368
    %v1970 = vunpack.c.h.b16 %v1368
    %v1971 = vunpack.c.l.b16 %v1369
    %v1972 = vunpack.c.h.b16 %v1369
    %v1973 = vunpack.c.l.b16 %v1370
    %v1974 = vunpack.c.h.b16 %v1370
    %v1975 = vunpack.c.l.b16 %v1371
    %v1976 = vunpack.c.h.b16 %v1371
    %v1977 = vunpack.c.l.b16 %v1372
    %v1978 = vunpack.c.h.b16 %v1372
    %v1979 = vunpack.c.l.b16 %v1373
    %v1980 = vunpack.c.h.b16 %v1373
    %v1981 = vunpack.c.l.b16 %v1374
    %v1982 = vunpack.c.h.b16 %v1374
    %v1983 = vunpack.c.l.b16 %v1375
    %v1984 = vunpack.c.h.b16 %v1375
    %v1985 = vunpack.c.l.b16 %v1376
    %v1986 = vunpack.c.h.b16 %v1376
    %v1987 = vunpack.c.l.b16 %v1377
    %v1988 = vunpack.c.h.b16 %v1377
    %v1989 = vunpack.c.l.b16 %v1378
    %v1990 = vunpack.c.h.b16 %v1378
    %v1991 = vunpack.c.l.b16 %v1379
    %v1992 = vunpack.c.h.b16 %v1379
    %v1993 = vunpack.c.l.b16 %v1380
    %v1994 = vunpack.c.h.b16 %v1380
    %v1995 = vunpack.c.l.b16 %v1381
    %v1996 = vunpack.c.h.b16 %v1381
    %v1997 = vunpack.c.l.b16 %v1382
    %v1998 = vunpack.c.h.b16 %v1382
    %v1999 = vunpack.c.l.b16 %v1383
    %v2000 = vunpack.c.h.b16 %v1383
    %v2001 = vunpack.c.l.b16 %v1384
    %v2002 = vunpack.c.h.b16 %v1384
    %v2003 = vunpack.c.l.b16 %v1385
    %v2004 = vunpack.c.h.b16 %v1385
    %v2005 = vunpack.c.l.b16 %v1386
    %v2006 = vunpack.c.h.b16 %v1386
    %v2007 = vunpack.c.l.b16 %v1387
    %v2008 = vunpack.c.h.b16 %v1387
    %v2009 = vunpack.c.l.b16 %v1388
    %v2010 = vunpack.c.h.b16 %v1388
    %v2011 = vunpack.c.l.b16 %v1389
    %v2012 = vunpack.c.h.b16 %v1389
    %v2013 = vunpack.c.l.b16 %v1390
    %v2014 = vunpack.c.h.b16 %v1390
    %v2015 = vunpack.c.l.b16 %v1391
    %v2016 = vunpack.c.h.b16 %v1391
    %v2017 = vunpack.c.l.b16 %v1392
    %v2018 = vunpack.c.h.b16 %v1392
    %v2019 = vunpack.c.l.b16 %v1393
    %v2020 = vunpack.c.h.b16 %v1393
    %v2021 = vunpack.c.l.b16 %v1394
    %v2022 = vunpack.c.h.b16 %v1394
    %v2023 = vunpack.c.l.b16 %v1395
    %v2024 = vunpack.c.h.b16 %v1395
    %v2025 = vunpack.c.l.b16 %v1396
    %v2026 = vunpack.c.h.b16 %v1396
    %v2027 = vunpack.c.l.b16 %v1397
    %v2028 = vunpack.c.h.b16 %v1397
    %v2029 = vunpack.c.l.b16 %v1398
    %v2030 = vunpack.c.h.b16 %v1398
    %v2031 = vunpack.c.l.b16 %v1399
    %v2032 = vunpack.c.h.b16 %v1399
    %v2033 = vunpack.c.l.b16 %v1400
    %v2034 = vunpack.c.h.b16 %v1400
    %v2035 = vunpack.c.l.b16 %v1401
    %v2036 = vunpack.c.h.b16 %v1401
    %v2037 = vunpack.c.l.b16 %v1402
    %v2038 = vunpack.c.h.b16 %v1402
    %v2039 = vunpack.c.l.b16 %v1403
    %v2040 = vunpack.c.h.b16 %v1403
    %v2041 = vunpack.c.l.b16 %v1404
    %v2042 = vunpack.c.h.b16 %v1404
    %v2043 = vunpack.c.l.b16 %v1405
    %v2044 = vunpack.c.h.b16 %v1405
    %v2045 = vunpack.c.l.b16 %v1406
    %v2046 = vunpack.c.h.b16 %v1406
    %v2047 = vunpack.c.l.b16 %v1407
    %v2048 = vunpack.c.h.b16 %v1407
    %v2049 = vunpack.c.l.b16 %v1408
    %v2050 = vunpack.c.h.b16 %v1408
    %v2051 = vunpack.c.l.b16 %v1409
    %v2052 = vunpack.c.h.b16 %v1409
    %v2053 = vunpack.c.l.b16 %v1410
    %v2054 = vunpack.c.h.b16 %v1410
    %v2055 = vunpack.c.l.b16 %v1411
    %v2056 = vunpack.c.h.b16 %v1411
    %v2057 = vunpack.c.l.b16 %v1412
    %v2058 = vunpack.c.h.b16 %v1412
    %v2059 = vunpack.c.l.b16 %v1413
    %v2060 = vunpack.c.h.b16 %v1413
    %v2061 = vunpack.c.l.b16 %v1414
    %v2062 = vunpack.c.h.b16 %v1414
    %v2063 = vunpack.c.l.b16 %v1415
    %v2064 = vunpack.c.h.b16 %v1415
    %v2065 = vunpack.c.l.b16 %v1416
    %v2066 = vunpack.c.h.b16 %v1416
    %v2067 = vunpack.c.l.b16 %v1417
    %v2068 = vunpack.c.h.b16 %v1417
    %v2069 = vunpack.c.l.b16 %v1418
    %v2070 = vunpack.c.h.b16 %v1418
    %v2071 = vunpack.c.l.b16 %v1419
    %v2072 = vunpack.c.h.b16 %v1419
    %v2073 = vunpack.c.l.b16 %v1420
    %v2074 = vunpack.c.h.b16 %v1420
    %v2075 = vunpack.c.l.b16 %v1421
    %v2076 = vunpack.c.h.b16 %v1421
    %v2077 = vunpack.c.l.b16 %v1422
    %v2078 = vunpack.c.h.b16 %v1422
    %v2079 = vunpack.c.l.b16 %v1423
    %v2080 = vunpack.c.h.b16 %v1423
    %v2081 = vunpack.c.l.b16 %v1424
    %v2082 = vunpack.c.h.b16 %v1424
    %v2083 = vunpack.c.l.b16 %v1425
    %v2084 = vunpack.c.h.b16 %v1425
    %v2085 = vunpack.c.l.b16 %v1426
    %v2086 = vunpack.c.h.b16 %v1426
    %v2087 = vunpack.c.l.b16 %v1427
    %v2088 = vunpack.c.h.b16 %v1427
    %v2089 = vunpack.c.l.b16 %v1428
    %v2090 = vunpack.c.h.b16 %v1428
    %v2091 = vunpack.c.l.b16 %v1429
    %v2092 = vunpack.c.h.b16 %v1429
    %v2093 = vunpack.c.l.b16 %v1430
    %v2094 = vunpack.c.h.b16 %v1430
    %v2095 = vunpack.c.l.b16 %v1431
    %v2096 = vunpack.c.h.b16 %v1431
    %v2097 = vunpack.c.l.b16 %v1432
    %v2098 = vunpack.c.h.b16 %v1432
    %v2099 = vunpack.c.l.b16 %v1433
    %v2100 = vunpack.c.h.b16 %v1433
    %v2101 = vunpack.c.l.b16 %v1434
    %v2102 = vunpack.c.h.b16 %v1434
    %v2103 = vunpack.c.l.b16 %v1435
    %v2104 = vunpack.c.h.b16 %v1435
    %v2105 = vunpack.c.l.b16 %v1436
    %v2106 = vunpack.c.h.b16 %v1436
    %v2107 = vunpack.c.l.b16 %v1437
    %v2108 = vunpack.c.h.b16 %v1437
    %v2109 = vunpack.c.l.b16 %v1438
    %v2110 = vunpack.c.h.b16 %v1438
    %v2111 = vunpack.c.l.b16 %v1439
    %v2112 = vunpack.c.h.b16 %v1439
    %v2113 = vunpack.c.l.b16 %v1440
    %v2114 = vunpack.c.h.b16 %v1440
    %v2115 = vunpack.c.l.b16 %v1441
    %v2116 = vunpack.c.h.b16 %v1441
    %v2117 = vunpack.c.l.b16 %v1442
    %v2118 = vunpack.c.h.b16 %v1442
    %v2119 = vunpack.c.l.b16 %v1443
    %v2120 = vunpack.c.h.b16 %v1443
    %v2121 = vunpack.c.l.b16 %v1444
    %v2122 = vunpack.c.h.b16 %v1444
    %v2123 = vunpack.c.l.b16 %v1445
    %v2124 = vunpack.c.h.b16 %v1445
    %v2125 = vunpack.c.l.b16 %v1446
    %v2126 = vunpack.c.h.b16 %v1446
    %v2127 = vunpack.c.l.b16 %v1447
    %v2128 = vunpack.c.h.b16 %v1447
    %v2129 = vunpack.c.l.b16 %v1448
    %v2130 = vunpack.c.h.b16 %v1448
    %v2131 = vunpack.c.l.b16 %v1449
    %v2132 = vunpack.c.h.b16 %v1449
    %v2133 = vunpack.c.l.b16 %v1450
    %v2134 = vunpack.c.h.b16 %v1450
    %v2135 = vunpack.c.l.b16 %v1451
    %v2136 = vunpack.c.h.b16 %v1451
    %v2137 = vunpack.c.l.b16 %v1452
    %v2138 = vunpack.c.h.b16 %v1452
    %v2139 = vunpack.c.l.b16 %v1453
    %v2140 = vunpack.c.h.b16 %v1453
    %v2141 = vunpack.c.l.b16 %v1454
    %v2142 = vunpack.c.h.b16 %v1454
    %v2143 = vunpack.c.l.b16 %v1455
    %v2144 = vunpack.c.h.b16 %v1455
    %v2145 = vunpack.c.l.b16 %v1456
    %v2146 = vunpack.c.h.b16 %v1456
    %v2147 = vunpack.c.l.b16 %v1457
    %v2148 = vunpack.c.h.b16 %v1457
    %v2149 = vunpack.c.l.b16 %v1458
    %v2150 = vunpack.c.h.b16 %v1458
    %v2151 = vunpack.c.l.b16 %v1459
    %v2152 = vunpack.c.h.b16 %v1459
    %v2153 = vunpack.c.l.b16 %v1460
    %v2154 = vunpack.c.h.b16 %v1460
    %v2155 = vunpack.c.l.b16 %v1461
    %v2156 = vunpack.c.h.b16 %v1461
    %v2157 = vunpack.c.l.b16 %v1462
    %v2158 = vunpack.c.h.b16 %v1462
    %v2159 = vunpack.c.l.b16 %v1463
    %v2160 = vunpack.c.h.b16 %v1463
    %v2161 = vunpack.c.l.b16 %v1464
    %v2162 = vunpack.c.h.b16 %v1464
    %v2163 = vunpack.c.l.b16 %v1465
    %v2164 = vunpack.c.h.b16 %v1465
    %v2165 = vunpack.c.l.b16 %v1466
    %v2166 = vunpack.c.h.b16 %v1466
    %v2167 = vunpack.c.l.b16 %v1467
    %v2168 = vunpack.c.h.b16 %v1467
    %v2169 = vunpack.c.l.b16 %v1468
    %v2170 = vunpack.c.h.b16 %v1468
    %v2171 = vunpack.c.l.b16 %v1469
    %v2172 = vunpack.c.h.b16 %v1469
    %v2173 = vunpack.c.l.b16 %v1470
    %v2174 = vunpack.c.h.b16 %v1470
    %v2175 = vunpack.c.l.b16 %v1471
    %v2176 = vunpack.c.h.b16 %v1471
    %v2177 = vunpack.c.l.b16 %v1472
    %v2178 = vunpack.c.h.b16 %v1472
    %v2179 = vunpack.c.l.b16 %v1473
    %v2180 = vunpack.c.h.b16 %v1473
    %v2181 = vunpack.c.l.b16 %v1474
    %v2182 = vunpack.c.h.b16 %v1474
    %v2183 = vunpack.c.l.b16 %v1475
    %v2184 = vunpack.c.h.b16 %v1475
    %v2185 = vunpack.c.l.b16 %v1476
    %v2186 = vunpack.c.h.b16 %v1476
    %v2187 = vunpack.c.l.b16 %v1477
    %v2188 = vunpack.c.h.b16 %v1477
    %v2189 = vunpack.c.l.b16 %v1478
    %v2190 = vunpack.c.h.b16 %v1478
    %v2191 = vunpack.c.l.b16 %v1479
    %v2192 = vunpack.c.h.b16 %v1479
    %v2193 = vunpack.c.l.b16 %v1480
    %v2194 = vunpack.c.h.b16 %v1480
    %v2195 = vunpack.c.l.b16 %v1481
    %v2196 = vunpack.c.h.b16 %v1481
    %v2197 = vunpack.c.l.b16 %v1482
    %v2198 = vunpack.c.h.b16 %v1482
    %v2199 = vunpack.c.l.b16 %v1483
    %v2200 = vunpack.c.h.b16 %v1483
    %v2201 = vunpack.c.l.b16 %v1484
    %v2202 = vunpack.c.h.b16 %v1484
    %v2203 = vunpack.c.l.b16 %v1485
    %v2204 = vunpack.c.h.b16 %v1485
    %v2205 = vunpack.c.l.b16 %v1486
    %v2206 = vunpack.c.h.b16 %v1486
    %v2207 = vunpack.c.l.b16 %v1487
    %v2208 = vunpack.c.h.b16 %v1487
    %v2209 = vunpack.c.l.b16 %v1488
    %v2210 = vunpack.c.h.b16 %v1488
    %v2211 = vunpack.c.l.b16 %v1489
    %v2212 = vunpack.c.h.b16 %v1489
    %v2213 = vunpack.c.l.b16 %v1490
    %v2214 = vunpack.c.h.b16 %v1490
    %v2215 = vunpack.c.l.b16 %v1491
    %v2216 = vunpack.c.h.b16 %v1491
    %v2217 = vunpack.c.l.b16 %v1492
    %v2218 = vunpack.c.h.b16 %v1492
    %v2219 = vunpack.c.l.b16 %v1493
    %v2220 = vunpack.c.h.b16 %v1493
    %v2221 = vunpack.c.l.b16 %v1494
    %v2222 = vunpack.c.h.b16 %v1494
    %v2223 = vunpack.c.l.b16 %v1495
    %v2224 = vunpack.c.h.b16 %v1495
    %v2225 = vunpack.c.l.b16 %v1496
    %v2226 = vunpack.c.h.b16 %v1496
    %v2227 = vunpack.c.l.b16 %v1497
    %v2228 = vunpack.c.h.b16 %v1497
    %v2229 = vunpack.c.l.b16 %v1498
    %v2230 = vunpack.c.h.b16 %v1498
    %v2231 = vunpack.c.l.b16 %v1499
    %v2232 = vunpack.c.h.b16 %v1499
    %v2233 = vunpack.c.l.b16 %v1500
    %v2234 = vunpack.c.h.b16 %v1500
    %v2235 = vunpack.c.l.b16 %v1501
    %v2236 = vunpack.c.h.b16 %v1501
    %v2237 = vunpack.c.l.b16 %v1502
    %v2238 = vunpack.c.h.b16 %v1502
    %v2239 = vunpack.c.l.b16 %v1503
    %v2240 = vunpack.c.h.b16 %v1503
    %v2241 = vunpack.c.l.b16 %v1504
    %v2242 = vunpack.c.h.b16 %v1504
    %v2243 = vunpack.c.l.b16 %v1505
    %v2244 = vunpack.c.h.b16 %v1505
    %v2245 = vunpack.c.l.b16 %v1506
    %v2246 = vunpack.c.h.b16 %v1506
    %v2247 = vunpack.c.l.b16 %v1507
    %v2248 = vunpack.c.h.b16 %v1507
    %v2249 = vunpack.c.l.b16 %v1508
    %v2250 = vunpack.c.h.b16 %v1508
    %v2251 = vunpack.c.l.b16 %v1509
    %v2252 = vunpack.c.h.b16 %v1509
    %v2253 = vunpack.c.l.b16 %v1510
    %v2254 = vunpack.c.h.b16 %v1510
    %v2255 = vunpack.c.l.b16 %v1511
    %v2256 = vunpack.c.h.b16 %v1511
    %v2257 = vunpack.c.l.b16 %v1512
    %v2258 = vunpack.c.h.b16 %v1512
    %v2259 = vunpack.c.l.b16 %v1513
    %v2260 = vunpack.c.h.b16 %v1513
    %v2261 = vunpack.c.l.b16 %v1514
    %v2262 = vunpack.c.h.b16 %v1514
    %v2263 = vunpack.c.l.b16 %v1515
    %v2264 = vunpack.c.h.b16 %v1515
    %v2265 = vunpack.c.l.b16 %v1516
    %v2266 = vunpack.c.h.b16 %v1516
    %v2267 = vunpack.c.l.b16 %v1517
    %v2268 = vunpack.c.h.b16 %v1517
    %v2269 = vunpack.c.l.b16 %v1518
    %v2270 = vunpack.c.h.b16 %v1518
    %v2271 = vunpack.c.l.b16 %v1519
    %v2272 = vunpack.c.h.b16 %v1519
    %v2273 = vunpack.c.l.b16 %v1520
    %v2274 = vunpack.c.h.b16 %v1520
    %v2275 = vunpack.c.l.b16 %v1521
    %v2276 = vunpack.c.h.b16 %v1521
    %v2277 = vunpack.c.l.b16 %v1522
    %v2278 = vunpack.c.h.b16 %v1522
    %v2279 = vunpack.c.l.b16 %v1523
    %v2280 = vunpack.c.h.b16 %v1523
    %v2281 = vunpack.c.l.b16 %v1524
    %v2282 = vunpack.c.h.b16 %v1524
    %v2283 = vunpack.c.l.b16 %v1525
    %v2284 = vunpack.c.h.b16 %v1525
    %v2285 = vunpack.c.l.b16 %v1526
    %v2286 = vunpack.c.h.b16 %v1526
    %v2287 = vunpack.c.l.b16 %v1527
    %v2288 = vunpack.c.h.b16 %v1527
    %v2289 = vunpack.c.l.b16 %v1528
    %v2290 = vunpack.c.h.b16 %v1528
    %v2291 = vunpack.c.l.b16 %v1529
    %v2292 = vunpack.c.h.b16 %v1529
    %v2293 = vunpack.c.l.b16 %v1530
    %v2294 = vunpack.c.h.b16 %v1530
    %v2295 = vunpack.c.l.b16 %v1531
    %v2296 = vunpack.c.h.b16 %v1531
    %v2297 = vunpack.c.l.b16 %v1532
    %v2298 = vunpack.c.h.b16 %v1532
    %v2299 = vunpack.c.l.b16 %v1533
    %v2300 = vunpack.c.h.b16 %v1533
    %v2301 = vunpack.c.l.b16 %v1534
    %v2302 = vunpack.c.h.b16 %v1534
    %v2303 = vpack.c.b16 %v1799, %v1791
    %v2304 = vpack.c.b16 %v1800, %v1792
    %v2305 = vpack.c.b16 %v1801, %v1793
    %v2306 = vpack.c.b16 %v1802, %v1794
    %v2307 = vpack.c.b16 %v1803, %v1795
    %v2308 = vpack.c.b16 %v1804, %v1796
    %v2309 = vpack.c.b16 %v1805, %v1797
    %v2310 = vpack.c.b16 %v1806, %v1798
    %v2311 = vpack.c.b16 %v1815, %v1807
    %v2312 = vpack.c.b16 %v1816, %v1808
    %v2313 = vpack.c.b16 %v1817, %v1809
    %v2314 = vpack.c.b16 %v1818, %v1810
    %v2315 = vpack.c.b16 %v1819, %v1811
    %v2316 = vpack.c.b16 %v1820, %v1812
    %v2317 = vpack.c.b16 %v1821, %v1813
    %v2318 = vpack.c.b16 %v1822, %v1814
    %v2319 = vpack.c.b16 %v1831, %v1823
    %v2320 = vpack.c.b16 %v1832, %v1824
    %v2321 = vpack.c.b16 %v1833, %v1825
    %v2322 = vpack.c.b16 %v1834, %v1826
    %v2323 = vpack.c.b16 %v1835, %v1827
    %v2324 = vpack.c.b16 %v1836, %v1828
    %v2325 = vpack.c.b16 %v1837, %v1829
    %v2326 = vpack.c.b16 %v1838, %v1830
    %v2327 = vpack.c.b16 %v1847, %v1839
    %v2328 = vpack.c.b16 %v1848, %v1840
    %v2329 = vpack.c.b16 %v1849, %v1841
    %v2330 = vpack.c.b16 %v1850, %v1842
    %v2331 = vpack.c.b16 %v1851, %v1843
    %v2332 = vpack.c.b16 %v1852, %v1844
    %v2333 = vpack.c.b16 %v1853, %v1845
    %v2334 = vpack.c.b16 %v1854, %v1846
    %v2335 = vpack.c.b16 %v1863, %v1855
    %v2336 = vpack.c.b16 %v1864, %v1856
    %v2337 = vpack.c.b16 %v1865, %v1857
    %v2338 = vpack.c.b16 %v1866, %v1858
    %v2339 = vpack.c.b16 %v1867, %v1859
    %v2340 = vpack.c.b16 %v1868, %v1860
    %v2341 = vpack.c.b16 %v1869, %v1861
    %v2342 = vpack.c.b16 %v1870, %v1862
    %v2343 = vpack.c.b16 %v1879, %v1871
    %v2344 = vpack.c.b16 %v1880, %v1872
    %v2345 = vpack.c.b16 %v1881, %v1873
    %v2346 = vpack.c.b16 %v1882, %v1874
    %v2347 = vpack.c.b16 %v1883, %v1875
    %v2348 = vpack.c.b16 %v1884, %v1876
    %v2349 = vpack.c.b16 %v1885, %v1877
    %v2350 = vpack.c.b16 %v1886, %v1878
    %v2351 = vpack.c.b16 %v1895, %v1887
    %v2352 = vpack.c.b16 %v1896, %v1888
    %v2353 = vpack.c.b16 %v1897, %v1889
    %v2354 = vpack.c.b16 %v1898, %v1890
    %v2355 = vpack.c.b16 %v1899, %v1891
    %v2356 = vpack.c.b16 %v1900, %v1892
    %v2357 = vpack.c.b16 %v1901, %v1893
    %v2358 = vpack.c.b16 %v1902, %v1894
    %v2359 = vpack.c.b16 %v1911, %v1903
    %v2360 = vpack.c.b16 %v1912, %v1904
    %v2361 = vpack.c.b16 %v1913, %v1905
    %v2362 = vpack.c.b16 %v1914, %v1906
    %v2363 = vpack.c.b16 %v1915, %v1907
    %v2364 = vpack.c.b16 %v1916, %v1908
    %v2365 = vpack.c.b16 %v1917, %v1909
    %v2366 = vpack.c.b16 %v1918, %v1910
    %v2367 = vpack.c.b16 %v1927, %v1919
    %v2368 = vpack.c.b16 %v1928, %v1920
    %v2369 = vpack.c.b16 %v1929, %v1921
    %v2370 = vpack.c.b16 %v1930, %v1922
    %v2371 = vpack.c.b16 %v1931, %v1923
    %v2372 = vpack.c.b16 %v1932, %v1924
    %v2373 = vpack.c.b16 %v1933, %v1925
    %v2374 = vpack.c.b16 %v1934, %v1926
    %v2375 = vpack.c.b16 %v1943, %v1935
    %v2376 = vpack.c.b16 %v1944, %v1936
    %v2377 = vpack.c.b16 %v1945, %v1937
    %v2378 = vpack.c.b16 %v1946, %v1938
    %v2379 = vpack.c.b16 %v1947, %v1939
    %v2380 = vpack.c.b16 %v1948, %v1940
    %v2381 = vpack.c.b16 %v1949, %v1941
    %v2382 = vpack.c.b16 %v1950, %v1942
    %v2383 = vpack.c.b16 %v1959, %v1951
    %v2384 = vpack.c.b16 %v1960, %v1952
    %v2385 = vpack.c.b16 %v1961, %v1953
    %v2386 = vpack.c.b16 %v1962, %v1954
    %v2387 = vpack.c.b16 %v1963, %v1955
    %v2388 = vpack.c.b16 %v1964, %v1956
    %v2389 = vpack.c.b16 %v1965, %v1957
    %v2390 = vpack.c.b16 %v1966, %v1958
    %v2391 = vpack.c.b16 %v1975, %v1967
    %v2392 = vpack.c.b16 %v1976, %v1968
    %v2393 = vpack.c.b16 %v1977, %v1969
    %v2394 = vpack.c.b16 %v1978, %v1970
    %v2395 = vpack.c.b16 %v1979, %v1971
    %v2396 = vpack.c.b16 %v1980, %v1972
    %v2397 = vpack.c.b16 %v1981, %v1973
    %v2398 = vpack.c.b16 %v1982, %v1974
    %v2399 = vpack.c.b16 %v1991, %v1983
    %v2400 = vpack.c.b16 %v1992, %v1984
    %v2401 = vpack.c.b16 %v1993, %v1985
    %v2402 = vpack.c.b16 %v1994, %v1986
    %v2403 = vpack.c.b16 %v1995, %v1987
    %v2404 = vpack.c.b16 %v1996, %v1988
    %v2405 = vpack.c.b16 %v1997, %v1989
    %v2406 = vpack.c.b16 %v1998, %v1990
    %v2407 = vpack.c.b16 %v2007, %v1999
    %v2408 = vpack.c.b16 %v2008, %v2000
    %v2409 = vpack.c.b16 %v2009, %v2001
    %v2410 = vpack.c.b16 %v2010, %v2002
    %v2411 = vpack.c.b16 %v2011, %v2003
    %v2412 = vpack.c.b16 %v2012, %v2004
    %v2413 = vpack.c.b16 %v2013, %v2005
    %v2414 = vpack.c.b16 %v2014, %v2006
    %v2415 = vpack.c.b16 %v2023, %v2015
    %v2416 = vpack.c.b16 %v2024, %v2016
    %v2417 = vpack.c.b16 %v2025, %v2017
    %v2418 = vpack.c.b16 %v2026, %v2018
    %v2419 = vpack.c.b16 %v2027, %v2019
    %v2420 = vpack.c.b16 %v2028, %v2020
    %v2421 = vpack.c.b16 %v2029, %v2021
    %v2422 = vpack.c.b16 %v2030, %v2022
    %v2423 = vpack.c.b16 %v2039, %v2031
    %v2424 = vpack.c.b16 %v2040, %v2032
    %v2425 = vpack.c.b16 %v2041, %v2033
    %v2426 = vpack.c.b16 %v2042, %v2034
    %v2427 = vpack.c.b16 %v2043, %v2035
    %v2428 = vpack.c.b16 %v2044, %v2036
    %v2429 = vpack.c.b16 %v2045, %v2037
    %v2430 = vpack.c.b16 %v2046, %v2038
    %v2431 = vpack.c.b16 %v2055, %v2047
    %v2432 = vpack.c.b16 %v2056, %v2048
    %v2433 = vpack.c.b16 %v2057, %v2049
    %v2434 = vpack.c.b16 %v2058, %v2050
    %v2435 = vpack.c.b16 %v2059, %v2051
    %v2436 = vpack.c.b16 %v2060, %v2052
    %v2437 = vpack.c.b16 %v2061, %v2053
    %v2438 = vpack.c.b16 %v2062, %v2054
    %v2439 = vpack.c.b16 %v2071, %v2063
    %v2440 = vpack.c.b16 %v2072, %v2064
    %v2441 = vpack.c.b16 %v2073, %v2065
    %v2442 = vpack.c.b16 %v2074, %v2066
    %v2443 = vpack.c.b16 %v2075, %v2067
    %v2444 = vpack.c.b16 %v2076, %v2068
    %v2445 = vpack.c.b16 %v2077, %v2069
    %v2446 = vpack.c.b16 %v2078, %v2070
    %v2447 = vpack.c.b16 %v2087, %v2079
    %v2448 = vpack.c.b16 %v2088, %v2080
    %v2449 = vpack.c.b16 %v2089, %v2081
    %v2450 = vpack.c.b16 %v2090, %v2082
    %v2451 = vpack.c.b16 %v2091, %v2083
    %v2452 = vpack.c.b16 %v2092, %v2084
    %v2453 = vpack.c.b16 %v2093, %v2085
    %v2454 = vpack.c.b16 %v2094, %v2086
    %v2455 = vpack.c.b16 %v2103, %v2095
    %v2456 = vpack.c.b16 %v2104, %v2096
    %v2457 = vpack.c.b16 %v2105, %v2097
    %v2458 = vpack.c.b16 %v2106, %v2098
    %v2459 = vpack.c.b16 %v2107, %v2099
    %v2460 = vpack.c.b16 %v2108, %v2100
    %v2461 = vpack.c.b16 %v2109, %v2101
    %v2462 = vpack.c.b16 %v2110, %v2102
    %v2463 = vpack.c.b16 %v2119, %v2111
    %v2464 = vpack.c.b16 %v2120, %v2112
    %v2465 = vpack.c.b16 %v2121, %v2113
    %v2466 = vpack.c.b16 %v2122, %v2114
    %v2467 = vpack.c.b16 %v2123, %v2115
    %v2468 = vpack.c.b16 %v2124, %v2116
    %v2469 = vpack.c.b16 %v2125, %v2117
    %v2470 = vpack.c.b16 %v2126, %v2118
    %v2471 = vpack.c.b16 %v2135, %v2127
    %v2472 = vpack.c.b16 %v2136, %v2128
    %v2473 = vpack.c.b16 %v2137, %v2129
    %v2474 = vpack.c.b16 %v2138, %v2130
    %v2475 = vpack.c.b16 %v2139, %v2131
    %v2476 = vpack.c.b16 %v2140, %v2132
    %v2477 = vpack.c.b16 %v2141, %v2133
    %v2478 = vpack.c.b16 %v2142, %v2134
    %v2479 = vpack.c.b16 %v2151, %v2143
    %v2480 = vpack.c.b16 %v2152, %v2144
    %v2481 = vpack.c.b16 %v2153, %v2145
    %v2482 = vpack.c.b16 %v2154, %v2146
    %v2483 = vpack.c.b16 %v2155, %v2147
    %v2484 = vpack.c.b16 %v2156, %v2148
    %v2485 = vpack.c.b16 %v2157, %v2149
    %v2486 = vpack.c.b16 %v2158, %v2150
    %v2487 = vpack.c.b16 %v2167, %v2159
    %v2488 = vpack.c.b16 %v2168, %v2160
    %v2489 = vpack.c.b16 %v2169, %v2161
    %v2490 = vpack.c.b16 %v2170, %v2162
    %v2491 = vpack.c.b16 %v2171, %v2163
    %v2492 = vpack.c.b16 %v2172, %v2164
    %v2493 = vpack.c.b16 %v2173, %v2165
    %v2494 = vpack.c.b16 %v2174, %v2166
    %v2495 = vpack.c.b16 %v2183, %v2175
    %v2496 = vpack.c.b16 %v2184, %v2176
    %v2497 = vpack.c.b16 %v2185, %v2177
    %v2498 = vpack.c.b16 %v2186, %v2178
    %v2499 = vpack.c.b16 %v2187, %v2179
    %v2500 = vpack.c.b16 %v2188, %v2180
    %v2501 = vpack.c.b16 %v2189, %v2181
    %v2502 = vpack.c.b16 %v2190, %v2182
    %v2503 = vpack.c.b16 %v2199, %v2191
    %v2504 = vpack.c.b16 %v2200, %v2192
    %v2505 = vpack.c.b16 %v2201, %v2193
    %v2506 = vpack.c.b16 %v2202, %v2194
    %v2507 = vpack.c.b16 %v2203, %v2195
    %v2508 = vpack.c.b16 %v2204, %v2196
    %v2509 = vpack.c.b16 %v2205, %v2197
    %v2510 = vpack.c.b16 %v2206, %v2198
    %v2511 = vpack.c.b16 %v2215, %v2207
    %v2512 = vpack.c.b16 %v2216, %v2208
    %v2513 = vpack.c.b16 %v2217, %v2209
    %v2514 = vpack.c.b16 %v2218, %v2210
    %v2515 = vpack.c.b16 %v2219, %v2211
    %v2516 = vpack.c.b16 %v2220, %v2212
    %v2517 = vpack.c.b16 %v2221, %v2213
    %v2518 = vpack.c.b16 %v2222, %v2214
    %v2519 = vpack.c.b16 %v2231, %v2223
    %v2520 = vpack.c.b16 %v2232, %v2224
    %v2521 = vpack.c.b16 %v2233, %v2225
    %v2522 = vpack.c.b16 %v2234, %v2226
    %v2523 = vpack.c.b16 %v2235, %v2227
    %v2524 = vpack.c.b16 %v2236, %v2228
    %v2525 = vpack.c.b16 %v2237, %v2229
    %v2526 = vpack.c.b16 %v2238, %v2230
    %v2527 = vpack.c.b16 %v2247, %v2239
    %v2528 = vpack.c.b16 %v2248, %v2240
    %v2529 = vpack.c.b16 %v2249, %v2241
    %v2530 = vpack.c.b16 %v2250, %v2242
    %v2531 = vpack.c.b16 %v2251, %v2243
    %v2532 = vpack.c.b16 %v2252, %v2244
    %v2533 = vpack.c.b16 %v2253, %v2245
    %v2534 = vpack.c.b16 %v2254, %v2246
    %v2535 = vpack.c.b16 %v2263, %v2255
    %v2536 = vpack.c.b16 %v2264, %v2256
    %v2537 = vpack.c.b16 %v2265, %v2257
    %v2538 = vpack.c.b16 %v2266, %v2258
    %v2539 = vpack.c.b16 %v2267, %v2259
    %v2540 = vpack.c.b16 %v2268, %v2260
    %v2541 = vpack.c.b16 %v2269, %v2261
    %v2542 = vpack.c.b16 %v2270, %v2262
    %v2543 = vpack.c.b16 %v2279, %v2271
    %v2544 = vpack.c.b16 %v2280, %v2272
    %v2545 = vpack.c.b16 %v2281, %v2273
    %v2546 = vpack.c.b16 %v2282, %v2274
    %v2547 = vpack.c.b16 %v2283, %v2275
    %v2548 = vpack.c.b16 %v2284, %v2276
    %v2549 = vpack.c.b16 %v2285, %v2277
    %v2550 = vpack.c.b16 %v2286, %v2278
    %v2551 = vpack.c.b16 %v2295, %v2287
    %v2552 = vpack.c.b16 %v2296, %v2288
    %v2553 = vpack.c.b16 %v2297, %v2289
    %v2554 = vpack.c.b16 %v2298, %v2290
    %v2555 = vpack.c.b16 %v2299, %v2291
    %v2556 = vpack.c.b16 %v2300, %v2292
    %v2557 = vpack.c.b16 %v2301, %v2293
    %v2558 = vpack.c.b16 %v2302, %v2294
    %2815 = vmatprep.subr.bf16.mxu0 %v2360
    %2816 = vmatpush1.bf16.msra.mxu0 %v2359
    %2817 = vmatprep.subr.bf16.mxu0 %v2352
    %2818 = vmatpush1.bf16.msra.mxu0 %v2351
    %2819 = vmatprep.subr.bf16.mxu0 %v2344
    %2820 = vmatpush1.bf16.msra.mxu0 %v2343
    %2821 = vmatprep.subr.bf16.mxu0 %v2336
    %2822 = vmatpush1.bf16.msra.mxu0 %v2335
    %2823 = vmatprep.subr.bf16.mxu0 %v2328
    %2824 = vmatpush1.bf16.msra.mxu0 %v2327
    %2825 = vmatprep.subr.bf16.mxu0 %v2320
    %2826 = vmatpush1.bf16.msra.mxu0 %v2319
    %2827 = vmatprep.subr.bf16.mxu0 %v2312
    %2828 = vmatpush1.bf16.msra.mxu0 %v2311
    %2829 = vmatprep.subr.bf16.mxu0 %v2304
    %2830 = vmatpush1.bf16.msra.mxu0 %v2303
    %2831 = vmatprep.subr.bf16.mxu0 %v2424
    %2832 = vmatpush2.bf16.msra.mxu0 %v2423
    %2833 = vmatprep.subr.bf16.mxu0 %v2416
    %2834 = vmatpush2.bf16.msra.mxu0 %v2415
    %2835 = vmatprep.subr.bf16.mxu0 %v2408
    %2836 = vmatpush2.bf16.msra.mxu0 %v2407
    %2837 = vmatprep.subr.bf16.mxu0 %v2400
    %2838 = vmatpush2.bf16.msra.mxu0 %v2399
    %2839 = vmatprep.subr.bf16.mxu0 %v2392
    %2840 = vmatpush2.bf16.msra.mxu0 %v2391
    %2841 = vmatprep.subr.bf16.mxu0 %v2384
    %2842 = vmatpush2.bf16.msra.mxu0 %v2383
    %2843 = vmatprep.subr.bf16.mxu0 %v2376
    %2844 = vmatpush2.bf16.msra.mxu0 %v2375
    %2845 = vmatprep.subr.bf16.mxu0 %v2368
    %2846 = vmatpush2.bf16.msra.mxu0 %v2367
    %2847 = vmatprep.mubr.bf16.mxu0 %v1276
    %2848 = vmatmul.mubr.bf16.gmra.mxu0 %v1275
    %v2849 = vpop.f32.mrf.mxu0
    %v2850 = vadd.f32 0.0, %v2849
    %v2851 = vpop.f32.mrf.mxu0
    %v2852 = vadd.f32 0.0, %v2851
    %v2853 = vpop.f32.mrf.mxu0
    %v2854 = vadd.f32 0.0, %v2853
    %v2855 = vpop.f32.mrf.mxu0
    %v2856 = vadd.f32 0.0, %v2855
    %2857 = vdwg.mxu0
    %2858 = vmatprep.subr.bf16.mxu0 %v2488
    %2859 = vmatpush1.bf16.msra.mxu0 %v2487
    %2860 = vmatprep.subr.bf16.mxu0 %v2480
    %2861 = vmatpush1.bf16.msra.mxu0 %v2479
    %2862 = vmatprep.subr.bf16.mxu0 %v2472
    %2863 = vmatpush1.bf16.msra.mxu0 %v2471
    %2864 = vmatprep.subr.bf16.mxu0 %v2464
    %2865 = vmatpush1.bf16.msra.mxu0 %v2463
    %2866 = vmatprep.subr.bf16.mxu0 %v2456
    %2867 = vmatpush1.bf16.msra.mxu0 %v2455
    %2868 = vmatprep.subr.bf16.mxu0 %v2448
    %2869 = vmatpush1.bf16.msra.mxu0 %v2447
    %2870 = vmatprep.subr.bf16.mxu0 %v2440
    %2871 = vmatpush1.bf16.msra.mxu0 %v2439
    %2872 = vmatprep.subr.bf16.mxu0 %v2432
    %2873 = vmatpush1.bf16.msra.mxu0 %v2431
    %2874 = vmatprep.subr.bf16.mxu0 %v2552
    %2875 = vmatpush2.bf16.msra.mxu0 %v2551
    %2876 = vmatprep.subr.bf16.mxu0 %v2544
    %2877 = vmatpush2.bf16.msra.mxu0 %v2543
    %2878 = vmatprep.subr.bf16.mxu0 %v2536
    %2879 = vmatpush2.bf16.msra.mxu0 %v2535
    %2880 = vmatprep.subr.bf16.mxu0 %v2528
    %2881 = vmatpush2.bf16.msra.mxu0 %v2527
    %2882 = vmatprep.subr.bf16.mxu0 %v2520
    %2883 = vmatpush2.bf16.msra.mxu0 %v2519
    %2884 = vmatprep.subr.bf16.mxu0 %v2512
    %2885 = vmatpush2.bf16.msra.mxu0 %v2511
    %2886 = vmatprep.subr.bf16.mxu0 %v2504
    %2887 = vmatpush2.bf16.msra.mxu0 %v2503
    %2888 = vmatprep.subr.bf16.mxu0 %v2496
    %2889 = vmatpush2.bf16.msra.mxu0 %v2495
    %2890 = vmatprep.mubr.bf16.mxu0 %v1278
    %2891 = vmatmul.mubr.bf16.gmra.mxu0 %v1277
    %v2892 = vpop.f32.mrf.mxu0
    %v2893 = vadd.f32 %v2850, %v2892
    %v2894 = vpop.f32.mrf.mxu0
    %v2895 = vadd.f32 %v2852, %v2894
    %v2896 = vpop.f32.mrf.mxu0
    %v2897 = vadd.f32 %v2854, %v2896
    %v2898 = vpop.f32.mrf.mxu0
    %v2899 = vadd.f32 %v2856, %v2898
    %2900 = vdwg.mxu0
    %2901 = vmatprep.subr.bf16.mxu0 %v2362
    %2902 = vmatpush1.bf16.msra.mxu0 %v2361
    %2903 = vmatprep.subr.bf16.mxu0 %v2354
    %2904 = vmatpush1.bf16.msra.mxu0 %v2353
    %2905 = vmatprep.subr.bf16.mxu0 %v2346
    %2906 = vmatpush1.bf16.msra.mxu0 %v2345
    %2907 = vmatprep.subr.bf16.mxu0 %v2338
    %2908 = vmatpush1.bf16.msra.mxu0 %v2337
    %2909 = vmatprep.subr.bf16.mxu0 %v2330
    %2910 = vmatpush1.bf16.msra.mxu0 %v2329
    %2911 = vmatprep.subr.bf16.mxu0 %v2322
    %2912 = vmatpush1.bf16.msra.mxu0 %v2321
    %2913 = vmatprep.subr.bf16.mxu0 %v2314
    %2914 = vmatpush1.bf16.msra.mxu0 %v2313
    %2915 = vmatprep.subr.bf16.mxu0 %v2306
    %2916 = vmatpush1.bf16.msra.mxu0 %v2305
    %2917 = vmatprep.subr.bf16.mxu0 %v2426
    %2918 = vmatpush2.bf16.msra.mxu0 %v2425
    %2919 = vmatprep.subr.bf16.mxu0 %v2418
    %2920 = vmatpush2.bf16.msra.mxu0 %v2417
    %2921 = vmatprep.subr.bf16.mxu0 %v2410
    %2922 = vmatpush2.bf16.msra.mxu0 %v2409
    %2923 = vmatprep.subr.bf16.mxu0 %v2402
    %2924 = vmatpush2.bf16.msra.mxu0 %v2401
    %2925 = vmatprep.subr.bf16.mxu0 %v2394
    %2926 = vmatpush2.bf16.msra.mxu0 %v2393
    %2927 = vmatprep.subr.bf16.mxu0 %v2386
    %2928 = vmatpush2.bf16.msra.mxu0 %v2385
    %2929 = vmatprep.subr.bf16.mxu0 %v2378
    %2930 = vmatpush2.bf16.msra.mxu0 %v2377
    %2931 = vmatprep.subr.bf16.mxu0 %v2370
    %2932 = vmatpush2.bf16.msra.mxu0 %v2369
    %2933 = vmatprep.mubr.bf16.mxu0 %v1276
    %2934 = vmatmul.mubr.bf16.gmra.mxu0 %v1275
    %v2935 = vpop.f32.mrf.mxu0
    %v2936 = vadd.f32 0.0, %v2935
    %v2937 = vpop.f32.mrf.mxu0
    %v2938 = vadd.f32 0.0, %v2937
    %v2939 = vpop.f32.mrf.mxu0
    %v2940 = vadd.f32 0.0, %v2939
    %v2941 = vpop.f32.mrf.mxu0
    %v2942 = vadd.f32 0.0, %v2941
    %2943 = vdwg.mxu0
    %2944 = vmatprep.subr.bf16.mxu0 %v2490
    %2945 = vmatpush1.bf16.msra.mxu0 %v2489
    %2946 = vmatprep.subr.bf16.mxu0 %v2482
    %2947 = vmatpush1.bf16.msra.mxu0 %v2481
    %2948 = vmatprep.subr.bf16.mxu0 %v2474
    %2949 = vmatpush1.bf16.msra.mxu0 %v2473
    %2950 = vmatprep.subr.bf16.mxu0 %v2466
    %2951 = vmatpush1.bf16.msra.mxu0 %v2465
    %2952 = vmatprep.subr.bf16.mxu0 %v2458
    %2953 = vmatpush1.bf16.msra.mxu0 %v2457
    %2954 = vmatprep.subr.bf16.mxu0 %v2450
    %2955 = vmatpush1.bf16.msra.mxu0 %v2449
    %2956 = vmatprep.subr.bf16.mxu0 %v2442
    %2957 = vmatpush1.bf16.msra.mxu0 %v2441
    %2958 = vmatprep.subr.bf16.mxu0 %v2434
    %2959 = vmatpush1.bf16.msra.mxu0 %v2433
    %2960 = vmatprep.subr.bf16.mxu0 %v2554
    %2961 = vmatpush2.bf16.msra.mxu0 %v2553
    %2962 = vmatprep.subr.bf16.mxu0 %v2546
    %2963 = vmatpush2.bf16.msra.mxu0 %v2545
    %2964 = vmatprep.subr.bf16.mxu0 %v2538
    %2965 = vmatpush2.bf16.msra.mxu0 %v2537
    %2966 = vmatprep.subr.bf16.mxu0 %v2530
    %2967 = vmatpush2.bf16.msra.mxu0 %v2529
    %2968 = vmatprep.subr.bf16.mxu0 %v2522
    %2969 = vmatpush2.bf16.msra.mxu0 %v2521
    %2970 = vmatprep.subr.bf16.mxu0 %v2514
    %2971 = vmatpush2.bf16.msra.mxu0 %v2513
    %2972 = vmatprep.subr.bf16.mxu0 %v2506
    %2973 = vmatpush2.bf16.msra.mxu0 %v2505
    %2974 = vmatprep.subr.bf16.mxu0 %v2498
    %2975 = vmatpush2.bf16.msra.mxu0 %v2497
    %2976 = vmatprep.mubr.bf16.mxu0 %v1278
    %2977 = vmatmul.mubr.bf16.gmra.mxu0 %v1277
    %v2978 = vpop.f32.mrf.mxu0
    %v2979 = vadd.f32 %v2936, %v2978
    %v2980 = vpop.f32.mrf.mxu0
    %v2981 = vadd.f32 %v2938, %v2980
    %v2982 = vpop.f32.mrf.mxu0
    %v2983 = vadd.f32 %v2940, %v2982
    %v2984 = vpop.f32.mrf.mxu0
    %v2985 = vadd.f32 %v2942, %v2984
    %2986 = vdwg.mxu0
    %2987 = vmatprep.subr.bf16.mxu0 %v2364
    %2988 = vmatpush1.bf16.msra.mxu0 %v2363
    %2989 = vmatprep.subr.bf16.mxu0 %v2356
    %2990 = vmatpush1.bf16.msra.mxu0 %v2355
    %2991 = vmatprep.subr.bf16.mxu0 %v2348
    %2992 = vmatpush1.bf16.msra.mxu0 %v2347
    %2993 = vmatprep.subr.bf16.mxu0 %v2340
    %2994 = vmatpush1.bf16.msra.mxu0 %v2339
    %2995 = vmatprep.subr.bf16.mxu0 %v2332
    %2996 = vmatpush1.bf16.msra.mxu0 %v2331
    %2997 = vmatprep.subr.bf16.mxu0 %v2324
    %2998 = vmatpush1.bf16.msra.mxu0 %v2323
    %2999 = vmatprep.subr.bf16.mxu0 %v2316
    %3000 = vmatpush1.bf16.msra.mxu0 %v2315
    %3001 = vmatprep.subr.bf16.mxu0 %v2308
    %3002 = vmatpush1.bf16.msra.mxu0 %v2307
    %3003 = vmatprep.subr.bf16.mxu0 %v2428
    %3004 = vmatpush2.bf16.msra.mxu0 %v2427
    %3005 = vmatprep.subr.bf16.mxu0 %v2420
    %3006 = vmatpush2.bf16.msra.mxu0 %v2419
    %3007 = vmatprep.subr.bf16.mxu0 %v2412
    %3008 = vmatpush2.bf16.msra.mxu0 %v2411
    %3009 = vmatprep.subr.bf16.mxu0 %v2404
    %3010 = vmatpush2.bf16.msra.mxu0 %v2403
    %3011 = vmatprep.subr.bf16.mxu0 %v2396
    %3012 = vmatpush2.bf16.msra.mxu0 %v2395
    %3013 = vmatprep.subr.bf16.mxu0 %v2388
    %3014 = vmatpush2.bf16.msra.mxu0 %v2387
    %3015 = vmatprep.subr.bf16.mxu0 %v2380
    %3016 = vmatpush2.bf16.msra.mxu0 %v2379
    %3017 = vmatprep.subr.bf16.mxu0 %v2372
    %3018 = vmatpush2.bf16.msra.mxu0 %v2371
    %3019 = vmatprep.mubr.bf16.mxu0 %v1276
    %3020 = vmatmul.mubr.bf16.gmra.mxu0 %v1275
    %v3021 = vpop.f32.mrf.mxu0
    %v3022 = vadd.f32 0.0, %v3021
    %v3023 = vpop.f32.mrf.mxu0
    %v3024 = vadd.f32 0.0, %v3023
    %v3025 = vpop.f32.mrf.mxu0
    %v3026 = vadd.f32 0.0, %v3025
    %v3027 = vpop.f32.mrf.mxu0
    %v3028 = vadd.f32 0.0, %v3027
    %3029 = vdwg.mxu0
    %3030 = vmatprep.subr.bf16.mxu0 %v2492
    %3031 = vmatpush1.bf16.msra.mxu0 %v2491
    %3032 = vmatprep.subr.bf16.mxu0 %v2484
    %3033 = vmatpush1.bf16.msra.mxu0 %v2483
    %3034 = vmatprep.subr.bf16.mxu0 %v2476
    %3035 = vmatpush1.bf16.msra.mxu0 %v2475
    %3036 = vmatprep.subr.bf16.mxu0 %v2468
    %3037 = vmatpush1.bf16.msra.mxu0 %v2467
    %3038 = vmatprep.subr.bf16.mxu0 %v2460
    %3039 = vmatpush1.bf16.msra.mxu0 %v2459
    %3040 = vmatprep.subr.bf16.mxu0 %v2452
    %3041 = vmatpush1.bf16.msra.mxu0 %v2451
    %3042 = vmatprep.subr.bf16.mxu0 %v2444
    %3043 = vmatpush1.bf16.msra.mxu0 %v2443
    %3044 = vmatprep.subr.bf16.mxu0 %v2436
    %3045 = vmatpush1.bf16.msra.mxu0 %v2435
    %3046 = vmatprep.subr.bf16.mxu0 %v2556
    %3047 = vmatpush2.bf16.msra.mxu0 %v2555
    %3048 = vmatprep.subr.bf16.mxu0 %v2548
    %3049 = vmatpush2.bf16.msra.mxu0 %v2547
    %3050 = vmatprep.subr.bf16.mxu0 %v2540
    %3051 = vmatpush2.bf16.msra.mxu0 %v2539
    %3052 = vmatprep.subr.bf16.mxu0 %v2532
    %3053 = vmatpush2.bf16.msra.mxu0 %v2531
    %3054 = vmatprep.subr.bf16.mxu0 %v2524
    %3055 = vmatpush2.bf16.msra.mxu0 %v2523
    %3056 = vmatprep.subr.bf16.mxu0 %v2516
    %3057 = vmatpush2.bf16.msra.mxu0 %v2515
    %3058 = vmatprep.subr.bf16.mxu0 %v2508
    %3059 = vmatpush2.bf16.msra.mxu0 %v2507
    %3060 = vmatprep.subr.bf16.mxu0 %v2500
    %3061 = vmatpush2.bf16.msra.mxu0 %v2499
    %3062 = vmatprep.mubr.bf16.mxu0 %v1278
    %3063 = vmatmul.mubr.bf16.gmra.mxu0 %v1277
    %v3064 = vpop.f32.mrf.mxu0
    %v3065 = vadd.f32 %v3022, %v3064
    %v3066 = vpop.f32.mrf.mxu0
    %v3067 = vadd.f32 %v3024, %v3066
    %v3068 = vpop.f32.mrf.mxu0
    %v3069 = vadd.f32 %v3026, %v3068
    %v3070 = vpop.f32.mrf.mxu0
    %v3071 = vadd.f32 %v3028, %v3070
    %3072 = vdwg.mxu0
    %3073 = vmatprep.subr.bf16.mxu0 %v2366
    %3074 = vmatpush1.bf16.msra.mxu0 %v2365
    %3075 = vmatprep.subr.bf16.mxu0 %v2358
    %3076 = vmatpush1.bf16.msra.mxu0 %v2357
    %3077 = vmatprep.subr.bf16.mxu0 %v2350
    %3078 = vmatpush1.bf16.msra.mxu0 %v2349
    %3079 = vmatprep.subr.bf16.mxu0 %v2342
    %3080 = vmatpush1.bf16.msra.mxu0 %v2341
    %3081 = vmatprep.subr.bf16.mxu0 %v2334
    %3082 = vmatpush1.bf16.msra.mxu0 %v2333
    %3083 = vmatprep.subr.bf16.mxu0 %v2326
    %3084 = vmatpush1.bf16.msra.mxu0 %v2325
    %3085 = vmatprep.subr.bf16.mxu0 %v2318
    %3086 = vmatpush1.bf16.msra.mxu0 %v2317
    %3087 = vmatprep.subr.bf16.mxu0 %v2310
    %3088 = vmatpush1.bf16.msra.mxu0 %v2309
    %3089 = vmatprep.subr.bf16.mxu0 %v2430
    %3090 = vmatpush2.bf16.msra.mxu0 %v2429
    %3091 = vmatprep.subr.bf16.mxu0 %v2422
    %3092 = vmatpush2.bf16.msra.mxu0 %v2421
    %3093 = vmatprep.subr.bf16.mxu0 %v2414
    %3094 = vmatpush2.bf16.msra.mxu0 %v2413
    %3095 = vmatprep.subr.bf16.mxu0 %v2406
    %3096 = vmatpush2.bf16.msra.mxu0 %v2405
    %3097 = vmatprep.subr.bf16.mxu0 %v2398
    %3098 = vmatpush2.bf16.msra.mxu0 %v2397
    %3099 = vmatprep.subr.bf16.mxu0 %v2390
    %3100 = vmatpush2.bf16.msra.mxu0 %v2389
    %3101 = vmatprep.subr.bf16.mxu0 %v2382
    %3102 = vmatpush2.bf16.msra.mxu0 %v2381
    %3103 = vmatprep.subr.bf16.mxu0 %v2374
    %3104 = vmatpush2.bf16.msra.mxu0 %v2373
    %3105 = vmatprep.mubr.bf16.mxu0 %v1276
    %3106 = vmatmul.mubr.bf16.gmra.mxu0 %v1275
    %v3107 = vpop.f32.mrf.mxu0
    %v3108 = vadd.f32 0.0, %v3107
    %v3109 = vpop.f32.mrf.mxu0
    %v3110 = vadd.f32 0.0, %v3109
    %v3111 = vpop.f32.mrf.mxu0
    %v3112 = vadd.f32 0.0, %v3111
    %v3113 = vpop.f32.mrf.mxu0
    %v3114 = vadd.f32 0.0, %v3113
    %3115 = vdwg.mxu0
    %3116 = vmatprep.subr.bf16.mxu0 %v2494
    %3117 = vmatpush1.bf16.msra.mxu0 %v2493
    %3118 = vmatprep.subr.bf16.mxu0 %v2486
    %3119 = vmatpush1.bf16.msra.mxu0 %v2485
    %3120 = vmatprep.subr.bf16.mxu0 %v2478
    %3121 = vmatpush1.bf16.msra.mxu0 %v2477
    %3122 = vmatprep.subr.bf16.mxu0 %v2470
    %3123 = vmatpush1.bf16.msra.mxu0 %v2469
    %3124 = vmatprep.subr.bf16.mxu0 %v2462
    %3125 = vmatpush1.bf16.msra.mxu0 %v2461
    %3126 = vmatprep.subr.bf16.mxu0 %v2454
    %3127 = vmatpush1.bf16.msra.mxu0 %v2453
    %3128 = vmatprep.subr.bf16.mxu0 %v2446
    %3129 = vmatpush1.bf16.msra.mxu0 %v2445
    %3130 = vmatprep.subr.bf16.mxu0 %v2438
    %3131 = vmatpush1.bf16.msra.mxu0 %v2437
    %3132 = vmatprep.subr.bf16.mxu0 %v2558
    %3133 = vmatpush2.bf16.msra.mxu0 %v2557
    %3134 = vmatprep.subr.bf16.mxu0 %v2550
    %3135 = vmatpush2.bf16.msra.mxu0 %v2549
    %3136 = vmatprep.subr.bf16.mxu0 %v2542
    %3137 = vmatpush2.bf16.msra.mxu0 %v2541
    %3138 = vmatprep.subr.bf16.mxu0 %v2534
    %3139 = vmatpush2.bf16.msra.mxu0 %v2533
    %3140 = vmatprep.subr.bf16.mxu0 %v2526
    %3141 = vmatpush2.bf16.msra.mxu0 %v2525
    %3142 = vmatprep.subr.bf16.mxu0 %v2518
    %3143 = vmatpush2.bf16.msra.mxu0 %v2517
    %3144 = vmatprep.subr.bf16.mxu0 %v2510
    %3145 = vmatpush2.bf16.msra.mxu0 %v2509
    %3146 = vmatprep.subr.bf16.mxu0 %v2502
    %3147 = vmatpush2.bf16.msra.mxu0 %v2501
    %3148 = vmatprep.mubr.bf16.mxu0 %v1278
    %3149 = vmatmul.mubr.bf16.gmra.mxu0 %v1277
    %v3150 = vpop.f32.mrf.mxu0
    %v3151 = vadd.f32 %v3108, %v3150
    %v3152 = vpop.f32.mrf.mxu0
    %v3153 = vadd.f32 %v3110, %v3152
    %v3154 = vpop.f32.mrf.mxu0
    %v3155 = vadd.f32 %v3112, %v3154
    %v3156 = vpop.f32.mrf.mxu0
    %v3157 = vadd.f32 %v3114, %v3156
    %3158 = vdwg.mxu0
    %v3159 = vld [vmem:[#allocation18] sm:$0xff]
    %v3160 = vld [vmem:[#allocation19] sm:$0xff]
    %v3161 = vadd.f32 %v2893, %v2897
    %v3162 = vrot.slane %v3161, 4
    %v3163 = vadd.f32 %v3161, %v3162
    %v3164 = vrot.slane %v3163, 2
    %v3165 = vadd.f32 %v3163, %v3164
    %v3166 = vrot.slane %v3165, 1
    %v3167 = vadd.f32 %v3165, %v3166
    %v3168 = vadd.f32 %v2895, %v2899
    %v3169 = vrot.slane %v3168, 4
    %v3170 = vadd.f32 %v3168, %v3169
    %v3171 = vrot.slane %v3170, 2
    %v3172 = vadd.f32 %v3170, %v3171
    %v3173 = vrot.slane %v3172, 1
    %v3174 = vadd.f32 %v3172, %v3173
    %v3175 = vadd.f32 %v2979, %v2983
    %v3176 = vrot.slane %v3175, 4
    %v3177 = vadd.f32 %v3175, %v3176
    %v3178 = vrot.slane %v3177, 2
    %v3179 = vadd.f32 %v3177, %v3178
    %v3180 = vrot.slane %v3179, 1
    %v3181 = vadd.f32 %v3179, %v3180
    %v3182 = vadd.f32 %v2981, %v2985
    %v3183 = vrot.slane %v3182, 4
    %v3184 = vadd.f32 %v3182, %v3183
    %v3185 = vrot.slane %v3184, 2
    %v3186 = vadd.f32 %v3184, %v3185
    %v3187 = vrot.slane %v3186, 1
    %v3188 = vadd.f32 %v3186, %v3187
    %v3189 = vadd.f32 %v3065, %v3069
    %v3190 = vrot.slane %v3189, 4
    %v3191 = vadd.f32 %v3189, %v3190
    %v3192 = vrot.slane %v3191, 2
    %v3193 = vadd.f32 %v3191, %v3192
    %v3194 = vrot.slane %v3193, 1
    %v3195 = vadd.f32 %v3193, %v3194
    %v3196 = vadd.f32 %v3067, %v3071
    %v3197 = vrot.slane %v3196, 4
    %v3198 = vadd.f32 %v3196, %v3197
    %v3199 = vrot.slane %v3198, 2
    %v3200 = vadd.f32 %v3198, %v3199
    %v3201 = vrot.slane %v3200, 1
    %v3202 = vadd.f32 %v3200, %v3201
    %v3203 = vadd.f32 %v3151, %v3155
    %v3204 = vrot.slane %v3203, 4
    %v3205 = vadd.f32 %v3203, %v3204
    %v3206 = vrot.slane %v3205, 2
    %v3207 = vadd.f32 %v3205, %v3206
    %v3208 = vrot.slane %v3207, 1
    %v3209 = vadd.f32 %v3207, %v3208
    %v3210 = vadd.f32 %v3153, %v3157
    %v3211 = vrot.slane %v3210, 4
    %v3212 = vadd.f32 %v3210, %v3211
    %v3213 = vrot.slane %v3212, 2
    %v3214 = vadd.f32 %v3212, %v3213
    %v3215 = vrot.slane %v3214, 1
    %v3216 = vadd.f32 %v3214, %v3215
    %v3217 = vmul.f32 %v3167, 0.0625
    %v3218 = vmul.f32 %v3174, 0.0625
    %v3219 = vmul.f32 %v3181, 0.0625
    %v3220 = vmul.f32 %v3188, 0.0625
    %v3221 = vmul.f32 %v3195, 0.0625
    %v3222 = vmul.f32 %v3202, 0.0625
    %v3223 = vmul.f32 %v3209, 0.0625
    %v3224 = vmul.f32 %v3216, 0.0625
    %v3225 = vmul.f32 %v2893, %v2893
    %v3226 = vmul.f32 %v2895, %v2895
    %v3227 = vmul.f32 %v2979, %v2979
    %v3228 = vmul.f32 %v2981, %v2981
    %v3229 = vmul.f32 %v3065, %v3065
    %v3230 = vmul.f32 %v3067, %v3067
    %v3231 = vmul.f32 %v3151, %v3151
    %v3232 = vmul.f32 %v3153, %v3153
    %v3233 = vmul.f32 %v2897, %v2897
    %v3234 = vmul.f32 %v2899, %v2899
    %v3235 = vmul.f32 %v2983, %v2983
    %v3236 = vmul.f32 %v2985, %v2985
    %v3237 = vmul.f32 %v3069, %v3069
    %v3238 = vmul.f32 %v3071, %v3071
    %v3239 = vmul.f32 %v3155, %v3155
    %v3240 = vmul.f32 %v3157, %v3157
    %v3241 = vadd.f32 %v3225, %v3233
    %v3242 = vrot.slane %v3241, 4
    %v3243 = vadd.f32 %v3241, %v3242
    %v3244 = vrot.slane %v3243, 2
    %v3245 = vadd.f32 %v3243, %v3244
    %v3246 = vrot.slane %v3245, 1
    %v3247 = vadd.f32 %v3245, %v3246
    %v3248 = vadd.f32 %v3226, %v3234
    %v3249 = vrot.slane %v3248, 4
    %v3250 = vadd.f32 %v3248, %v3249
    %v3251 = vrot.slane %v3250, 2
    %v3252 = vadd.f32 %v3250, %v3251
    %v3253 = vrot.slane %v3252, 1
    %v3254 = vadd.f32 %v3252, %v3253
    %v3255 = vadd.f32 %v3227, %v3235
    %v3256 = vrot.slane %v3255, 4
    %v3257 = vadd.f32 %v3255, %v3256
    %v3258 = vrot.slane %v3257, 2
    %v3259 = vadd.f32 %v3257, %v3258
    %v3260 = vrot.slane %v3259, 1
    %v3261 = vadd.f32 %v3259, %v3260
    %v3262 = vadd.f32 %v3228, %v3236
    %v3263 = vrot.slane %v3262, 4
    %v3264 = vadd.f32 %v3262, %v3263
    %v3265 = vrot.slane %v3264, 2
    %v3266 = vadd.f32 %v3264, %v3265
    %v3267 = vrot.slane %v3266, 1
    %v3268 = vadd.f32 %v3266, %v3267
    %v3269 = vadd.f32 %v3229, %v3237
    %v3270 = vrot.slane %v3269, 4
    %v3271 = vadd.f32 %v3269, %v3270
    %v3272 = vrot.slane %v3271, 2
    %v3273 = vadd.f32 %v3271, %v3272
    %v3274 = vrot.slane %v3273, 1
    %v3275 = vadd.f32 %v3273, %v3274
    %v3276 = vadd.f32 %v3230, %v3238
    %v3277 = vrot.slane %v3276, 4
    %v3278 = vadd.f32 %v3276, %v3277
    %v3279 = vrot.slane %v3278, 2
    %v3280 = vadd.f32 %v3278, %v3279
    %v3281 = vrot.slane %v3280, 1
    %v3282 = vadd.f32 %v3280, %v3281
    %v3283 = vadd.f32 %v3231, %v3239
    %v3284 = vrot.slane %v3283, 4
    %v3285 = vadd.f32 %v3283, %v3284
    %v3286 = vrot.slane %v3285, 2
    %v3287 = vadd.f32 %v3285, %v3286
    %v3288 = vrot.slane %v3287, 1
    %v3289 = vadd.f32 %v3287, %v3288
    %v3290 = vadd.f32 %v3232, %v3240
    %v3291 = vrot.slane %v3290, 4
    %v3292 = vadd.f32 %v3290, %v3291
    %v3293 = vrot.slane %v3292, 2
    %v3294 = vadd.f32 %v3292, %v3293
    %v3295 = vrot.slane %v3294, 1
    %v3296 = vadd.f32 %v3294, %v3295
    %v3297 = vmul.f32 %v3247, 0.0625
    %v3298 = vmul.f32 %v3254, 0.0625
    %v3299 = vmul.f32 %v3261, 0.0625
    %v3300 = vmul.f32 %v3268, 0.0625
    %v3301 = vmul.f32 %v3275, 0.0625
    %v3302 = vmul.f32 %v3282, 0.0625
    %v3303 = vmul.f32 %v3289, 0.0625
    %v3304 = vmul.f32 %v3296, 0.0625
    %v3305 = vmul.f32 %v3217, %v3217
    %v3306 = vmul.f32 %v3218, %v3218
    %v3307 = vmul.f32 %v3219, %v3219
    %v3308 = vmul.f32 %v3220, %v3220
    %v3309 = vmul.f32 %v3221, %v3221
    %v3310 = vmul.f32 %v3222, %v3222
    %v3311 = vmul.f32 %v3223, %v3223
    %v3312 = vmul.f32 %v3224, %v3224
    %v3313 = vsub.f32 %v3297, %v3305
    %v3314 = vsub.f32 %v3298, %v3306
    %v3315 = vsub.f32 %v3299, %v3307
    %v3316 = vsub.f32 %v3300, %v3308
    %v3317 = vsub.f32 %v3301, %v3309
    %v3318 = vsub.f32 %v3302, %v3310
    %v3319 = vsub.f32 %v3303, %v3311
    %v3320 = vsub.f32 %v3304, %v3312
    %v3321 = vadd.f32 %v3313, 0.8
    %v3322 = vadd.f32 %v3314, 0.8
    %v3323 = vadd.f32 %v3315, 0.8
    %v3324 = vadd.f32 %v3316, 0.8
    %v3325 = vadd.f32 %v3317, 0.8
    %v3326 = vadd.f32 %v3318, 0.8
    %v3327 = vadd.f32 %v3319, 0.8
    %v3328 = vadd.f32 %v3320, 0.8
    %v3329 = vrsqrt.pop %v3321
    %v3330 = vrsqrt.pop %v3322
    %v3331 = vrsqrt.pop %v3323
    %v3332 = vrsqrt.pop %v3324
    %v3333 = vrsqrt.pop %v3325
    %v3334 = vrsqrt.pop %v3326
    %v3335 = vrsqrt.pop %v3327
    %v3336 = vrsqrt.pop %v3328
    %v3345 = vcombine.low %v3329, %v3330
    %v3346 = vcombine.low %v3331, %v3332
    %v3347 = vcombine.low %v3333, %v3334
    %v3348 = vcombine.low %v3335, %v3336
    %v3350 = vunpack.c.l.s4 1966171168
    %v3351 = vunpack.c.0.s8 %v3350
    %v3352 = vlaneseq
    %v3353 = vshrl.u32 %v3352, 7
    %v3354 = vsub.s32 %v3351, %v3353
    %v3355 = vrot.slane %v3345, %v3354
    %v3357 = vunpack.c.l.s4 1966171168
    %v3358 = vunpack.c.0.s8 %v3357
    %v3359 = vlaneseq
    %v3360 = vshrl.u32 %v3359, 7
    %v3361 = vsub.s32 %v3358, %v3360
    %v3362 = vrot.slane %v3346, %v3361
    %v3364 = vunpack.c.l.s4 1966171168
    %v3365 = vunpack.c.0.s8 %v3364
    %v3366 = vlaneseq
    %v3367 = vshrl.u32 %v3366, 7
    %v3368 = vsub.s32 %v3365, %v3367
    %v3369 = vrot.slane %v3347, %v3368
    %v3371 = vunpack.c.l.s4 1966171168
    %v3372 = vunpack.c.0.s8 %v3371
    %v3373 = vlaneseq
    %v3374 = vshrl.u32 %v3373, 7
    %v3375 = vsub.s32 %v3372, %v3374
    %v3376 = vrot.slane %v3348, %v3375
    %v3377 = vcombine.low %v3355, %v3362
    %v3378 = vcombine.low %v3369, %v3376
    %v3380 = vunpack.c.l.s4 1966171168
    %v3381 = vunpack.c.0.s8 %v3380
    %v3382 = vlaneseq
    %v3383 = vshrl.u32 %v3382, 7
    %v3384 = vsub.s32 %v3381, %v3383
    %v3385 = vrot.slane %v3377, %v3384
    %v3387 = vunpack.c.l.s4 1966171168
    %v3388 = vunpack.c.0.s8 %v3387
    %v3389 = vlaneseq
    %v3390 = vshrl.u32 %v3389, 7
    %v3391 = vsub.s32 %v3388, %v3390
    %v3392 = vrot.slane %v3378, %v3391
    %v3393 = vcombine.low %v3385, %v3392
    %v3395 = vmul.f32 %v3159, %v3393
    %v3397 = vlaneseq
    %v3398 = vshrl.u32 %v3397, 7
    %v3399 = vsub.s32 0, %v3398
    %v3400 = vrot.slane %v3395, %v3399
    %v3401 = vlaneseq
    %v3402 = vshrl.u32 %v3401, 7
    %v3403 = vsub.s32 1, %v3402
    %v3404 = vrot.slane %v3395, %v3403
    %v3405 = vlaneseq
    %v3406 = vshrl.u32 %v3405, 7
    %v3407 = vsub.s32 2, %v3406
    %v3408 = vrot.slane %v3395, %v3407
    %v3409 = vlaneseq
    %v3410 = vshrl.u32 %v3409, 7
    %v3411 = vsub.s32 3, %v3410
    %v3412 = vrot.slane %v3395, %v3411
    %v3413 = vlaneseq
    %v3414 = vshrl.u32 %v3413, 7
    %v3415 = vsub.s32 4, %v3414
    %v3416 = vrot.slane %v3395, %v3415
    %v3417 = vlaneseq
    %v3418 = vshrl.u32 %v3417, 7
    %v3419 = vsub.s32 5, %v3418
    %v3420 = vrot.slane %v3395, %v3419
    %v3421 = vlaneseq
    %v3422 = vshrl.u32 %v3421, 7
    %v3423 = vsub.s32 6, %v3422
    %v3424 = vrot.slane %v3395, %v3423
    %v3425 = vlaneseq
    %v3426 = vshrl.u32 %v3425, 7
    %v3427 = vsub.s32 7, %v3426
    %v3428 = vrot.slane %v3395, %v3427
    %v3437 = vmul.f32 %v3217, %v3400
    %v3438 = vmul.f32 %v3218, %v3404
    %v3439 = vmul.f32 %v3219, %v3408
    %v3440 = vmul.f32 %v3220, %v3412
    %v3441 = vmul.f32 %v3221, %v3416
    %v3442 = vmul.f32 %v3222, %v3420
    %v3443 = vmul.f32 %v3223, %v3424
    %v3444 = vmul.f32 %v3224, %v3428
    %v3453 = vcombine.low %v3437, %v3438
    %v3454 = vcombine.low %v3439, %v3440
    %v3455 = vcombine.low %v3441, %v3442
    %v3456 = vcombine.low %v3443, %v3444
    %v3458 = vunpack.c.l.s4 1966171168
    %v3459 = vunpack.c.0.s8 %v3458
    %v3460 = vlaneseq
    %v3461 = vshrl.u32 %v3460, 7
    %v3462 = vsub.s32 %v3459, %v3461
    %v3463 = vrot.slane %v3453, %v3462
    %v3465 = vunpack.c.l.s4 1966171168
    %v3466 = vunpack.c.0.s8 %v3465
    %v3467 = vlaneseq
    %v3468 = vshrl.u32 %v3467, 7
    %v3469 = vsub.s32 %v3466, %v3468
    %v3470 = vrot.slane %v3454, %v3469
    %v3472 = vunpack.c.l.s4 1966171168
    %v3473 = vunpack.c.0.s8 %v3472
    %v3474 = vlaneseq
    %v3475 = vshrl.u32 %v3474, 7
    %v3476 = vsub.s32 %v3473, %v3475
    %v3477 = vrot.slane %v3455, %v3476
    %v3479 = vunpack.c.l.s4 1966171168
    %v3480 = vunpack.c.0.s8 %v3479
    %v3481 = vlaneseq
    %v3482 = vshrl.u32 %v3481, 7
    %v3483 = vsub.s32 %v3480, %v3482
    %v3484 = vrot.slane %v3456, %v3483
    %v3485 = vcombine.low %v3463, %v3470
    %v3486 = vcombine.low %v3477, %v3484
    %v3488 = vunpack.c.l.s4 1966171168
    %v3489 = vunpack.c.0.s8 %v3488
    %v3490 = vlaneseq
    %v3491 = vshrl.u32 %v3490, 7
    %v3492 = vsub.s32 %v3489, %v3491
    %v3493 = vrot.slane %v3485, %v3492
    %v3495 = vunpack.c.l.s4 1966171168
    %v3496 = vunpack.c.0.s8 %v3495
    %v3497 = vlaneseq
    %v3498 = vshrl.u32 %v3497, 7
    %v3499 = vsub.s32 %v3496, %v3498
    %v3500 = vrot.slane %v3486, %v3499
    %v3501 = vcombine.low %v3493, %v3500
    %v3503 = vsub.f32 %v3160, %v3501
    %v3504 = vmul.f32 %v2893, %v3400
    %v3505 = vmul.f32 %v2895, %v3404
    %v3506 = vmul.f32 %v2979, %v3408
    %v3507 = vmul.f32 %v2981, %v3412
    %v3508 = vmul.f32 %v3065, %v3416
    %v3509 = vmul.f32 %v3067, %v3420
    %v3510 = vmul.f32 %v3151, %v3424
    %v3511 = vmul.f32 %v3153, %v3428
    %v3512 = vmul.f32 %v2897, %v3400
    %v3513 = vmul.f32 %v2899, %v3404
    %v3514 = vmul.f32 %v2983, %v3408
    %v3515 = vmul.f32 %v2985, %v3412
    %v3516 = vmul.f32 %v3069, %v3416
    %v3517 = vmul.f32 %v3071, %v3420
    %v3518 = vmul.f32 %v3155, %v3424
    %v3519 = vmul.f32 %v3157, %v3428
    %v3521 = vlaneseq
    %v3522 = vshrl.u32 %v3521, 7
    %v3523 = vsub.s32 0, %v3522
    %v3524 = vrot.slane %v3503, %v3523
    %v3525 = vlaneseq
    %v3526 = vshrl.u32 %v3525, 7
    %v3527 = vsub.s32 1, %v3526
    %v3528 = vrot.slane %v3503, %v3527
    %v3529 = vlaneseq
    %v3530 = vshrl.u32 %v3529, 7
    %v3531 = vsub.s32 2, %v3530
    %v3532 = vrot.slane %v3503, %v3531
    %v3533 = vlaneseq
    %v3534 = vshrl.u32 %v3533, 7
    %v3535 = vsub.s32 3, %v3534
    %v3536 = vrot.slane %v3503, %v3535
    %v3537 = vlaneseq
    %v3538 = vshrl.u32 %v3537, 7
    %v3539 = vsub.s32 4, %v3538
    %v3540 = vrot.slane %v3503, %v3539
    %v3541 = vlaneseq
    %v3542 = vshrl.u32 %v3541, 7
    %v3543 = vsub.s32 5, %v3542
    %v3544 = vrot.slane %v3503, %v3543
    %v3545 = vlaneseq
    %v3546 = vshrl.u32 %v3545, 7
    %v3547 = vsub.s32 6, %v3546
    %v3548 = vrot.slane %v3503, %v3547
    %v3549 = vlaneseq
    %v3550 = vshrl.u32 %v3549, 7
    %v3551 = vsub.s32 7, %v3550
    %v3552 = vrot.slane %v3503, %v3551
    %v3561 = vadd.f32 %v3504, %v3524
    %v3562 = vadd.f32 %v3505, %v3528
    %v3563 = vadd.f32 %v3506, %v3532
    %v3564 = vadd.f32 %v3507, %v3536
    %v3565 = vadd.f32 %v3508, %v3540
    %v3566 = vadd.f32 %v3509, %v3544
    %v3567 = vadd.f32 %v3510, %v3548
    %v3568 = vadd.f32 %v3511, %v3552
    %v3569 = vadd.f32 %v3512, %v3524
    %v3570 = vadd.f32 %v3513, %v3528
    %v3571 = vadd.f32 %v3514, %v3532
    %v3572 = vadd.f32 %v3515, %v3536
    %v3573 = vadd.f32 %v3516, %v3540
    %v3574 = vadd.f32 %v3517, %v3544
    %v3575 = vadd.f32 %v3518, %v3548
    %v3576 = vadd.f32 %v3519, %v3552
    %vm3577 = vcmp.gt.f32.partialorder %v3561, 0.0
    %vm3578 = vcmp.gt.f32.partialorder %v3562, 0.0
    %vm3579 = vcmp.gt.f32.partialorder %v3563, 0.0
    %vm3580 = vcmp.gt.f32.partialorder %v3564, 0.0
    %vm3581 = vcmp.gt.f32.partialorder %v3565, 0.0
    %vm3582 = vcmp.gt.f32.partialorder %v3566, 0.0
    %vm3583 = vcmp.gt.f32.partialorder %v3567, 0.0
    %vm3584 = vcmp.gt.f32.partialorder %v3568, 0.0
    %vm3585 = vcmp.gt.f32.partialorder %v3569, 0.0
    %vm3586 = vcmp.gt.f32.partialorder %v3570, 0.0
    %vm3587 = vcmp.gt.f32.partialorder %v3571, 0.0
    %vm3588 = vcmp.gt.f32.partialorder %v3572, 0.0
    %vm3589 = vcmp.gt.f32.partialorder %v3573, 0.0
    %vm3590 = vcmp.gt.f32.partialorder %v3574, 0.0
    %vm3591 = vcmp.gt.f32.partialorder %v3575, 0.0
    %vm3592 = vcmp.gt.f32.partialorder %v3576, 0.0
    %v3593 = vmul.f32 %v3561, 0.2
    %v3594 = vmul.f32 %v3562, 0.2
    %v3595 = vmul.f32 %v3563, 0.2
    %v3596 = vmul.f32 %v3564, 0.2
    %v3597 = vmul.f32 %v3565, 0.2
    %v3598 = vmul.f32 %v3566, 0.2
    %v3599 = vmul.f32 %v3567, 0.2
    %v3600 = vmul.f32 %v3568, 0.2
    %v3601 = vmul.f32 %v3569, 0.2
    %v3602 = vmul.f32 %v3570, 0.2
    %v3603 = vmul.f32 %v3571, 0.2
    %v3604 = vmul.f32 %v3572, 0.2
    %v3605 = vmul.f32 %v3573, 0.2
    %v3606 = vmul.f32 %v3574, 0.2
    %v3607 = vmul.f32 %v3575, 0.2
    %v3608 = vmul.f32 %v3576, 0.2
    %v3609 = vsel %vm3577, %v3561, %v3593
    %v3610 = vsel %vm3578, %v3562, %v3594
    %v3611 = vsel %vm3579, %v3563, %v3595
    %v3612 = vsel %vm3580, %v3564, %v3596
    %v3613 = vsel %vm3581, %v3565, %v3597
    %v3614 = vsel %vm3582, %v3566, %v3598
    %v3615 = vsel %vm3583, %v3567, %v3599
    %v3616 = vsel %vm3584, %v3568, %v3600
    %v3617 = vsel %vm3585, %v3569, %v3601
    %v3618 = vsel %vm3586, %v3570, %v3602
    %v3619 = vsel %vm3587, %v3571, %v3603
    %v3620 = vsel %vm3588, %v3572, %v3604
    %v3621 = vsel %vm3589, %v3573, %v3605
    %v3622 = vsel %vm3590, %v3574, %v3606
    %v3623 = vsel %vm3591, %v3575, %v3607
    %v3624 = vsel %vm3592, %v3576, %v3608
    %v3625 = vpack.c.bf16 %v3617, %v3609
    %v3626 = vpack.c.bf16 %v3618, %v3610
    %v3627 = vpack.c.bf16 %v3619, %v3611
    %v3628 = vpack.c.bf16 %v3620, %v3612
    %v3629 = vpack.c.bf16 %v3621, %v3613
    %v3630 = vpack.c.bf16 %v3622, %v3614
    %v3631 = vpack.c.bf16 %v3623, %v3615
    %v3632 = vpack.c.bf16 %v3624, %v3616
    %v3633 = vld [vmem:[#allocation21] sm:$0xff]
    %v3634 = vld [vmem:[#allocation21 + $0x8] sm:$0xff]
    %v3635 = vld [vmem:[#allocation21 + $0x10] sm:$0xff]
    %v3636 = vld [vmem:[#allocation21 + $0x18] sm:$0xff]
    %v3637 = vld [vmem:[#allocation21 + $0x20] sm:$0xff]
    %v3638 = vld [vmem:[#allocation21 + $0x28] sm:$0xff]
    %v3639 = vld [vmem:[#allocation21 + $0x30] sm:$0xff]
    %v3640 = vld [vmem:[#allocation21 + $0x38] sm:$0xff]
    %v3641 = vld [vmem:[#allocation21 + $0x40] sm:$0xff]
    %v3642 = vld [vmem:[#allocation21 + $0x48] sm:$0xff]
    %v3643 = vld [vmem:[#allocation21 + $0x50] sm:$0xff]
    %v3644 = vld [vmem:[#allocation21 + $0x58] sm:$0xff]
    %v3645 = vld [vmem:[#allocation21 + $0x60] sm:$0xff]
    %v3646 = vld [vmem:[#allocation21 + $0x68] sm:$0xff]
    %v3647 = vld [vmem:[#allocation21 + $0x70] sm:$0xff]
    %v3648 = vld [vmem:[#allocation21 + $0x78] sm:$0xff]
    %v3649 = vld [vmem:[#allocation21 + $0x80] sm:$0xff]
    %v3650 = vld [vmem:[#allocation21 + $0x88] sm:$0xff]
    %v3651 = vld [vmem:[#allocation21 + $0x90] sm:$0xff]
    %v3652 = vld [vmem:[#allocation21 + $0x98] sm:$0xff]
    %v3653 = vld [vmem:[#allocation21 + $0xa0] sm:$0xff]
    %v3654 = vld [vmem:[#allocation21 + $0xa8] sm:$0xff]
    %v3655 = vld [vmem:[#allocation21 + $0xb0] sm:$0xff]
    %v3656 = vld [vmem:[#allocation21 + $0xb8] sm:$0xff]
    %v3657 = vld [vmem:[#allocation21 + $0xc0] sm:$0xff]
    %v3658 = vld [vmem:[#allocation21 + $0xc8] sm:$0xff]
    %v3659 = vld [vmem:[#allocation21 + $0xd0] sm:$0xff]
    %v3660 = vld [vmem:[#allocation21 + $0xd8] sm:$0xff]
    %v3661 = vld [vmem:[#allocation21 + $0xe0] sm:$0xff]
    %v3662 = vld [vmem:[#allocation21 + $0xe8] sm:$0xff]
    %v3663 = vld [vmem:[#allocation21 + $0xf0] sm:$0xff]
    %v3664 = vld [vmem:[#allocation21 + $0xf8] sm:$0xff]
    %v3665 = vld [vmem:[#allocation21 + $0x100] sm:$0xff]
    %v3666 = vld [vmem:[#allocation21 + $0x108] sm:$0xff]
    %v3667 = vld [vmem:[#allocation21 + $0x110] sm:$0xff]
    %v3668 = vld [vmem:[#allocation21 + $0x118] sm:$0xff]
    %v3669 = vld [vmem:[#allocation21 + $0x120] sm:$0xff]
    %v3670 = vld [vmem:[#allocation21 + $0x128] sm:$0xff]
    %v3671 = vld [vmem:[#allocation21 + $0x130] sm:$0xff]
    %v3672 = vld [vmem:[#allocation21 + $0x138] sm:$0xff]
    %v3673 = vld [vmem:[#allocation21 + $0x140] sm:$0xff]
    %v3674 = vld [vmem:[#allocation21 + $0x148] sm:$0xff]
    %v3675 = vld [vmem:[#allocation21 + $0x150] sm:$0xff]
    %v3676 = vld [vmem:[#allocation21 + $0x158] sm:$0xff]
    %v3677 = vld [vmem:[#allocation21 + $0x160] sm:$0xff]
    %v3678 = vld [vmem:[#allocation21 + $0x168] sm:$0xff]
    %v3679 = vld [vmem:[#allocation21 + $0x170] sm:$0xff]
    %v3680 = vld [vmem:[#allocation21 + $0x178] sm:$0xff]
    %v3681 = vld [vmem:[#allocation21 + $0x180] sm:$0xff]
    %v3682 = vld [vmem:[#allocation21 + $0x188] sm:$0xff]
    %v3683 = vld [vmem:[#allocation21 + $0x190] sm:$0xff]
    %v3684 = vld [vmem:[#allocation21 + $0x198] sm:$0xff]
    %v3685 = vld [vmem:[#allocation21 + $0x1a0] sm:$0xff]
    %v3686 = vld [vmem:[#allocation21 + $0x1a8] sm:$0xff]
    %v3687 = vld [vmem:[#allocation21 + $0x1b0] sm:$0xff]
    %v3688 = vld [vmem:[#allocation21 + $0x1b8] sm:$0xff]
    %v3689 = vld [vmem:[#allocation21 + $0x1c0] sm:$0xff]
    %v3690 = vld [vmem:[#allocation21 + $0x1c8] sm:$0xff]
    %v3691 = vld [vmem:[#allocation21 + $0x1d0] sm:$0xff]
    %v3692 = vld [vmem:[#allocation21 + $0x1d8] sm:$0xff]
    %v3693 = vld [vmem:[#allocation21 + $0x1e0] sm:$0xff]
    %v3694 = vld [vmem:[#allocation21 + $0x1e8] sm:$0xff]
    %v3695 = vld [vmem:[#allocation21 + $0x1f0] sm:$0xff]
    %v3696 = vld [vmem:[#allocation21 + $0x1f8] sm:$0xff]
    %v3697 = vld [vmem:[#allocation21 + $0x200] sm:$0xff]
    %v3698 = vld [vmem:[#allocation21 + $0x208] sm:$0xff]
    %v3699 = vld [vmem:[#allocation21 + $0x210] sm:$0xff]
    %v3700 = vld [vmem:[#allocation21 + $0x218] sm:$0xff]
    %v3701 = vld [vmem:[#allocation21 + $0x220] sm:$0xff]
    %v3702 = vld [vmem:[#allocation21 + $0x228] sm:$0xff]
    %v3703 = vld [vmem:[#allocation21 + $0x230] sm:$0xff]
    %v3704 = vld [vmem:[#allocation21 + $0x238] sm:$0xff]
    %v3705 = vld [vmem:[#allocation21 + $0x240] sm:$0xff]
    %v3706 = vld [vmem:[#allocation21 + $0x248] sm:$0xff]
    %v3707 = vld [vmem:[#allocation21 + $0x250] sm:$0xff]
    %v3708 = vld [vmem:[#allocation21 + $0x258] sm:$0xff]
    %v3709 = vld [vmem:[#allocation21 + $0x260] sm:$0xff]
    %v3710 = vld [vmem:[#allocation21 + $0x268] sm:$0xff]
    %v3711 = vld [vmem:[#allocation21 + $0x270] sm:$0xff]
    %v3712 = vld [vmem:[#allocation21 + $0x278] sm:$0xff]
    %v3713 = vld [vmem:[#allocation21 + $0x280] sm:$0xff]
    %v3714 = vld [vmem:[#allocation21 + $0x288] sm:$0xff]
    %v3715 = vld [vmem:[#allocation21 + $0x290] sm:$0xff]
    %v3716 = vld [vmem:[#allocation21 + $0x298] sm:$0xff]
    %v3717 = vld [vmem:[#allocation21 + $0x2a0] sm:$0xff]
    %v3718 = vld [vmem:[#allocation21 + $0x2a8] sm:$0xff]
    %v3719 = vld [vmem:[#allocation21 + $0x2b0] sm:$0xff]
    %v3720 = vld [vmem:[#allocation21 + $0x2b8] sm:$0xff]
    %v3721 = vld [vmem:[#allocation21 + $0x2c0] sm:$0xff]
    %v3722 = vld [vmem:[#allocation21 + $0x2c8] sm:$0xff]
    %v3723 = vld [vmem:[#allocation21 + $0x2d0] sm:$0xff]
    %v3724 = vld [vmem:[#allocation21 + $0x2d8] sm:$0xff]
    %v3725 = vld [vmem:[#allocation21 + $0x2e0] sm:$0xff]
    %v3726 = vld [vmem:[#allocation21 + $0x2e8] sm:$0xff]
    %v3727 = vld [vmem:[#allocation21 + $0x2f0] sm:$0xff]
    %v3728 = vld [vmem:[#allocation21 + $0x2f8] sm:$0xff]
    %v3729 = vld [vmem:[#allocation21 + $0x300] sm:$0xff]
    %v3730 = vld [vmem:[#allocation21 + $0x308] sm:$0xff]
    %v3731 = vld [vmem:[#allocation21 + $0x310] sm:$0xff]
    %v3732 = vld [vmem:[#allocation21 + $0x318] sm:$0xff]
    %v3733 = vld [vmem:[#allocation21 + $0x320] sm:$0xff]
    %v3734 = vld [vmem:[#allocation21 + $0x328] sm:$0xff]
    %v3735 = vld [vmem:[#allocation21 + $0x330] sm:$0xff]
    %v3736 = vld [vmem:[#allocation21 + $0x338] sm:$0xff]
    %v3737 = vld [vmem:[#allocation21 + $0x340] sm:$0xff]
    %v3738 = vld [vmem:[#allocation21 + $0x348] sm:$0xff]
    %v3739 = vld [vmem:[#allocation21 + $0x350] sm:$0xff]
    %v3740 = vld [vmem:[#allocation21 + $0x358] sm:$0xff]
    %v3741 = vld [vmem:[#allocation21 + $0x360] sm:$0xff]
    %v3742 = vld [vmem:[#allocation21 + $0x368] sm:$0xff]
    %v3743 = vld [vmem:[#allocation21 + $0x370] sm:$0xff]
    %v3744 = vld [vmem:[#allocation21 + $0x378] sm:$0xff]
    %v3745 = vld [vmem:[#allocation21 + $0x380] sm:$0xff]
    %v3746 = vld [vmem:[#allocation21 + $0x388] sm:$0xff]
    %v3747 = vld [vmem:[#allocation21 + $0x390] sm:$0xff]
    %v3748 = vld [vmem:[#allocation21 + $0x398] sm:$0xff]
    %v3749 = vld [vmem:[#allocation21 + $0x3a0] sm:$0xff]
    %v3750 = vld [vmem:[#allocation21 + $0x3a8] sm:$0xff]
    %v3751 = vld [vmem:[#allocation21 + $0x3b0] sm:$0xff]
    %v3752 = vld [vmem:[#allocation21 + $0x3b8] sm:$0xff]
    %v3753 = vld [vmem:[#allocation21 + $0x3c0] sm:$0xff]
    %v3754 = vld [vmem:[#allocation21 + $0x3c8] sm:$0xff]
    %v3755 = vld [vmem:[#allocation21 + $0x3d0] sm:$0xff]
    %v3756 = vld [vmem:[#allocation21 + $0x3d8] sm:$0xff]
    %v3757 = vld [vmem:[#allocation21 + $0x3e0] sm:$0xff]
    %v3758 = vld [vmem:[#allocation21 + $0x3e8] sm:$0xff]
    %v3759 = vld [vmem:[#allocation21 + $0x3f0] sm:$0xff]
    %v3760 = vld [vmem:[#allocation21 + $0x3f8] sm:$0xff]
    %v3761 = vld [vmem:[#allocation21 + $0x400] sm:$0xff]
    %v3762 = vld [vmem:[#allocation21 + $0x408] sm:$0xff]
    %v3763 = vld [vmem:[#allocation21 + $0x410] sm:$0xff]
    %v3764 = vld [vmem:[#allocation21 + $0x418] sm:$0xff]
    %v3765 = vld [vmem:[#allocation21 + $0x420] sm:$0xff]
    %v3766 = vld [vmem:[#allocation21 + $0x428] sm:$0xff]
    %v3767 = vld [vmem:[#allocation21 + $0x430] sm:$0xff]
    %v3768 = vld [vmem:[#allocation21 + $0x438] sm:$0xff]
    %v3769 = vld [vmem:[#allocation21 + $0x440] sm:$0xff]
    %v3770 = vld [vmem:[#allocation21 + $0x448] sm:$0xff]
    %v3771 = vld [vmem:[#allocation21 + $0x450] sm:$0xff]
    %v3772 = vld [vmem:[#allocation21 + $0x458] sm:$0xff]
    %v3773 = vld [vmem:[#allocation21 + $0x460] sm:$0xff]
    %v3774 = vld [vmem:[#allocation21 + $0x468] sm:$0xff]
    %v3775 = vld [vmem:[#allocation21 + $0x470] sm:$0xff]
    %v3776 = vld [vmem:[#allocation21 + $0x478] sm:$0xff]
    %v3777 = vld [vmem:[#allocation21 + $0x480] sm:$0xff]
    %v3778 = vld [vmem:[#allocation21 + $0x488] sm:$0xff]
    %v3779 = vld [vmem:[#allocation21 + $0x490] sm:$0xff]
    %v3780 = vld [vmem:[#allocation21 + $0x498] sm:$0xff]
    %v3781 = vld [vmem:[#allocation21 + $0x4a0] sm:$0xff]
    %v3782 = vld [vmem:[#allocation21 + $0x4a8] sm:$0xff]
    %v3783 = vld [vmem:[#allocation21 + $0x4b0] sm:$0xff]
    %v3784 = vld [vmem:[#allocation21 + $0x4b8] sm:$0xff]
    %v3785 = vld [vmem:[#allocation21 + $0x4c0] sm:$0xff]
    %v3786 = vld [vmem:[#allocation21 + $0x4c8] sm:$0xff]
    %v3787 = vld [vmem:[#allocation21 + $0x4d0] sm:$0xff]
    %v3788 = vld [vmem:[#allocation21 + $0x4d8] sm:$0xff]
    %v3789 = vld [vmem:[#allocation21 + $0x4e0] sm:$0xff]
    %v3790 = vld [vmem:[#allocation21 + $0x4e8] sm:$0xff]
    %v3791 = vld [vmem:[#allocation21 + $0x4f0] sm:$0xff]
    %v3792 = vld [vmem:[#allocation21 + $0x4f8] sm:$0xff]
    %v3793 = vld [vmem:[#allocation21 + $0x500] sm:$0xff]
    %v3794 = vld [vmem:[#allocation21 + $0x508] sm:$0xff]
    %v3795 = vld [vmem:[#allocation21 + $0x510] sm:$0xff]
    %v3796 = vld [vmem:[#allocation21 + $0x518] sm:$0xff]
    %v3797 = vld [vmem:[#allocation21 + $0x520] sm:$0xff]
    %v3798 = vld [vmem:[#allocation21 + $0x528] sm:$0xff]
    %v3799 = vld [vmem:[#allocation21 + $0x530] sm:$0xff]
    %v3800 = vld [vmem:[#allocation21 + $0x538] sm:$0xff]
    %v3801 = vld [vmem:[#allocation21 + $0x540] sm:$0xff]
    %v3802 = vld [vmem:[#allocation21 + $0x548] sm:$0xff]
    %v3803 = vld [vmem:[#allocation21 + $0x550] sm:$0xff]
    %v3804 = vld [vmem:[#allocation21 + $0x558] sm:$0xff]
    %v3805 = vld [vmem:[#allocation21 + $0x560] sm:$0xff]
    %v3806 = vld [vmem:[#allocation21 + $0x568] sm:$0xff]
    %v3807 = vld [vmem:[#allocation21 + $0x570] sm:$0xff]
    %v3808 = vld [vmem:[#allocation21 + $0x578] sm:$0xff]
    %v3809 = vld [vmem:[#allocation21 + $0x580] sm:$0xff]
    %v3810 = vld [vmem:[#allocation21 + $0x588] sm:$0xff]
    %v3811 = vld [vmem:[#allocation21 + $0x590] sm:$0xff]
    %v3812 = vld [vmem:[#allocation21 + $0x598] sm:$0xff]
    %v3813 = vld [vmem:[#allocation21 + $0x5a0] sm:$0xff]
    %v3814 = vld [vmem:[#allocation21 + $0x5a8] sm:$0xff]
    %v3815 = vld [vmem:[#allocation21 + $0x5b0] sm:$0xff]
    %v3816 = vld [vmem:[#allocation21 + $0x5b8] sm:$0xff]
    %v3817 = vld [vmem:[#allocation21 + $0x5c0] sm:$0xff]
    %v3818 = vld [vmem:[#allocation21 + $0x5c8] sm:$0xff]
    %v3819 = vld [vmem:[#allocation21 + $0x5d0] sm:$0xff]
    %v3820 = vld [vmem:[#allocation21 + $0x5d8] sm:$0xff]
    %v3821 = vld [vmem:[#allocation21 + $0x5e0] sm:$0xff]
    %v3822 = vld [vmem:[#allocation21 + $0x5e8] sm:$0xff]
    %v3823 = vld [vmem:[#allocation21 + $0x5f0] sm:$0xff]
    %v3824 = vld [vmem:[#allocation21 + $0x5f8] sm:$0xff]
    %v3825 = vld [vmem:[#allocation21 + $0x600] sm:$0xff]
    %v3826 = vld [vmem:[#allocation21 + $0x608] sm:$0xff]
    %v3827 = vld [vmem:[#allocation21 + $0x610] sm:$0xff]
    %v3828 = vld [vmem:[#allocation21 + $0x618] sm:$0xff]
    %v3829 = vld [vmem:[#allocation21 + $0x620] sm:$0xff]
    %v3830 = vld [vmem:[#allocation21 + $0x628] sm:$0xff]
    %v3831 = vld [vmem:[#allocation21 + $0x630] sm:$0xff]
    %v3832 = vld [vmem:[#allocation21 + $0x638] sm:$0xff]
    %v3833 = vld [vmem:[#allocation21 + $0x640] sm:$0xff]
    %v3834 = vld [vmem:[#allocation21 + $0x648] sm:$0xff]
    %v3835 = vld [vmem:[#allocation21 + $0x650] sm:$0xff]
    %v3836 = vld [vmem:[#allocation21 + $0x658] sm:$0xff]
    %v3837 = vld [vmem:[#allocation21 + $0x660] sm:$0xff]
    %v3838 = vld [vmem:[#allocation21 + $0x668] sm:$0xff]
    %v3839 = vld [vmem:[#allocation21 + $0x670] sm:$0xff]
    %v3840 = vld [vmem:[#allocation21 + $0x678] sm:$0xff]
    %v3841 = vld [vmem:[#allocation21 + $0x680] sm:$0xff]
    %v3842 = vld [vmem:[#allocation21 + $0x688] sm:$0xff]
    %v3843 = vld [vmem:[#allocation21 + $0x690] sm:$0xff]
    %v3844 = vld [vmem:[#allocation21 + $0x698] sm:$0xff]
    %v3845 = vld [vmem:[#allocation21 + $0x6a0] sm:$0xff]
    %v3846 = vld [vmem:[#allocation21 + $0x6a8] sm:$0xff]
    %v3847 = vld [vmem:[#allocation21 + $0x6b0] sm:$0xff]
    %v3848 = vld [vmem:[#allocation21 + $0x6b8] sm:$0xff]
    %v3849 = vld [vmem:[#allocation21 + $0x6c0] sm:$0xff]
    %v3850 = vld [vmem:[#allocation21 + $0x6c8] sm:$0xff]
    %v3851 = vld [vmem:[#allocation21 + $0x6d0] sm:$0xff]
    %v3852 = vld [vmem:[#allocation21 + $0x6d8] sm:$0xff]
    %v3853 = vld [vmem:[#allocation21 + $0x6e0] sm:$0xff]
    %v3854 = vld [vmem:[#allocation21 + $0x6e8] sm:$0xff]
    %v3855 = vld [vmem:[#allocation21 + $0x6f0] sm:$0xff]
    %v3856 = vld [vmem:[#allocation21 + $0x6f8] sm:$0xff]
    %v3857 = vld [vmem:[#allocation21 + $0x700] sm:$0xff]
    %v3858 = vld [vmem:[#allocation21 + $0x708] sm:$0xff]
    %v3859 = vld [vmem:[#allocation21 + $0x710] sm:$0xff]
    %v3860 = vld [vmem:[#allocation21 + $0x718] sm:$0xff]
    %v3861 = vld [vmem:[#allocation21 + $0x720] sm:$0xff]
    %v3862 = vld [vmem:[#allocation21 + $0x728] sm:$0xff]
    %v3863 = vld [vmem:[#allocation21 + $0x730] sm:$0xff]
    %v3864 = vld [vmem:[#allocation21 + $0x738] sm:$0xff]
    %v3865 = vld [vmem:[#allocation21 + $0x740] sm:$0xff]
    %v3866 = vld [vmem:[#allocation21 + $0x748] sm:$0xff]
    %v3867 = vld [vmem:[#allocation21 + $0x750] sm:$0xff]
    %v3868 = vld [vmem:[#allocation21 + $0x758] sm:$0xff]
    %v3869 = vld [vmem:[#allocation21 + $0x760] sm:$0xff]
    %v3870 = vld [vmem:[#allocation21 + $0x768] sm:$0xff]
    %v3871 = vld [vmem:[#allocation21 + $0x770] sm:$0xff]
    %v3872 = vld [vmem:[#allocation21 + $0x778] sm:$0xff]
    %v3873 = vld [vmem:[#allocation21 + $0x780] sm:$0xff]
    %v3874 = vld [vmem:[#allocation21 + $0x788] sm:$0xff]
    %v3875 = vld [vmem:[#allocation21 + $0x790] sm:$0xff]
    %v3876 = vld [vmem:[#allocation21 + $0x798] sm:$0xff]
    %v3877 = vld [vmem:[#allocation21 + $0x7a0] sm:$0xff]
    %v3878 = vld [vmem:[#allocation21 + $0x7a8] sm:$0xff]
    %v3879 = vld [vmem:[#allocation21 + $0x7b0] sm:$0xff]
    %v3880 = vld [vmem:[#allocation21 + $0x7b8] sm:$0xff]
    %v3881 = vld [vmem:[#allocation21 + $0x7c0] sm:$0xff]
    %v3882 = vld [vmem:[#allocation21 + $0x7c8] sm:$0xff]
    %v3883 = vld [vmem:[#allocation21 + $0x7d0] sm:$0xff]
    %v3884 = vld [vmem:[#allocation21 + $0x7d8] sm:$0xff]
    %v3885 = vld [vmem:[#allocation21 + $0x7e0] sm:$0xff]
    %v3886 = vld [vmem:[#allocation21 + $0x7e8] sm:$0xff]
    %v3887 = vld [vmem:[#allocation21 + $0x7f0] sm:$0xff]
    %v3888 = vld [vmem:[#allocation21 + $0x7f8] sm:$0xff]
    %v3889 = vld [vmem:[#allocation21 + $0x800] sm:$0xff]
    %v3890 = vld [vmem:[#allocation21 + $0x808] sm:$0xff]
    %v3891 = vld [vmem:[#allocation21 + $0x810] sm:$0xff]
    %v3892 = vld [vmem:[#allocation21 + $0x818] sm:$0xff]
    %v3893 = vld [vmem:[#allocation21 + $0x820] sm:$0xff]
    %v3894 = vld [vmem:[#allocation21 + $0x828] sm:$0xff]
    %v3895 = vld [vmem:[#allocation21 + $0x830] sm:$0xff]
    %v3896 = vld [vmem:[#allocation21 + $0x838] sm:$0xff]
    %v3897 = vld [vmem:[#allocation21 + $0x840] sm:$0xff]
    %v3898 = vld [vmem:[#allocation21 + $0x848] sm:$0xff]
    %v3899 = vld [vmem:[#allocation21 + $0x850] sm:$0xff]
    %v3900 = vld [vmem:[#allocation21 + $0x858] sm:$0xff]
    %v3901 = vld [vmem:[#allocation21 + $0x860] sm:$0xff]
    %v3902 = vld [vmem:[#allocation21 + $0x868] sm:$0xff]
    %v3903 = vld [vmem:[#allocation21 + $0x870] sm:$0xff]
    %v3904 = vld [vmem:[#allocation21 + $0x878] sm:$0xff]
    %v3905 = vld [vmem:[#allocation21 + $0x880] sm:$0xff]
    %v3906 = vld [vmem:[#allocation21 + $0x888] sm:$0xff]
    %v3907 = vld [vmem:[#allocation21 + $0x890] sm:$0xff]
    %v3908 = vld [vmem:[#allocation21 + $0x898] sm:$0xff]
    %v3909 = vld [vmem:[#allocation21 + $0x8a0] sm:$0xff]
    %v3910 = vld [vmem:[#allocation21 + $0x8a8] sm:$0xff]
    %v3911 = vld [vmem:[#allocation21 + $0x8b0] sm:$0xff]
    %v3912 = vld [vmem:[#allocation21 + $0x8b8] sm:$0xff]
    %v3913 = vld [vmem:[#allocation21 + $0x8c0] sm:$0xff]
    %v3914 = vld [vmem:[#allocation21 + $0x8c8] sm:$0xff]
    %v3915 = vld [vmem:[#allocation21 + $0x8d0] sm:$0xff]
    %v3916 = vld [vmem:[#allocation21 + $0x8d8] sm:$0xff]
    %v3917 = vld [vmem:[#allocation21 + $0x8e0] sm:$0xff]
    %v3918 = vld [vmem:[#allocation21 + $0x8e8] sm:$0xff]
    %v3919 = vld [vmem:[#allocation21 + $0x8f0] sm:$0xff]
    %v3920 = vld [vmem:[#allocation21 + $0x8f8] sm:$0xff]
    %v3921 = vld [vmem:[#allocation21 + $0x900] sm:$0xff]
    %v3922 = vld [vmem:[#allocation21 + $0x908] sm:$0xff]
    %v3923 = vld [vmem:[#allocation21 + $0x910] sm:$0xff]
    %v3924 = vld [vmem:[#allocation21 + $0x918] sm:$0xff]
    %v3925 = vld [vmem:[#allocation21 + $0x920] sm:$0xff]
    %v3926 = vld [vmem:[#allocation21 + $0x928] sm:$0xff]
    %v3927 = vld [vmem:[#allocation21 + $0x930] sm:$0xff]
    %v3928 = vld [vmem:[#allocation21 + $0x938] sm:$0xff]
    %v3929 = vld [vmem:[#allocation21 + $0x940] sm:$0xff]
    %v3930 = vld [vmem:[#allocation21 + $0x948] sm:$0xff]
    %v3931 = vld [vmem:[#allocation21 + $0x950] sm:$0xff]
    %v3932 = vld [vmem:[#allocation21 + $0x958] sm:$0xff]
    %v3933 = vld [vmem:[#allocation21 + $0x960] sm:$0xff]
    %v3934 = vld [vmem:[#allocation21 + $0x968] sm:$0xff]
    %v3935 = vld [vmem:[#allocation21 + $0x970] sm:$0xff]
    %v3936 = vld [vmem:[#allocation21 + $0x978] sm:$0xff]
    %v3937 = vld [vmem:[#allocation21 + $0x980] sm:$0xff]
    %v3938 = vld [vmem:[#allocation21 + $0x988] sm:$0xff]
    %v3939 = vld [vmem:[#allocation21 + $0x990] sm:$0xff]
    %v3940 = vld [vmem:[#allocation21 + $0x998] sm:$0xff]
    %v3941 = vld [vmem:[#allocation21 + $0x9a0] sm:$0xff]
    %v3942 = vld [vmem:[#allocation21 + $0x9a8] sm:$0xff]
    %v3943 = vld [vmem:[#allocation21 + $0x9b0] sm:$0xff]
    %v3944 = vld [vmem:[#allocation21 + $0x9b8] sm:$0xff]
    %v3945 = vld [vmem:[#allocation21 + $0x9c0] sm:$0xff]
    %v3946 = vld [vmem:[#allocation21 + $0x9c8] sm:$0xff]
    %v3947 = vld [vmem:[#allocation21 + $0x9d0] sm:$0xff]
    %v3948 = vld [vmem:[#allocation21 + $0x9d8] sm:$0xff]
    %v3949 = vld [vmem:[#allocation21 + $0x9e0] sm:$0xff]
    %v3950 = vld [vmem:[#allocation21 + $0x9e8] sm:$0xff]
    %v3951 = vld [vmem:[#allocation21 + $0x9f0] sm:$0xff]
    %v3952 = vld [vmem:[#allocation21 + $0x9f8] sm:$0xff]
    %v3953 = vld [vmem:[#allocation21 + $0xa00] sm:$0xff]
    %v3954 = vld [vmem:[#allocation21 + $0xa08] sm:$0xff]
    %v3955 = vld [vmem:[#allocation21 + $0xa10] sm:$0xff]
    %v3956 = vld [vmem:[#allocation21 + $0xa18] sm:$0xff]
    %v3957 = vld [vmem:[#allocation21 + $0xa20] sm:$0xff]
    %v3958 = vld [vmem:[#allocation21 + $0xa28] sm:$0xff]
    %v3959 = vld [vmem:[#allocation21 + $0xa30] sm:$0xff]
    %v3960 = vld [vmem:[#allocation21 + $0xa38] sm:$0xff]
    %v3961 = vld [vmem:[#allocation21 + $0xa40] sm:$0xff]
    %v3962 = vld [vmem:[#allocation21 + $0xa48] sm:$0xff]
    %v3963 = vld [vmem:[#allocation21 + $0xa50] sm:$0xff]
    %v3964 = vld [vmem:[#allocation21 + $0xa58] sm:$0xff]
    %v3965 = vld [vmem:[#allocation21 + $0xa60] sm:$0xff]
    %v3966 = vld [vmem:[#allocation21 + $0xa68] sm:$0xff]
    %v3967 = vld [vmem:[#allocation21 + $0xa70] sm:$0xff]
    %v3968 = vld [vmem:[#allocation21 + $0xa78] sm:$0xff]
    %v3969 = vld [vmem:[#allocation21 + $0xa80] sm:$0xff]
    %v3970 = vld [vmem:[#allocation21 + $0xa88] sm:$0xff]
    %v3971 = vld [vmem:[#allocation21 + $0xa90] sm:$0xff]
    %v3972 = vld [vmem:[#allocation21 + $0xa98] sm:$0xff]
    %v3973 = vld [vmem:[#allocation21 + $0xaa0] sm:$0xff]
    %v3974 = vld [vmem:[#allocation21 + $0xaa8] sm:$0xff]
    %v3975 = vld [vmem:[#allocation21 + $0xab0] sm:$0xff]
    %v3976 = vld [vmem:[#allocation21 + $0xab8] sm:$0xff]
    %v3977 = vld [vmem:[#allocation21 + $0xac0] sm:$0xff]
    %v3978 = vld [vmem:[#allocation21 + $0xac8] sm:$0xff]
    %v3979 = vld [vmem:[#allocation21 + $0xad0] sm:$0xff]
    %v3980 = vld [vmem:[#allocation21 + $0xad8] sm:$0xff]
    %v3981 = vld [vmem:[#allocation21 + $0xae0] sm:$0xff]
    %v3982 = vld [vmem:[#allocation21 + $0xae8] sm:$0xff]
    %v3983 = vld [vmem:[#allocation21 + $0xaf0] sm:$0xff]
    %v3984 = vld [vmem:[#allocation21 + $0xaf8] sm:$0xff]
    %v3985 = vld [vmem:[#allocation21 + $0xb00] sm:$0xff]
    %v3986 = vld [vmem:[#allocation21 + $0xb08] sm:$0xff]
    %v3987 = vld [vmem:[#allocation21 + $0xb10] sm:$0xff]
    %v3988 = vld [vmem:[#allocation21 + $0xb18] sm:$0xff]
    %v3989 = vld [vmem:[#allocation21 + $0xb20] sm:$0xff]
    %v3990 = vld [vmem:[#allocation21 + $0xb28] sm:$0xff]
    %v3991 = vld [vmem:[#allocation21 + $0xb30] sm:$0xff]
    %v3992 = vld [vmem:[#allocation21 + $0xb38] sm:$0xff]
    %v3993 = vld [vmem:[#allocation21 + $0xb40] sm:$0xff]
    %v3994 = vld [vmem:[#allocation21 + $0xb48] sm:$0xff]
    %v3995 = vld [vmem:[#allocation21 + $0xb50] sm:$0xff]
    %v3996 = vld [vmem:[#allocation21 + $0xb58] sm:$0xff]
    %v3997 = vld [vmem:[#allocation21 + $0xb60] sm:$0xff]
    %v3998 = vld [vmem:[#allocation21 + $0xb68] sm:$0xff]
    %v3999 = vld [vmem:[#allocation21 + $0xb70] sm:$0xff]
    %v4000 = vld [vmem:[#allocation21 + $0xb78] sm:$0xff]
    %v4001 = vld [vmem:[#allocation21 + $0xb80] sm:$0xff]
    %v4002 = vld [vmem:[#allocation21 + $0xb88] sm:$0xff]
    %v4003 = vld [vmem:[#allocation21 + $0xb90] sm:$0xff]
    %v4004 = vld [vmem:[#allocation21 + $0xb98] sm:$0xff]
    %v4005 = vld [vmem:[#allocation21 + $0xba0] sm:$0xff]
    %v4006 = vld [vmem:[#allocation21 + $0xba8] sm:$0xff]
    %v4007 = vld [vmem:[#allocation21 + $0xbb0] sm:$0xff]
    %v4008 = vld [vmem:[#allocation21 + $0xbb8] sm:$0xff]
    %v4009 = vld [vmem:[#allocation21 + $0xbc0] sm:$0xff]
    %v4010 = vld [vmem:[#allocation21 + $0xbc8] sm:$0xff]
    %v4011 = vld [vmem:[#allocation21 + $0xbd0] sm:$0xff]
    %v4012 = vld [vmem:[#allocation21 + $0xbd8] sm:$0xff]
    %v4013 = vld [vmem:[#allocation21 + $0xbe0] sm:$0xff]
    %v4014 = vld [vmem:[#allocation21 + $0xbe8] sm:$0xff]
    %v4015 = vld [vmem:[#allocation21 + $0xbf0] sm:$0xff]
    %v4016 = vld [vmem:[#allocation21 + $0xbf8] sm:$0xff]
    %v4017 = vld [vmem:[#allocation21 + $0xc00] sm:$0xff]
    %v4018 = vld [vmem:[#allocation21 + $0xc08] sm:$0xff]
    %v4019 = vld [vmem:[#allocation21 + $0xc10] sm:$0xff]
    %v4020 = vld [vmem:[#allocation21 + $0xc18] sm:$0xff]
    %v4021 = vld [vmem:[#allocation21 + $0xc20] sm:$0xff]
    %v4022 = vld [vmem:[#allocation21 + $0xc28] sm:$0xff]
    %v4023 = vld [vmem:[#allocation21 + $0xc30] sm:$0xff]
    %v4024 = vld [vmem:[#allocation21 + $0xc38] sm:$0xff]
    %v4025 = vld [vmem:[#allocation21 + $0xc40] sm:$0xff]
    %v4026 = vld [vmem:[#allocation21 + $0xc48] sm:$0xff]
    %v4027 = vld [vmem:[#allocation21 + $0xc50] sm:$0xff]
    %v4028 = vld [vmem:[#allocation21 + $0xc58] sm:$0xff]
    %v4029 = vld [vmem:[#allocation21 + $0xc60] sm:$0xff]
    %v4030 = vld [vmem:[#allocation21 + $0xc68] sm:$0xff]
    %v4031 = vld [vmem:[#allocation21 + $0xc70] sm:$0xff]
    %v4032 = vld [vmem:[#allocation21 + $0xc78] sm:$0xff]
    %v4033 = vld [vmem:[#allocation21 + $0xc80] sm:$0xff]
    %v4034 = vld [vmem:[#allocation21 + $0xc88] sm:$0xff]
    %v4035 = vld [vmem:[#allocation21 + $0xc90] sm:$0xff]
    %v4036 = vld [vmem:[#allocation21 + $0xc98] sm:$0xff]
    %v4037 = vld [vmem:[#allocation21 + $0xca0] sm:$0xff]
    %v4038 = vld [vmem:[#allocation21 + $0xca8] sm:$0xff]
    %v4039 = vld [vmem:[#allocation21 + $0xcb0] sm:$0xff]
    %v4040 = vld [vmem:[#allocation21 + $0xcb8] sm:$0xff]
    %v4041 = vld [vmem:[#allocation21 + $0xcc0] sm:$0xff]
    %v4042 = vld [vmem:[#allocation21 + $0xcc8] sm:$0xff]
    %v4043 = vld [vmem:[#allocation21 + $0xcd0] sm:$0xff]
    %v4044 = vld [vmem:[#allocation21 + $0xcd8] sm:$0xff]
    %v4045 = vld [vmem:[#allocation21 + $0xce0] sm:$0xff]
    %v4046 = vld [vmem:[#allocation21 + $0xce8] sm:$0xff]
    %v4047 = vld [vmem:[#allocation21 + $0xcf0] sm:$0xff]
    %v4048 = vld [vmem:[#allocation21 + $0xcf8] sm:$0xff]
    %v4049 = vld [vmem:[#allocation21 + $0xd00] sm:$0xff]
    %v4050 = vld [vmem:[#allocation21 + $0xd08] sm:$0xff]
    %v4051 = vld [vmem:[#allocation21 + $0xd10] sm:$0xff]
    %v4052 = vld [vmem:[#allocation21 + $0xd18] sm:$0xff]
    %v4053 = vld [vmem:[#allocation21 + $0xd20] sm:$0xff]
    %v4054 = vld [vmem:[#allocation21 + $0xd28] sm:$0xff]
    %v4055 = vld [vmem:[#allocation21 + $0xd30] sm:$0xff]
    %v4056 = vld [vmem:[#allocation21 + $0xd38] sm:$0xff]
    %v4057 = vld [vmem:[#allocation21 + $0xd40] sm:$0xff]
    %v4058 = vld [vmem:[#allocation21 + $0xd48] sm:$0xff]
    %v4059 = vld [vmem:[#allocation21 + $0xd50] sm:$0xff]
    %v4060 = vld [vmem:[#allocation21 + $0xd58] sm:$0xff]
    %v4061 = vld [vmem:[#allocation21 + $0xd60] sm:$0xff]
    %v4062 = vld [vmem:[#allocation21 + $0xd68] sm:$0xff]
    %v4063 = vld [vmem:[#allocation21 + $0xd70] sm:$0xff]
    %v4064 = vld [vmem:[#allocation21 + $0xd78] sm:$0xff]
    %v4065 = vld [vmem:[#allocation21 + $0xd80] sm:$0xff]
    %v4066 = vld [vmem:[#allocation21 + $0xd88] sm:$0xff]
    %v4067 = vld [vmem:[#allocation21 + $0xd90] sm:$0xff]
    %v4068 = vld [vmem:[#allocation21 + $0xd98] sm:$0xff]
    %v4069 = vld [vmem:[#allocation21 + $0xda0] sm:$0xff]
    %v4070 = vld [vmem:[#allocation21 + $0xda8] sm:$0xff]
    %v4071 = vld [vmem:[#allocation21 + $0xdb0] sm:$0xff]
    %v4072 = vld [vmem:[#allocation21 + $0xdb8] sm:$0xff]
    %v4073 = vld [vmem:[#allocation21 + $0xdc0] sm:$0xff]
    %v4074 = vld [vmem:[#allocation21 + $0xdc8] sm:$0xff]
    %v4075 = vld [vmem:[#allocation21 + $0xdd0] sm:$0xff]
    %v4076 = vld [vmem:[#allocation21 + $0xdd8] sm:$0xff]
    %v4077 = vld [vmem:[#allocation21 + $0xde0] sm:$0xff]
    %v4078 = vld [vmem:[#allocation21 + $0xde8] sm:$0xff]
    %v4079 = vld [vmem:[#allocation21 + $0xdf0] sm:$0xff]
    %v4080 = vld [vmem:[#allocation21 + $0xdf8] sm:$0xff]
    %v4081 = vld [vmem:[#allocation21 + $0xe00] sm:$0xff]
    %v4082 = vld [vmem:[#allocation21 + $0xe08] sm:$0xff]
    %v4083 = vld [vmem:[#allocation21 + $0xe10] sm:$0xff]
    %v4084 = vld [vmem:[#allocation21 + $0xe18] sm:$0xff]
    %v4085 = vld [vmem:[#allocation21 + $0xe20] sm:$0xff]
    %v4086 = vld [vmem:[#allocation21 + $0xe28] sm:$0xff]
    %v4087 = vld [vmem:[#allocation21 + $0xe30] sm:$0xff]
    %v4088 = vld [vmem:[#allocation21 + $0xe38] sm:$0xff]
    %v4089 = vld [vmem:[#allocation21 + $0xe40] sm:$0xff]
    %v4090 = vld [vmem:[#allocation21 + $0xe48] sm:$0xff]
    %v4091 = vld [vmem:[#allocation21 + $0xe50] sm:$0xff]
    %v4092 = vld [vmem:[#allocation21 + $0xe58] sm:$0xff]
    %v4093 = vld [vmem:[#allocation21 + $0xe60] sm:$0xff]
    %v4094 = vld [vmem:[#allocation21 + $0xe68] sm:$0xff]
    %v4095 = vld [vmem:[#allocation21 + $0xe70] sm:$0xff]
    %v4096 = vld [vmem:[#allocation21 + $0xe78] sm:$0xff]
    %v4097 = vld [vmem:[#allocation21 + $0xe80] sm:$0xff]
    %v4098 = vld [vmem:[#allocation21 + $0xe88] sm:$0xff]
    %v4099 = vld [vmem:[#allocation21 + $0xe90] sm:$0xff]
    %v4100 = vld [vmem:[#allocation21 + $0xe98] sm:$0xff]
    %v4101 = vld [vmem:[#allocation21 + $0xea0] sm:$0xff]
    %v4102 = vld [vmem:[#allocation21 + $0xea8] sm:$0xff]
    %v4103 = vld [vmem:[#allocation21 + $0xeb0] sm:$0xff]
    %v4104 = vld [vmem:[#allocation21 + $0xeb8] sm:$0xff]
    %v4105 = vld [vmem:[#allocation21 + $0xec0] sm:$0xff]
    %v4106 = vld [vmem:[#allocation21 + $0xec8] sm:$0xff]
    %v4107 = vld [vmem:[#allocation21 + $0xed0] sm:$0xff]
    %v4108 = vld [vmem:[#allocation21 + $0xed8] sm:$0xff]
    %v4109 = vld [vmem:[#allocation21 + $0xee0] sm:$0xff]
    %v4110 = vld [vmem:[#allocation21 + $0xee8] sm:$0xff]
    %v4111 = vld [vmem:[#allocation21 + $0xef0] sm:$0xff]
    %v4112 = vld [vmem:[#allocation21 + $0xef8] sm:$0xff]
    %v4113 = vld [vmem:[#allocation21 + $0xf00] sm:$0xff]
    %v4114 = vld [vmem:[#allocation21 + $0xf08] sm:$0xff]
    %v4115 = vld [vmem:[#allocation21 + $0xf10] sm:$0xff]
    %v4116 = vld [vmem:[#allocation21 + $0xf18] sm:$0xff]
    %v4117 = vld [vmem:[#allocation21 + $0xf20] sm:$0xff]
    %v4118 = vld [vmem:[#allocation21 + $0xf28] sm:$0xff]
    %v4119 = vld [vmem:[#allocation21 + $0xf30] sm:$0xff]
    %v4120 = vld [vmem:[#allocation21 + $0xf38] sm:$0xff]
    %v4121 = vld [vmem:[#allocation21 + $0xf40] sm:$0xff]
    %v4122 = vld [vmem:[#allocation21 + $0xf48] sm:$0xff]
    %v4123 = vld [vmem:[#allocation21 + $0xf50] sm:$0xff]
    %v4124 = vld [vmem:[#allocation21 + $0xf58] sm:$0xff]
    %v4125 = vld [vmem:[#allocation21 + $0xf60] sm:$0xff]
    %v4126 = vld [vmem:[#allocation21 + $0xf68] sm:$0xff]
    %v4127 = vld [vmem:[#allocation21 + $0xf70] sm:$0xff]
    %v4128 = vld [vmem:[#allocation21 + $0xf78] sm:$0xff]
    %v4129 = vld [vmem:[#allocation21 + $0xf80] sm:$0xff]
    %v4130 = vld [vmem:[#allocation21 + $0xf88] sm:$0xff]
    %v4131 = vld [vmem:[#allocation21 + $0xf90] sm:$0xff]
    %v4132 = vld [vmem:[#allocation21 + $0xf98] sm:$0xff]
    %v4133 = vld [vmem:[#allocation21 + $0xfa0] sm:$0xff]
    %v4134 = vld [vmem:[#allocation21 + $0xfa8] sm:$0xff]
    %v4135 = vld [vmem:[#allocation21 + $0xfb0] sm:$0xff]
    %v4136 = vld [vmem:[#allocation21 + $0xfb8] sm:$0xff]
    %v4137 = vld [vmem:[#allocation21 + $0xfc0] sm:$0xff]
    %v4138 = vld [vmem:[#allocation21 + $0xfc8] sm:$0xff]
    %v4139 = vld [vmem:[#allocation21 + $0xfd0] sm:$0xff]
    %v4140 = vld [vmem:[#allocation21 + $0xfd8] sm:$0xff]
    %v4141 = vld [vmem:[#allocation21 + $0xfe0] sm:$0xff]
    %v4142 = vld [vmem:[#allocation21 + $0xfe8] sm:$0xff]
    %v4143 = vld [vmem:[#allocation21 + $0xff0] sm:$0xff]
    %v4144 = vld [vmem:[#allocation21 + $0xff8] sm:$0xff]
    %v4145 = vld [vmem:[#allocation22] sm:$0xff]
    %v4147 = vlaneseq
    %v4148 = vshrl.u32 %v4147, 7
    %v4149 = vsub.s32 0, %v4148
    %v4150 = vrot.slane %v4145, %v4149
    %v4151 = vlaneseq
    %v4152 = vshrl.u32 %v4151, 7
    %v4153 = vsub.s32 1, %v4152
    %v4154 = vrot.slane %v4145, %v4153
    %v4155 = vlaneseq
    %v4156 = vshrl.u32 %v4155, 7
    %v4157 = vsub.s32 2, %v4156
    %v4158 = vrot.slane %v4145, %v4157
    %v4159 = vlaneseq
    %v4160 = vshrl.u32 %v4159, 7
    %v4161 = vsub.s32 3, %v4160
    %v4162 = vrot.slane %v4145, %v4161
    %v4163 = vlaneseq
    %v4164 = vshrl.u32 %v4163, 7
    %v4165 = vsub.s32 4, %v4164
    %v4166 = vrot.slane %v4145, %v4165
    %v4167 = vlaneseq
    %v4168 = vshrl.u32 %v4167, 7
    %v4169 = vsub.s32 5, %v4168
    %v4170 = vrot.slane %v4145, %v4169
    %v4171 = vlaneseq
    %v4172 = vshrl.u32 %v4171, 7
    %v4173 = vsub.s32 6, %v4172
    %v4174 = vrot.slane %v4145, %v4173
    %v4175 = vlaneseq
    %v4176 = vshrl.u32 %v4175, 7
    %v4177 = vsub.s32 7, %v4176
    %v4178 = vrot.slane %v4145, %v4177
    %v4699 = vunpack.c.l.b16 %v3633
    %v4700 = vunpack.c.h.b16 %v3633
    %v4701 = vunpack.c.l.b16 %v3634
    %v4702 = vunpack.c.h.b16 %v3634
    %v4703 = vunpack.c.l.b16 %v3635
    %v4704 = vunpack.c.h.b16 %v3635
    %v4705 = vunpack.c.l.b16 %v3636
    %v4706 = vunpack.c.h.b16 %v3636
    %v4707 = vunpack.c.l.b16 %v3637
    %v4708 = vunpack.c.h.b16 %v3637
    %v4709 = vunpack.c.l.b16 %v3638
    %v4710 = vunpack.c.h.b16 %v3638
    %v4711 = vunpack.c.l.b16 %v3639
    %v4712 = vunpack.c.h.b16 %v3639
    %v4713 = vunpack.c.l.b16 %v3640
    %v4714 = vunpack.c.h.b16 %v3640
    %v4715 = vunpack.c.l.b16 %v3641
    %v4716 = vunpack.c.h.b16 %v3641
    %v4717 = vunpack.c.l.b16 %v3642
    %v4718 = vunpack.c.h.b16 %v3642
    %v4719 = vunpack.c.l.b16 %v3643
    %v4720 = vunpack.c.h.b16 %v3643
    %v4721 = vunpack.c.l.b16 %v3644
    %v4722 = vunpack.c.h.b16 %v3644
    %v4723 = vunpack.c.l.b16 %v3645
    %v4724 = vunpack.c.h.b16 %v3645
    %v4725 = vunpack.c.l.b16 %v3646
    %v4726 = vunpack.c.h.b16 %v3646
    %v4727 = vunpack.c.l.b16 %v3647
    %v4728 = vunpack.c.h.b16 %v3647
    %v4729 = vunpack.c.l.b16 %v3648
    %v4730 = vunpack.c.h.b16 %v3648
    %v4731 = vunpack.c.l.b16 %v3649
    %v4732 = vunpack.c.h.b16 %v3649
    %v4733 = vunpack.c.l.b16 %v3650
    %v4734 = vunpack.c.h.b16 %v3650
    %v4735 = vunpack.c.l.b16 %v3651
    %v4736 = vunpack.c.h.b16 %v3651
    %v4737 = vunpack.c.l.b16 %v3652
    %v4738 = vunpack.c.h.b16 %v3652
    %v4739 = vunpack.c.l.b16 %v3653
    %v4740 = vunpack.c.h.b16 %v3653
    %v4741 = vunpack.c.l.b16 %v3654
    %v4742 = vunpack.c.h.b16 %v3654
    %v4743 = vunpack.c.l.b16 %v3655
    %v4744 = vunpack.c.h.b16 %v3655
    %v4745 = vunpack.c.l.b16 %v3656
    %v4746 = vunpack.c.h.b16 %v3656
    %v4747 = vunpack.c.l.b16 %v3657
    %v4748 = vunpack.c.h.b16 %v3657
    %v4749 = vunpack.c.l.b16 %v3658
    %v4750 = vunpack.c.h.b16 %v3658
    %v4751 = vunpack.c.l.b16 %v3659
    %v4752 = vunpack.c.h.b16 %v3659
    %v4753 = vunpack.c.l.b16 %v3660
    %v4754 = vunpack.c.h.b16 %v3660
    %v4755 = vunpack.c.l.b16 %v3661
    %v4756 = vunpack.c.h.b16 %v3661
    %v4757 = vunpack.c.l.b16 %v3662
    %v4758 = vunpack.c.h.b16 %v3662
    %v4759 = vunpack.c.l.b16 %v3663
    %v4760 = vunpack.c.h.b16 %v3663
    %v4761 = vunpack.c.l.b16 %v3664
    %v4762 = vunpack.c.h.b16 %v3664
    %v4763 = vunpack.c.l.b16 %v3665
    %v4764 = vunpack.c.h.b16 %v3665
    %v4765 = vunpack.c.l.b16 %v3666
    %v4766 = vunpack.c.h.b16 %v3666
    %v4767 = vunpack.c.l.b16 %v3667
    %v4768 = vunpack.c.h.b16 %v3667
    %v4769 = vunpack.c.l.b16 %v3668
    %v4770 = vunpack.c.h.b16 %v3668
    %v4771 = vunpack.c.l.b16 %v3669
    %v4772 = vunpack.c.h.b16 %v3669
    %v4773 = vunpack.c.l.b16 %v3670
    %v4774 = vunpack.c.h.b16 %v3670
    %v4775 = vunpack.c.l.b16 %v3671
    %v4776 = vunpack.c.h.b16 %v3671
    %v4777 = vunpack.c.l.b16 %v3672
    %v4778 = vunpack.c.h.b16 %v3672
    %v4779 = vunpack.c.l.b16 %v3673
    %v4780 = vunpack.c.h.b16 %v3673
    %v4781 = vunpack.c.l.b16 %v3674
    %v4782 = vunpack.c.h.b16 %v3674
    %v4783 = vunpack.c.l.b16 %v3675
    %v4784 = vunpack.c.h.b16 %v3675
    %v4785 = vunpack.c.l.b16 %v3676
    %v4786 = vunpack.c.h.b16 %v3676
    %v4787 = vunpack.c.l.b16 %v3677
    %v4788 = vunpack.c.h.b16 %v3677
    %v4789 = vunpack.c.l.b16 %v3678
    %v4790 = vunpack.c.h.b16 %v3678
    %v4791 = vunpack.c.l.b16 %v3679
    %v4792 = vunpack.c.h.b16 %v3679
    %v4793 = vunpack.c.l.b16 %v3680
    %v4794 = vunpack.c.h.b16 %v3680
    %v4795 = vunpack.c.l.b16 %v3681
    %v4796 = vunpack.c.h.b16 %v3681
    %v4797 = vunpack.c.l.b16 %v3682
    %v4798 = vunpack.c.h.b16 %v3682
    %v4799 = vunpack.c.l.b16 %v3683
    %v4800 = vunpack.c.h.b16 %v3683
    %v4801 = vunpack.c.l.b16 %v3684
    %v4802 = vunpack.c.h.b16 %v3684
    %v4803 = vunpack.c.l.b16 %v3685
    %v4804 = vunpack.c.h.b16 %v3685
    %v4805 = vunpack.c.l.b16 %v3686
    %v4806 = vunpack.c.h.b16 %v3686
    %v4807 = vunpack.c.l.b16 %v3687
    %v4808 = vunpack.c.h.b16 %v3687
    %v4809 = vunpack.c.l.b16 %v3688
    %v4810 = vunpack.c.h.b16 %v3688
    %v4811 = vunpack.c.l.b16 %v3689
    %v4812 = vunpack.c.h.b16 %v3689
    %v4813 = vunpack.c.l.b16 %v3690
    %v4814 = vunpack.c.h.b16 %v3690
    %v4815 = vunpack.c.l.b16 %v3691
    %v4816 = vunpack.c.h.b16 %v3691
    %v4817 = vunpack.c.l.b16 %v3692
    %v4818 = vunpack.c.h.b16 %v3692
    %v4819 = vunpack.c.l.b16 %v3693
    %v4820 = vunpack.c.h.b16 %v3693
    %v4821 = vunpack.c.l.b16 %v3694
    %v4822 = vunpack.c.h.b16 %v3694
    %v4823 = vunpack.c.l.b16 %v3695
    %v4824 = vunpack.c.h.b16 %v3695
    %v4825 = vunpack.c.l.b16 %v3696
    %v4826 = vunpack.c.h.b16 %v3696
    %v4827 = vunpack.c.l.b16 %v3697
    %v4828 = vunpack.c.h.b16 %v3697
    %v4829 = vunpack.c.l.b16 %v3698
    %v4830 = vunpack.c.h.b16 %v3698
    %v4831 = vunpack.c.l.b16 %v3699
    %v4832 = vunpack.c.h.b16 %v3699
    %v4833 = vunpack.c.l.b16 %v3700
    %v4834 = vunpack.c.h.b16 %v3700
    %v4835 = vunpack.c.l.b16 %v3701
    %v4836 = vunpack.c.h.b16 %v3701
    %v4837 = vunpack.c.l.b16 %v3702
    %v4838 = vunpack.c.h.b16 %v3702
    %v4839 = vunpack.c.l.b16 %v3703
    %v4840 = vunpack.c.h.b16 %v3703
    %v4841 = vunpack.c.l.b16 %v3704
    %v4842 = vunpack.c.h.b16 %v3704
    %v4843 = vunpack.c.l.b16 %v3705
    %v4844 = vunpack.c.h.b16 %v3705
    %v4845 = vunpack.c.l.b16 %v3706
    %v4846 = vunpack.c.h.b16 %v3706
    %v4847 = vunpack.c.l.b16 %v3707
    %v4848 = vunpack.c.h.b16 %v3707
    %v4849 = vunpack.c.l.b16 %v3708
    %v4850 = vunpack.c.h.b16 %v3708
    %v4851 = vunpack.c.l.b16 %v3709
    %v4852 = vunpack.c.h.b16 %v3709
    %v4853 = vunpack.c.l.b16 %v3710
    %v4854 = vunpack.c.h.b16 %v3710
    %v4855 = vunpack.c.l.b16 %v3711
    %v4856 = vunpack.c.h.b16 %v3711
    %v4857 = vunpack.c.l.b16 %v3712
    %v4858 = vunpack.c.h.b16 %v3712
    %v4859 = vunpack.c.l.b16 %v3713
    %v4860 = vunpack.c.h.b16 %v3713
    %v4861 = vunpack.c.l.b16 %v3714
    %v4862 = vunpack.c.h.b16 %v3714
    %v4863 = vunpack.c.l.b16 %v3715
    %v4864 = vunpack.c.h.b16 %v3715
    %v4865 = vunpack.c.l.b16 %v3716
    %v4866 = vunpack.c.h.b16 %v3716
    %v4867 = vunpack.c.l.b16 %v3717
    %v4868 = vunpack.c.h.b16 %v3717
    %v4869 = vunpack.c.l.b16 %v3718
    %v4870 = vunpack.c.h.b16 %v3718
    %v4871 = vunpack.c.l.b16 %v3719
    %v4872 = vunpack.c.h.b16 %v3719
    %v4873 = vunpack.c.l.b16 %v3720
    %v4874 = vunpack.c.h.b16 %v3720
    %v4875 = vunpack.c.l.b16 %v3721
    %v4876 = vunpack.c.h.b16 %v3721
    %v4877 = vunpack.c.l.b16 %v3722
    %v4878 = vunpack.c.h.b16 %v3722
    %v4879 = vunpack.c.l.b16 %v3723
    %v4880 = vunpack.c.h.b16 %v3723
    %v4881 = vunpack.c.l.b16 %v3724
    %v4882 = vunpack.c.h.b16 %v3724
    %v4883 = vunpack.c.l.b16 %v3725
    %v4884 = vunpack.c.h.b16 %v3725
    %v4885 = vunpack.c.l.b16 %v3726
    %v4886 = vunpack.c.h.b16 %v3726
    %v4887 = vunpack.c.l.b16 %v3727
    %v4888 = vunpack.c.h.b16 %v3727
    %v4889 = vunpack.c.l.b16 %v3728
    %v4890 = vunpack.c.h.b16 %v3728
    %v4891 = vunpack.c.l.b16 %v3729
    %v4892 = vunpack.c.h.b16 %v3729
    %v4893 = vunpack.c.l.b16 %v3730
    %v4894 = vunpack.c.h.b16 %v3730
    %v4895 = vunpack.c.l.b16 %v3731
    %v4896 = vunpack.c.h.b16 %v3731
    %v4897 = vunpack.c.l.b16 %v3732
    %v4898 = vunpack.c.h.b16 %v3732
    %v4899 = vunpack.c.l.b16 %v3733
    %v4900 = vunpack.c.h.b16 %v3733
    %v4901 = vunpack.c.l.b16 %v3734
    %v4902 = vunpack.c.h.b16 %v3734
    %v4903 = vunpack.c.l.b16 %v3735
    %v4904 = vunpack.c.h.b16 %v3735
    %v4905 = vunpack.c.l.b16 %v3736
    %v4906 = vunpack.c.h.b16 %v3736
    %v4907 = vunpack.c.l.b16 %v3737
    %v4908 = vunpack.c.h.b16 %v3737
    %v4909 = vunpack.c.l.b16 %v3738
    %v4910 = vunpack.c.h.b16 %v3738
    %v4911 = vunpack.c.l.b16 %v3739
    %v4912 = vunpack.c.h.b16 %v3739
    %v4913 = vunpack.c.l.b16 %v3740
    %v4914 = vunpack.c.h.b16 %v3740
    %v4915 = vunpack.c.l.b16 %v3741
    %v4916 = vunpack.c.h.b16 %v3741
    %v4917 = vunpack.c.l.b16 %v3742
    %v4918 = vunpack.c.h.b16 %v3742
    %v4919 = vunpack.c.l.b16 %v3743
    %v4920 = vunpack.c.h.b16 %v3743
    %v4921 = vunpack.c.l.b16 %v3744
    %v4922 = vunpack.c.h.b16 %v3744
    %v4923 = vunpack.c.l.b16 %v3745
    %v4924 = vunpack.c.h.b16 %v3745
    %v4925 = vunpack.c.l.b16 %v3746
    %v4926 = vunpack.c.h.b16 %v3746
    %v4927 = vunpack.c.l.b16 %v3747
    %v4928 = vunpack.c.h.b16 %v3747
    %v4929 = vunpack.c.l.b16 %v3748
    %v4930 = vunpack.c.h.b16 %v3748
    %v4931 = vunpack.c.l.b16 %v3749
    %v4932 = vunpack.c.h.b16 %v3749
    %v4933 = vunpack.c.l.b16 %v3750
    %v4934 = vunpack.c.h.b16 %v3750
    %v4935 = vunpack.c.l.b16 %v3751
    %v4936 = vunpack.c.h.b16 %v3751
    %v4937 = vunpack.c.l.b16 %v3752
    %v4938 = vunpack.c.h.b16 %v3752
    %v4939 = vunpack.c.l.b16 %v3753
    %v4940 = vunpack.c.h.b16 %v3753
    %v4941 = vunpack.c.l.b16 %v3754
    %v4942 = vunpack.c.h.b16 %v3754
    %v4943 = vunpack.c.l.b16 %v3755
    %v4944 = vunpack.c.h.b16 %v3755
    %v4945 = vunpack.c.l.b16 %v3756
    %v4946 = vunpack.c.h.b16 %v3756
    %v4947 = vunpack.c.l.b16 %v3757
    %v4948 = vunpack.c.h.b16 %v3757
    %v4949 = vunpack.c.l.b16 %v3758
    %v4950 = vunpack.c.h.b16 %v3758
    %v4951 = vunpack.c.l.b16 %v3759
    %v4952 = vunpack.c.h.b16 %v3759
    %v4953 = vunpack.c.l.b16 %v3760
    %v4954 = vunpack.c.h.b16 %v3760
    %v4955 = vunpack.c.l.b16 %v3761
    %v4956 = vunpack.c.h.b16 %v3761
    %v4957 = vunpack.c.l.b16 %v3762
    %v4958 = vunpack.c.h.b16 %v3762
    %v4959 = vunpack.c.l.b16 %v3763
    %v4960 = vunpack.c.h.b16 %v3763
    %v4961 = vunpack.c.l.b16 %v3764
    %v4962 = vunpack.c.h.b16 %v3764
    %v4963 = vunpack.c.l.b16 %v3765
    %v4964 = vunpack.c.h.b16 %v3765
    %v4965 = vunpack.c.l.b16 %v3766
    %v4966 = vunpack.c.h.b16 %v3766
    %v4967 = vunpack.c.l.b16 %v3767
    %v4968 = vunpack.c.h.b16 %v3767
    %v4969 = vunpack.c.l.b16 %v3768
    %v4970 = vunpack.c.h.b16 %v3768
    %v4971 = vunpack.c.l.b16 %v3769
    %v4972 = vunpack.c.h.b16 %v3769
    %v4973 = vunpack.c.l.b16 %v3770
    %v4974 = vunpack.c.h.b16 %v3770
    %v4975 = vunpack.c.l.b16 %v3771
    %v4976 = vunpack.c.h.b16 %v3771
    %v4977 = vunpack.c.l.b16 %v3772
    %v4978 = vunpack.c.h.b16 %v3772
    %v4979 = vunpack.c.l.b16 %v3773
    %v4980 = vunpack.c.h.b16 %v3773
    %v4981 = vunpack.c.l.b16 %v3774
    %v4982 = vunpack.c.h.b16 %v3774
    %v4983 = vunpack.c.l.b16 %v3775
    %v4984 = vunpack.c.h.b16 %v3775
    %v4985 = vunpack.c.l.b16 %v3776
    %v4986 = vunpack.c.h.b16 %v3776
    %v4987 = vunpack.c.l.b16 %v3777
    %v4988 = vunpack.c.h.b16 %v3777
    %v4989 = vunpack.c.l.b16 %v3778
    %v4990 = vunpack.c.h.b16 %v3778
    %v4991 = vunpack.c.l.b16 %v3779
    %v4992 = vunpack.c.h.b16 %v3779
    %v4993 = vunpack.c.l.b16 %v3780
    %v4994 = vunpack.c.h.b16 %v3780
    %v4995 = vunpack.c.l.b16 %v3781
    %v4996 = vunpack.c.h.b16 %v3781
    %v4997 = vunpack.c.l.b16 %v3782
    %v4998 = vunpack.c.h.b16 %v3782
    %v4999 = vunpack.c.l.b16 %v3783
    %v5000 = vunpack.c.h.b16 %v3783
    %v5001 = vunpack.c.l.b16 %v3784
    %v5002 = vunpack.c.h.b16 %v3784
    %v5003 = vunpack.c.l.b16 %v3785
    %v5004 = vunpack.c.h.b16 %v3785
    %v5005 = vunpack.c.l.b16 %v3786
    %v5006 = vunpack.c.h.b16 %v3786
    %v5007 = vunpack.c.l.b16 %v3787
    %v5008 = vunpack.c.h.b16 %v3787
    %v5009 = vunpack.c.l.b16 %v3788
    %v5010 = vunpack.c.h.b16 %v3788
    %v5011 = vunpack.c.l.b16 %v3789
    %v5012 = vunpack.c.h.b16 %v3789
    %v5013 = vunpack.c.l.b16 %v3790
    %v5014 = vunpack.c.h.b16 %v3790
    %v5015 = vunpack.c.l.b16 %v3791
    %v5016 = vunpack.c.h.b16 %v3791
    %v5017 = vunpack.c.l.b16 %v3792
    %v5018 = vunpack.c.h.b16 %v3792
    %v5019 = vunpack.c.l.b16 %v3793
    %v5020 = vunpack.c.h.b16 %v3793
    %v5021 = vunpack.c.l.b16 %v3794
    %v5022 = vunpack.c.h.b16 %v3794
    %v5023 = vunpack.c.l.b16 %v3795
    %v5024 = vunpack.c.h.b16 %v3795
    %v5025 = vunpack.c.l.b16 %v3796
    %v5026 = vunpack.c.h.b16 %v3796
    %v5027 = vunpack.c.l.b16 %v3797
    %v5028 = vunpack.c.h.b16 %v3797
    %v5029 = vunpack.c.l.b16 %v3798
    %v5030 = vunpack.c.h.b16 %v3798
    %v5031 = vunpack.c.l.b16 %v3799
    %v5032 = vunpack.c.h.b16 %v3799
    %v5033 = vunpack.c.l.b16 %v3800
    %v5034 = vunpack.c.h.b16 %v3800
    %v5035 = vunpack.c.l.b16 %v3801
    %v5036 = vunpack.c.h.b16 %v3801
    %v5037 = vunpack.c.l.b16 %v3802
    %v5038 = vunpack.c.h.b16 %v3802
    %v5039 = vunpack.c.l.b16 %v3803
    %v5040 = vunpack.c.h.b16 %v3803
    %v5041 = vunpack.c.l.b16 %v3804
    %v5042 = vunpack.c.h.b16 %v3804
    %v5043 = vunpack.c.l.b16 %v3805
    %v5044 = vunpack.c.h.b16 %v3805
    %v5045 = vunpack.c.l.b16 %v3806
    %v5046 = vunpack.c.h.b16 %v3806
    %v5047 = vunpack.c.l.b16 %v3807
    %v5048 = vunpack.c.h.b16 %v3807
    %v5049 = vunpack.c.l.b16 %v3808
    %v5050 = vunpack.c.h.b16 %v3808
    %v5051 = vunpack.c.l.b16 %v3809
    %v5052 = vunpack.c.h.b16 %v3809
    %v5053 = vunpack.c.l.b16 %v3810
    %v5054 = vunpack.c.h.b16 %v3810
    %v5055 = vunpack.c.l.b16 %v3811
    %v5056 = vunpack.c.h.b16 %v3811
    %v5057 = vunpack.c.l.b16 %v3812
    %v5058 = vunpack.c.h.b16 %v3812
    %v5059 = vunpack.c.l.b16 %v3813
    %v5060 = vunpack.c.h.b16 %v3813
    %v5061 = vunpack.c.l.b16 %v3814
    %v5062 = vunpack.c.h.b16 %v3814
    %v5063 = vunpack.c.l.b16 %v3815
    %v5064 = vunpack.c.h.b16 %v3815
    %v5065 = vunpack.c.l.b16 %v3816
    %v5066 = vunpack.c.h.b16 %v3816
    %v5067 = vunpack.c.l.b16 %v3817
    %v5068 = vunpack.c.h.b16 %v3817
    %v5069 = vunpack.c.l.b16 %v3818
    %v5070 = vunpack.c.h.b16 %v3818
    %v5071 = vunpack.c.l.b16 %v3819
    %v5072 = vunpack.c.h.b16 %v3819
    %v5073 = vunpack.c.l.b16 %v3820
    %v5074 = vunpack.c.h.b16 %v3820
    %v5075 = vunpack.c.l.b16 %v3821
    %v5076 = vunpack.c.h.b16 %v3821
    %v5077 = vunpack.c.l.b16 %v3822
    %v5078 = vunpack.c.h.b16 %v3822
    %v5079 = vunpack.c.l.b16 %v3823
    %v5080 = vunpack.c.h.b16 %v3823
    %v5081 = vunpack.c.l.b16 %v3824
    %v5082 = vunpack.c.h.b16 %v3824
    %v5083 = vunpack.c.l.b16 %v3825
    %v5084 = vunpack.c.h.b16 %v3825
    %v5085 = vunpack.c.l.b16 %v3826
    %v5086 = vunpack.c.h.b16 %v3826
    %v5087 = vunpack.c.l.b16 %v3827
    %v5088 = vunpack.c.h.b16 %v3827
    %v5089 = vunpack.c.l.b16 %v3828
    %v5090 = vunpack.c.h.b16 %v3828
    %v5091 = vunpack.c.l.b16 %v3829
    %v5092 = vunpack.c.h.b16 %v3829
    %v5093 = vunpack.c.l.b16 %v3830
    %v5094 = vunpack.c.h.b16 %v3830
    %v5095 = vunpack.c.l.b16 %v3831
    %v5096 = vunpack.c.h.b16 %v3831
    %v5097 = vunpack.c.l.b16 %v3832
    %v5098 = vunpack.c.h.b16 %v3832
    %v5099 = vunpack.c.l.b16 %v3833
    %v5100 = vunpack.c.h.b16 %v3833
    %v5101 = vunpack.c.l.b16 %v3834
    %v5102 = vunpack.c.h.b16 %v3834
    %v5103 = vunpack.c.l.b16 %v3835
    %v5104 = vunpack.c.h.b16 %v3835
    %v5105 = vunpack.c.l.b16 %v3836
    %v5106 = vunpack.c.h.b16 %v3836
    %v5107 = vunpack.c.l.b16 %v3837
    %v5108 = vunpack.c.h.b16 %v3837
    %v5109 = vunpack.c.l.b16 %v3838
    %v5110 = vunpack.c.h.b16 %v3838
    %v5111 = vunpack.c.l.b16 %v3839
    %v5112 = vunpack.c.h.b16 %v3839
    %v5113 = vunpack.c.l.b16 %v3840
    %v5114 = vunpack.c.h.b16 %v3840
    %v5115 = vunpack.c.l.b16 %v3841
    %v5116 = vunpack.c.h.b16 %v3841
    %v5117 = vunpack.c.l.b16 %v3842
    %v5118 = vunpack.c.h.b16 %v3842
    %v5119 = vunpack.c.l.b16 %v3843
    %v5120 = vunpack.c.h.b16 %v3843
    %v5121 = vunpack.c.l.b16 %v3844
    %v5122 = vunpack.c.h.b16 %v3844
    %v5123 = vunpack.c.l.b16 %v3845
    %v5124 = vunpack.c.h.b16 %v3845
    %v5125 = vunpack.c.l.b16 %v3846
    %v5126 = vunpack.c.h.b16 %v3846
    %v5127 = vunpack.c.l.b16 %v3847
    %v5128 = vunpack.c.h.b16 %v3847
    %v5129 = vunpack.c.l.b16 %v3848
    %v5130 = vunpack.c.h.b16 %v3848
    %v5131 = vunpack.c.l.b16 %v3849
    %v5132 = vunpack.c.h.b16 %v3849
    %v5133 = vunpack.c.l.b16 %v3850
    %v5134 = vunpack.c.h.b16 %v3850
    %v5135 = vunpack.c.l.b16 %v3851
    %v5136 = vunpack.c.h.b16 %v3851
    %v5137 = vunpack.c.l.b16 %v3852
    %v5138 = vunpack.c.h.b16 %v3852
    %v5139 = vunpack.c.l.b16 %v3853
    %v5140 = vunpack.c.h.b16 %v3853
    %v5141 = vunpack.c.l.b16 %v3854
    %v5142 = vunpack.c.h.b16 %v3854
    %v5143 = vunpack.c.l.b16 %v3855
    %v5144 = vunpack.c.h.b16 %v3855
    %v5145 = vunpack.c.l.b16 %v3856
    %v5146 = vunpack.c.h.b16 %v3856
    %v5147 = vunpack.c.l.b16 %v3857
    %v5148 = vunpack.c.h.b16 %v3857
    %v5149 = vunpack.c.l.b16 %v3858
    %v5150 = vunpack.c.h.b16 %v3858
    %v5151 = vunpack.c.l.b16 %v3859
    %v5152 = vunpack.c.h.b16 %v3859
    %v5153 = vunpack.c.l.b16 %v3860
    %v5154 = vunpack.c.h.b16 %v3860
    %v5155 = vunpack.c.l.b16 %v3861
    %v5156 = vunpack.c.h.b16 %v3861
    %v5157 = vunpack.c.l.b16 %v3862
    %v5158 = vunpack.c.h.b16 %v3862
    %v5159 = vunpack.c.l.b16 %v3863
    %v5160 = vunpack.c.h.b16 %v3863
    %v5161 = vunpack.c.l.b16 %v3864
    %v5162 = vunpack.c.h.b16 %v3864
    %v5163 = vunpack.c.l.b16 %v3865
    %v5164 = vunpack.c.h.b16 %v3865
    %v5165 = vunpack.c.l.b16 %v3866
    %v5166 = vunpack.c.h.b16 %v3866
    %v5167 = vunpack.c.l.b16 %v3867
    %v5168 = vunpack.c.h.b16 %v3867
    %v5169 = vunpack.c.l.b16 %v3868
    %v5170 = vunpack.c.h.b16 %v3868
    %v5171 = vunpack.c.l.b16 %v3869
    %v5172 = vunpack.c.h.b16 %v3869
    %v5173 = vunpack.c.l.b16 %v3870
    %v5174 = vunpack.c.h.b16 %v3870
    %v5175 = vunpack.c.l.b16 %v3871
    %v5176 = vunpack.c.h.b16 %v3871
    %v5177 = vunpack.c.l.b16 %v3872
    %v5178 = vunpack.c.h.b16 %v3872
    %v5179 = vunpack.c.l.b16 %v3873
    %v5180 = vunpack.c.h.b16 %v3873
    %v5181 = vunpack.c.l.b16 %v3874
    %v5182 = vunpack.c.h.b16 %v3874
    %v5183 = vunpack.c.l.b16 %v3875
    %v5184 = vunpack.c.h.b16 %v3875
    %v5185 = vunpack.c.l.b16 %v3876
    %v5186 = vunpack.c.h.b16 %v3876
    %v5187 = vunpack.c.l.b16 %v3877
    %v5188 = vunpack.c.h.b16 %v3877
    %v5189 = vunpack.c.l.b16 %v3878
    %v5190 = vunpack.c.h.b16 %v3878
    %v5191 = vunpack.c.l.b16 %v3879
    %v5192 = vunpack.c.h.b16 %v3879
    %v5193 = vunpack.c.l.b16 %v3880
    %v5194 = vunpack.c.h.b16 %v3880
    %v5195 = vunpack.c.l.b16 %v3881
    %v5196 = vunpack.c.h.b16 %v3881
    %v5197 = vunpack.c.l.b16 %v3882
    %v5198 = vunpack.c.h.b16 %v3882
    %v5199 = vunpack.c.l.b16 %v3883
    %v5200 = vunpack.c.h.b16 %v3883
    %v5201 = vunpack.c.l.b16 %v3884
    %v5202 = vunpack.c.h.b16 %v3884
    %v5203 = vunpack.c.l.b16 %v3885
    %v5204 = vunpack.c.h.b16 %v3885
    %v5205 = vunpack.c.l.b16 %v3886
    %v5206 = vunpack.c.h.b16 %v3886
    %v5207 = vunpack.c.l.b16 %v3887
    %v5208 = vunpack.c.h.b16 %v3887
    %v5209 = vunpack.c.l.b16 %v3888
    %v5210 = vunpack.c.h.b16 %v3888
    %v5211 = vunpack.c.l.b16 %v3889
    %v5212 = vunpack.c.h.b16 %v3889
    %v5213 = vunpack.c.l.b16 %v3890
    %v5214 = vunpack.c.h.b16 %v3890
    %v5215 = vunpack.c.l.b16 %v3891
    %v5216 = vunpack.c.h.b16 %v3891
    %v5217 = vunpack.c.l.b16 %v3892
    %v5218 = vunpack.c.h.b16 %v3892
    %v5219 = vunpack.c.l.b16 %v3893
    %v5220 = vunpack.c.h.b16 %v3893
    %v5221 = vunpack.c.l.b16 %v3894
    %v5222 = vunpack.c.h.b16 %v3894
    %v5223 = vunpack.c.l.b16 %v3895
    %v5224 = vunpack.c.h.b16 %v3895
    %v5225 = vunpack.c.l.b16 %v3896
    %v5226 = vunpack.c.h.b16 %v3896
    %v5227 = vunpack.c.l.b16 %v3897
    %v5228 = vunpack.c.h.b16 %v3897
    %v5229 = vunpack.c.l.b16 %v3898
    %v5230 = vunpack.c.h.b16 %v3898
    %v5231 = vunpack.c.l.b16 %v3899
    %v5232 = vunpack.c.h.b16 %v3899
    %v5233 = vunpack.c.l.b16 %v3900
    %v5234 = vunpack.c.h.b16 %v3900
    %v5235 = vunpack.c.l.b16 %v3901
    %v5236 = vunpack.c.h.b16 %v3901
    %v5237 = vunpack.c.l.b16 %v3902
    %v5238 = vunpack.c.h.b16 %v3902
    %v5239 = vunpack.c.l.b16 %v3903
    %v5240 = vunpack.c.h.b16 %v3903
    %v5241 = vunpack.c.l.b16 %v3904
    %v5242 = vunpack.c.h.b16 %v3904
    %v5243 = vunpack.c.l.b16 %v3905
    %v5244 = vunpack.c.h.b16 %v3905
    %v5245 = vunpack.c.l.b16 %v3906
    %v5246 = vunpack.c.h.b16 %v3906
    %v5247 = vunpack.c.l.b16 %v3907
    %v5248 = vunpack.c.h.b16 %v3907
    %v5249 = vunpack.c.l.b16 %v3908
    %v5250 = vunpack.c.h.b16 %v3908
    %v5251 = vunpack.c.l.b16 %v3909
    %v5252 = vunpack.c.h.b16 %v3909
    %v5253 = vunpack.c.l.b16 %v3910
    %v5254 = vunpack.c.h.b16 %v3910
    %v5255 = vunpack.c.l.b16 %v3911
    %v5256 = vunpack.c.h.b16 %v3911
    %v5257 = vunpack.c.l.b16 %v3912
    %v5258 = vunpack.c.h.b16 %v3912
    %v5259 = vunpack.c.l.b16 %v3913
    %v5260 = vunpack.c.h.b16 %v3913
    %v5261 = vunpack.c.l.b16 %v3914
    %v5262 = vunpack.c.h.b16 %v3914
    %v5263 = vunpack.c.l.b16 %v3915
    %v5264 = vunpack.c.h.b16 %v3915
    %v5265 = vunpack.c.l.b16 %v3916
    %v5266 = vunpack.c.h.b16 %v3916
    %v5267 = vunpack.c.l.b16 %v3917
    %v5268 = vunpack.c.h.b16 %v3917
    %v5269 = vunpack.c.l.b16 %v3918
    %v5270 = vunpack.c.h.b16 %v3918
    %v5271 = vunpack.c.l.b16 %v3919
    %v5272 = vunpack.c.h.b16 %v3919
    %v5273 = vunpack.c.l.b16 %v3920
    %v5274 = vunpack.c.h.b16 %v3920
    %v5275 = vunpack.c.l.b16 %v3921
    %v5276 = vunpack.c.h.b16 %v3921
    %v5277 = vunpack.c.l.b16 %v3922
    %v5278 = vunpack.c.h.b16 %v3922
    %v5279 = vunpack.c.l.b16 %v3923
    %v5280 = vunpack.c.h.b16 %v3923
    %v5281 = vunpack.c.l.b16 %v3924
    %v5282 = vunpack.c.h.b16 %v3924
    %v5283 = vunpack.c.l.b16 %v3925
    %v5284 = vunpack.c.h.b16 %v3925
    %v5285 = vunpack.c.l.b16 %v3926
    %v5286 = vunpack.c.h.b16 %v3926
    %v5287 = vunpack.c.l.b16 %v3927
    %v5288 = vunpack.c.h.b16 %v3927
    %v5289 = vunpack.c.l.b16 %v3928
    %v5290 = vunpack.c.h.b16 %v3928
    %v5291 = vunpack.c.l.b16 %v3929
    %v5292 = vunpack.c.h.b16 %v3929
    %v5293 = vunpack.c.l.b16 %v3930
    %v5294 = vunpack.c.h.b16 %v3930
    %v5295 = vunpack.c.l.b16 %v3931
    %v5296 = vunpack.c.h.b16 %v3931
    %v5297 = vunpack.c.l.b16 %v3932
    %v5298 = vunpack.c.h.b16 %v3932
    %v5299 = vunpack.c.l.b16 %v3933
    %v5300 = vunpack.c.h.b16 %v3933
    %v5301 = vunpack.c.l.b16 %v3934
    %v5302 = vunpack.c.h.b16 %v3934
    %v5303 = vunpack.c.l.b16 %v3935
    %v5304 = vunpack.c.h.b16 %v3935
    %v5305 = vunpack.c.l.b16 %v3936
    %v5306 = vunpack.c.h.b16 %v3936
    %v5307 = vunpack.c.l.b16 %v3937
    %v5308 = vunpack.c.h.b16 %v3937
    %v5309 = vunpack.c.l.b16 %v3938
    %v5310 = vunpack.c.h.b16 %v3938
    %v5311 = vunpack.c.l.b16 %v3939
    %v5312 = vunpack.c.h.b16 %v3939
    %v5313 = vunpack.c.l.b16 %v3940
    %v5314 = vunpack.c.h.b16 %v3940
    %v5315 = vunpack.c.l.b16 %v3941
    %v5316 = vunpack.c.h.b16 %v3941
    %v5317 = vunpack.c.l.b16 %v3942
    %v5318 = vunpack.c.h.b16 %v3942
    %v5319 = vunpack.c.l.b16 %v3943
    %v5320 = vunpack.c.h.b16 %v3943
    %v5321 = vunpack.c.l.b16 %v3944
    %v5322 = vunpack.c.h.b16 %v3944
    %v5323 = vunpack.c.l.b16 %v3945
    %v5324 = vunpack.c.h.b16 %v3945
    %v5325 = vunpack.c.l.b16 %v3946
    %v5326 = vunpack.c.h.b16 %v3946
    %v5327 = vunpack.c.l.b16 %v3947
    %v5328 = vunpack.c.h.b16 %v3947
    %v5329 = vunpack.c.l.b16 %v3948
    %v5330 = vunpack.c.h.b16 %v3948
    %v5331 = vunpack.c.l.b16 %v3949
    %v5332 = vunpack.c.h.b16 %v3949
    %v5333 = vunpack.c.l.b16 %v3950
    %v5334 = vunpack.c.h.b16 %v3950
    %v5335 = vunpack.c.l.b16 %v3951
    %v5336 = vunpack.c.h.b16 %v3951
    %v5337 = vunpack.c.l.b16 %v3952
    %v5338 = vunpack.c.h.b16 %v3952
    %v5339 = vunpack.c.l.b16 %v3953
    %v5340 = vunpack.c.h.b16 %v3953
    %v5341 = vunpack.c.l.b16 %v3954
    %v5342 = vunpack.c.h.b16 %v3954
    %v5343 = vunpack.c.l.b16 %v3955
    %v5344 = vunpack.c.h.b16 %v3955
    %v5345 = vunpack.c.l.b16 %v3956
    %v5346 = vunpack.c.h.b16 %v3956
    %v5347 = vunpack.c.l.b16 %v3957
    %v5348 = vunpack.c.h.b16 %v3957
    %v5349 = vunpack.c.l.b16 %v3958
    %v5350 = vunpack.c.h.b16 %v3958
    %v5351 = vunpack.c.l.b16 %v3959
    %v5352 = vunpack.c.h.b16 %v3959
    %v5353 = vunpack.c.l.b16 %v3960
    %v5354 = vunpack.c.h.b16 %v3960
    %v5355 = vunpack.c.l.b16 %v3961
    %v5356 = vunpack.c.h.b16 %v3961
    %v5357 = vunpack.c.l.b16 %v3962
    %v5358 = vunpack.c.h.b16 %v3962
    %v5359 = vunpack.c.l.b16 %v3963
    %v5360 = vunpack.c.h.b16 %v3963
    %v5361 = vunpack.c.l.b16 %v3964
    %v5362 = vunpack.c.h.b16 %v3964
    %v5363 = vunpack.c.l.b16 %v3965
    %v5364 = vunpack.c.h.b16 %v3965
    %v5365 = vunpack.c.l.b16 %v3966
    %v5366 = vunpack.c.h.b16 %v3966
    %v5367 = vunpack.c.l.b16 %v3967
    %v5368 = vunpack.c.h.b16 %v3967
    %v5369 = vunpack.c.l.b16 %v3968
    %v5370 = vunpack.c.h.b16 %v3968
    %v5371 = vunpack.c.l.b16 %v3969
    %v5372 = vunpack.c.h.b16 %v3969
    %v5373 = vunpack.c.l.b16 %v3970
    %v5374 = vunpack.c.h.b16 %v3970
    %v5375 = vunpack.c.l.b16 %v3971
    %v5376 = vunpack.c.h.b16 %v3971
    %v5377 = vunpack.c.l.b16 %v3972
    %v5378 = vunpack.c.h.b16 %v3972
    %v5379 = vunpack.c.l.b16 %v3973
    %v5380 = vunpack.c.h.b16 %v3973
    %v5381 = vunpack.c.l.b16 %v3974
    %v5382 = vunpack.c.h.b16 %v3974
    %v5383 = vunpack.c.l.b16 %v3975
    %v5384 = vunpack.c.h.b16 %v3975
    %v5385 = vunpack.c.l.b16 %v3976
    %v5386 = vunpack.c.h.b16 %v3976
    %v5387 = vunpack.c.l.b16 %v3977
    %v5388 = vunpack.c.h.b16 %v3977
    %v5389 = vunpack.c.l.b16 %v3978
    %v5390 = vunpack.c.h.b16 %v3978
    %v5391 = vunpack.c.l.b16 %v3979
    %v5392 = vunpack.c.h.b16 %v3979
    %v5393 = vunpack.c.l.b16 %v3980
    %v5394 = vunpack.c.h.b16 %v3980
    %v5395 = vunpack.c.l.b16 %v3981
    %v5396 = vunpack.c.h.b16 %v3981
    %v5397 = vunpack.c.l.b16 %v3982
    %v5398 = vunpack.c.h.b16 %v3982
    %v5399 = vunpack.c.l.b16 %v3983
    %v5400 = vunpack.c.h.b16 %v3983
    %v5401 = vunpack.c.l.b16 %v3984
    %v5402 = vunpack.c.h.b16 %v3984
    %v5403 = vunpack.c.l.b16 %v3985
    %v5404 = vunpack.c.h.b16 %v3985
    %v5405 = vunpack.c.l.b16 %v3986
    %v5406 = vunpack.c.h.b16 %v3986
    %v5407 = vunpack.c.l.b16 %v3987
    %v5408 = vunpack.c.h.b16 %v3987
    %v5409 = vunpack.c.l.b16 %v3988
    %v5410 = vunpack.c.h.b16 %v3988
    %v5411 = vunpack.c.l.b16 %v3989
    %v5412 = vunpack.c.h.b16 %v3989
    %v5413 = vunpack.c.l.b16 %v3990
    %v5414 = vunpack.c.h.b16 %v3990
    %v5415 = vunpack.c.l.b16 %v3991
    %v5416 = vunpack.c.h.b16 %v3991
    %v5417 = vunpack.c.l.b16 %v3992
    %v5418 = vunpack.c.h.b16 %v3992
    %v5419 = vunpack.c.l.b16 %v3993
    %v5420 = vunpack.c.h.b16 %v3993
    %v5421 = vunpack.c.l.b16 %v3994
    %v5422 = vunpack.c.h.b16 %v3994
    %v5423 = vunpack.c.l.b16 %v3995
    %v5424 = vunpack.c.h.b16 %v3995
    %v5425 = vunpack.c.l.b16 %v3996
    %v5426 = vunpack.c.h.b16 %v3996
    %v5427 = vunpack.c.l.b16 %v3997
    %v5428 = vunpack.c.h.b16 %v3997
    %v5429 = vunpack.c.l.b16 %v3998
    %v5430 = vunpack.c.h.b16 %v3998
    %v5431 = vunpack.c.l.b16 %v3999
    %v5432 = vunpack.c.h.b16 %v3999
    %v5433 = vunpack.c.l.b16 %v4000
    %v5434 = vunpack.c.h.b16 %v4000
    %v5435 = vunpack.c.l.b16 %v4001
    %v5436 = vunpack.c.h.b16 %v4001
    %v5437 = vunpack.c.l.b16 %v4002
    %v5438 = vunpack.c.h.b16 %v4002
    %v5439 = vunpack.c.l.b16 %v4003
    %v5440 = vunpack.c.h.b16 %v4003
    %v5441 = vunpack.c.l.b16 %v4004
    %v5442 = vunpack.c.h.b16 %v4004
    %v5443 = vunpack.c.l.b16 %v4005
    %v5444 = vunpack.c.h.b16 %v4005
    %v5445 = vunpack.c.l.b16 %v4006
    %v5446 = vunpack.c.h.b16 %v4006
    %v5447 = vunpack.c.l.b16 %v4007
    %v5448 = vunpack.c.h.b16 %v4007
    %v5449 = vunpack.c.l.b16 %v4008
    %v5450 = vunpack.c.h.b16 %v4008
    %v5451 = vunpack.c.l.b16 %v4009
    %v5452 = vunpack.c.h.b16 %v4009
    %v5453 = vunpack.c.l.b16 %v4010
    %v5454 = vunpack.c.h.b16 %v4010
    %v5455 = vunpack.c.l.b16 %v4011
    %v5456 = vunpack.c.h.b16 %v4011
    %v5457 = vunpack.c.l.b16 %v4012
    %v5458 = vunpack.c.h.b16 %v4012
    %v5459 = vunpack.c.l.b16 %v4013
    %v5460 = vunpack.c.h.b16 %v4013
    %v5461 = vunpack.c.l.b16 %v4014
    %v5462 = vunpack.c.h.b16 %v4014
    %v5463 = vunpack.c.l.b16 %v4015
    %v5464 = vunpack.c.h.b16 %v4015
    %v5465 = vunpack.c.l.b16 %v4016
    %v5466 = vunpack.c.h.b16 %v4016
    %v5467 = vunpack.c.l.b16 %v4017
    %v5468 = vunpack.c.h.b16 %v4017
    %v5469 = vunpack.c.l.b16 %v4018
    %v5470 = vunpack.c.h.b16 %v4018
    %v5471 = vunpack.c.l.b16 %v4019
    %v5472 = vunpack.c.h.b16 %v4019
    %v5473 = vunpack.c.l.b16 %v4020
    %v5474 = vunpack.c.h.b16 %v4020
    %v5475 = vunpack.c.l.b16 %v4021
    %v5476 = vunpack.c.h.b16 %v4021
    %v5477 = vunpack.c.l.b16 %v4022
    %v5478 = vunpack.c.h.b16 %v4022
    %v5479 = vunpack.c.l.b16 %v4023
    %v5480 = vunpack.c.h.b16 %v4023
    %v5481 = vunpack.c.l.b16 %v4024
    %v5482 = vunpack.c.h.b16 %v4024
    %v5483 = vunpack.c.l.b16 %v4025
    %v5484 = vunpack.c.h.b16 %v4025
    %v5485 = vunpack.c.l.b16 %v4026
    %v5486 = vunpack.c.h.b16 %v4026
    %v5487 = vunpack.c.l.b16 %v4027
    %v5488 = vunpack.c.h.b16 %v4027
    %v5489 = vunpack.c.l.b16 %v4028
    %v5490 = vunpack.c.h.b16 %v4028
    %v5491 = vunpack.c.l.b16 %v4029
    %v5492 = vunpack.c.h.b16 %v4029
    %v5493 = vunpack.c.l.b16 %v4030
    %v5494 = vunpack.c.h.b16 %v4030
    %v5495 = vunpack.c.l.b16 %v4031
    %v5496 = vunpack.c.h.b16 %v4031
    %v5497 = vunpack.c.l.b16 %v4032
    %v5498 = vunpack.c.h.b16 %v4032
    %v5499 = vunpack.c.l.b16 %v4033
    %v5500 = vunpack.c.h.b16 %v4033
    %v5501 = vunpack.c.l.b16 %v4034
    %v5502 = vunpack.c.h.b16 %v4034
    %v5503 = vunpack.c.l.b16 %v4035
    %v5504 = vunpack.c.h.b16 %v4035
    %v5505 = vunpack.c.l.b16 %v4036
    %v5506 = vunpack.c.h.b16 %v4036
    %v5507 = vunpack.c.l.b16 %v4037
    %v5508 = vunpack.c.h.b16 %v4037
    %v5509 = vunpack.c.l.b16 %v4038
    %v5510 = vunpack.c.h.b16 %v4038
    %v5511 = vunpack.c.l.b16 %v4039
    %v5512 = vunpack.c.h.b16 %v4039
    %v5513 = vunpack.c.l.b16 %v4040
    %v5514 = vunpack.c.h.b16 %v4040
    %v5515 = vunpack.c.l.b16 %v4041
    %v5516 = vunpack.c.h.b16 %v4041
    %v5517 = vunpack.c.l.b16 %v4042
    %v5518 = vunpack.c.h.b16 %v4042
    %v5519 = vunpack.c.l.b16 %v4043
    %v5520 = vunpack.c.h.b16 %v4043
    %v5521 = vunpack.c.l.b16 %v4044
    %v5522 = vunpack.c.h.b16 %v4044
    %v5523 = vunpack.c.l.b16 %v4045
    %v5524 = vunpack.c.h.b16 %v4045
    %v5525 = vunpack.c.l.b16 %v4046
    %v5526 = vunpack.c.h.b16 %v4046
    %v5527 = vunpack.c.l.b16 %v4047
    %v5528 = vunpack.c.h.b16 %v4047
    %v5529 = vunpack.c.l.b16 %v4048
    %v5530 = vunpack.c.h.b16 %v4048
    %v5531 = vunpack.c.l.b16 %v4049
    %v5532 = vunpack.c.h.b16 %v4049
    %v5533 = vunpack.c.l.b16 %v4050
    %v5534 = vunpack.c.h.b16 %v4050
    %v5535 = vunpack.c.l.b16 %v4051
    %v5536 = vunpack.c.h.b16 %v4051
    %v5537 = vunpack.c.l.b16 %v4052
    %v5538 = vunpack.c.h.b16 %v4052
    %v5539 = vunpack.c.l.b16 %v4053
    %v5540 = vunpack.c.h.b16 %v4053
    %v5541 = vunpack.c.l.b16 %v4054
    %v5542 = vunpack.c.h.b16 %v4054
    %v5543 = vunpack.c.l.b16 %v4055
    %v5544 = vunpack.c.h.b16 %v4055
    %v5545 = vunpack.c.l.b16 %v4056
    %v5546 = vunpack.c.h.b16 %v4056
    %v5547 = vunpack.c.l.b16 %v4057
    %v5548 = vunpack.c.h.b16 %v4057
    %v5549 = vunpack.c.l.b16 %v4058
    %v5550 = vunpack.c.h.b16 %v4058
    %v5551 = vunpack.c.l.b16 %v4059
    %v5552 = vunpack.c.h.b16 %v4059
    %v5553 = vunpack.c.l.b16 %v4060
    %v5554 = vunpack.c.h.b16 %v4060
    %v5555 = vunpack.c.l.b16 %v4061
    %v5556 = vunpack.c.h.b16 %v4061
    %v5557 = vunpack.c.l.b16 %v4062
    %v5558 = vunpack.c.h.b16 %v4062
    %v5559 = vunpack.c.l.b16 %v4063
    %v5560 = vunpack.c.h.b16 %v4063
    %v5561 = vunpack.c.l.b16 %v4064
    %v5562 = vunpack.c.h.b16 %v4064
    %v5563 = vunpack.c.l.b16 %v4065
    %v5564 = vunpack.c.h.b16 %v4065
    %v5565 = vunpack.c.l.b16 %v4066
    %v5566 = vunpack.c.h.b16 %v4066
    %v5567 = vunpack.c.l.b16 %v4067
    %v5568 = vunpack.c.h.b16 %v4067
    %v5569 = vunpack.c.l.b16 %v4068
    %v5570 = vunpack.c.h.b16 %v4068
    %v5571 = vunpack.c.l.b16 %v4069
    %v5572 = vunpack.c.h.b16 %v4069
    %v5573 = vunpack.c.l.b16 %v4070
    %v5574 = vunpack.c.h.b16 %v4070
    %v5575 = vunpack.c.l.b16 %v4071
    %v5576 = vunpack.c.h.b16 %v4071
    %v5577 = vunpack.c.l.b16 %v4072
    %v5578 = vunpack.c.h.b16 %v4072
    %v5579 = vunpack.c.l.b16 %v4073
    %v5580 = vunpack.c.h.b16 %v4073
    %v5581 = vunpack.c.l.b16 %v4074
    %v5582 = vunpack.c.h.b16 %v4074
    %v5583 = vunpack.c.l.b16 %v4075
    %v5584 = vunpack.c.h.b16 %v4075
    %v5585 = vunpack.c.l.b16 %v4076
    %v5586 = vunpack.c.h.b16 %v4076
    %v5587 = vunpack.c.l.b16 %v4077
    %v5588 = vunpack.c.h.b16 %v4077
    %v5589 = vunpack.c.l.b16 %v4078
    %v5590 = vunpack.c.h.b16 %v4078
    %v5591 = vunpack.c.l.b16 %v4079
    %v5592 = vunpack.c.h.b16 %v4079
    %v5593 = vunpack.c.l.b16 %v4080
    %v5594 = vunpack.c.h.b16 %v4080
    %v5595 = vunpack.c.l.b16 %v4081
    %v5596 = vunpack.c.h.b16 %v4081
    %v5597 = vunpack.c.l.b16 %v4082
    %v5598 = vunpack.c.h.b16 %v4082
    %v5599 = vunpack.c.l.b16 %v4083
    %v5600 = vunpack.c.h.b16 %v4083
    %v5601 = vunpack.c.l.b16 %v4084
    %v5602 = vunpack.c.h.b16 %v4084
    %v5603 = vunpack.c.l.b16 %v4085
    %v5604 = vunpack.c.h.b16 %v4085
    %v5605 = vunpack.c.l.b16 %v4086
    %v5606 = vunpack.c.h.b16 %v4086
    %v5607 = vunpack.c.l.b16 %v4087
    %v5608 = vunpack.c.h.b16 %v4087
    %v5609 = vunpack.c.l.b16 %v4088
    %v5610 = vunpack.c.h.b16 %v4088
    %v5611 = vunpack.c.l.b16 %v4089
    %v5612 = vunpack.c.h.b16 %v4089
    %v5613 = vunpack.c.l.b16 %v4090
    %v5614 = vunpack.c.h.b16 %v4090
    %v5615 = vunpack.c.l.b16 %v4091
    %v5616 = vunpack.c.h.b16 %v4091
    %v5617 = vunpack.c.l.b16 %v4092
    %v5618 = vunpack.c.h.b16 %v4092
    %v5619 = vunpack.c.l.b16 %v4093
    %v5620 = vunpack.c.h.b16 %v4093
    %v5621 = vunpack.c.l.b16 %v4094
    %v5622 = vunpack.c.h.b16 %v4094
    %v5623 = vunpack.c.l.b16 %v4095
    %v5624 = vunpack.c.h.b16 %v4095
    %v5625 = vunpack.c.l.b16 %v4096
    %v5626 = vunpack.c.h.b16 %v4096
    %v5627 = vunpack.c.l.b16 %v4097
    %v5628 = vunpack.c.h.b16 %v4097
    %v5629 = vunpack.c.l.b16 %v4098
    %v5630 = vunpack.c.h.b16 %v4098
    %v5631 = vunpack.c.l.b16 %v4099
    %v5632 = vunpack.c.h.b16 %v4099
    %v5633 = vunpack.c.l.b16 %v4100
    %v5634 = vunpack.c.h.b16 %v4100
    %v5635 = vunpack.c.l.b16 %v4101
    %v5636 = vunpack.c.h.b16 %v4101
    %v5637 = vunpack.c.l.b16 %v4102
    %v5638 = vunpack.c.h.b16 %v4102
    %v5639 = vunpack.c.l.b16 %v4103
    %v5640 = vunpack.c.h.b16 %v4103
    %v5641 = vunpack.c.l.b16 %v4104
    %v5642 = vunpack.c.h.b16 %v4104
    %v5643 = vunpack.c.l.b16 %v4105
    %v5644 = vunpack.c.h.b16 %v4105
    %v5645 = vunpack.c.l.b16 %v4106
    %v5646 = vunpack.c.h.b16 %v4106
    %v5647 = vunpack.c.l.b16 %v4107
    %v5648 = vunpack.c.h.b16 %v4107
    %v5649 = vunpack.c.l.b16 %v4108
    %v5650 = vunpack.c.h.b16 %v4108
    %v5651 = vunpack.c.l.b16 %v4109
    %v5652 = vunpack.c.h.b16 %v4109
    %v5653 = vunpack.c.l.b16 %v4110
    %v5654 = vunpack.c.h.b16 %v4110
    %v5655 = vunpack.c.l.b16 %v4111
    %v5656 = vunpack.c.h.b16 %v4111
    %v5657 = vunpack.c.l.b16 %v4112
    %v5658 = vunpack.c.h.b16 %v4112
    %v5659 = vunpack.c.l.b16 %v4113
    %v5660 = vunpack.c.h.b16 %v4113
    %v5661 = vunpack.c.l.b16 %v4114
    %v5662 = vunpack.c.h.b16 %v4114
    %v5663 = vunpack.c.l.b16 %v4115
    %v5664 = vunpack.c.h.b16 %v4115
    %v5665 = vunpack.c.l.b16 %v4116
    %v5666 = vunpack.c.h.b16 %v4116
    %v5667 = vunpack.c.l.b16 %v4117
    %v5668 = vunpack.c.h.b16 %v4117
    %v5669 = vunpack.c.l.b16 %v4118
    %v5670 = vunpack.c.h.b16 %v4118
    %v5671 = vunpack.c.l.b16 %v4119
    %v5672 = vunpack.c.h.b16 %v4119
    %v5673 = vunpack.c.l.b16 %v4120
    %v5674 = vunpack.c.h.b16 %v4120
    %v5675 = vunpack.c.l.b16 %v4121
    %v5676 = vunpack.c.h.b16 %v4121
    %v5677 = vunpack.c.l.b16 %v4122
    %v5678 = vunpack.c.h.b16 %v4122
    %v5679 = vunpack.c.l.b16 %v4123
    %v5680 = vunpack.c.h.b16 %v4123
    %v5681 = vunpack.c.l.b16 %v4124
    %v5682 = vunpack.c.h.b16 %v4124
    %v5683 = vunpack.c.l.b16 %v4125
    %v5684 = vunpack.c.h.b16 %v4125
    %v5685 = vunpack.c.l.b16 %v4126
    %v5686 = vunpack.c.h.b16 %v4126
    %v5687 = vunpack.c.l.b16 %v4127
    %v5688 = vunpack.c.h.b16 %v4127
    %v5689 = vunpack.c.l.b16 %v4128
    %v5690 = vunpack.c.h.b16 %v4128
    %v5691 = vunpack.c.l.b16 %v4129
    %v5692 = vunpack.c.h.b16 %v4129
    %v5693 = vunpack.c.l.b16 %v4130
    %v5694 = vunpack.c.h.b16 %v4130
    %v5695 = vunpack.c.l.b16 %v4131
    %v5696 = vunpack.c.h.b16 %v4131
    %v5697 = vunpack.c.l.b16 %v4132
    %v5698 = vunpack.c.h.b16 %v4132
    %v5699 = vunpack.c.l.b16 %v4133
    %v5700 = vunpack.c.h.b16 %v4133
    %v5701 = vunpack.c.l.b16 %v4134
    %v5702 = vunpack.c.h.b16 %v4134
    %v5703 = vunpack.c.l.b16 %v4135
    %v5704 = vunpack.c.h.b16 %v4135
    %v5705 = vunpack.c.l.b16 %v4136
    %v5706 = vunpack.c.h.b16 %v4136
    %v5707 = vunpack.c.l.b16 %v4137
    %v5708 = vunpack.c.h.b16 %v4137
    %v5709 = vunpack.c.l.b16 %v4138
    %v5710 = vunpack.c.h.b16 %v4138
    %v5711 = vunpack.c.l.b16 %v4139
    %v5712 = vunpack.c.h.b16 %v4139
    %v5713 = vunpack.c.l.b16 %v4140
    %v5714 = vunpack.c.h.b16 %v4140
    %v5715 = vunpack.c.l.b16 %v4141
    %v5716 = vunpack.c.h.b16 %v4141
    %v5717 = vunpack.c.l.b16 %v4142
    %v5718 = vunpack.c.h.b16 %v4142
    %v5719 = vunpack.c.l.b16 %v4143
    %v5720 = vunpack.c.h.b16 %v4143
    %v5721 = vunpack.c.l.b16 %v4144
    %v5722 = vunpack.c.h.b16 %v4144
    %v5723 = vpack.c.b16 %v4707, %v4699
    %v5724 = vpack.c.b16 %v4708, %v4700
    %v5725 = vpack.c.b16 %v4709, %v4701
    %v5726 = vpack.c.b16 %v4710, %v4702
    %v5727 = vpack.c.b16 %v4711, %v4703
    %v5728 = vpack.c.b16 %v4712, %v4704
    %v5729 = vpack.c.b16 %v4713, %v4705
    %v5730 = vpack.c.b16 %v4714, %v4706
    %v5731 = vpack.c.b16 %v4723, %v4715
    %v5732 = vpack.c.b16 %v4724, %v4716
    %v5733 = vpack.c.b16 %v4725, %v4717
    %v5734 = vpack.c.b16 %v4726, %v4718
    %v5735 = vpack.c.b16 %v4727, %v4719
    %v5736 = vpack.c.b16 %v4728, %v4720
    %v5737 = vpack.c.b16 %v4729, %v4721
    %v5738 = vpack.c.b16 %v4730, %v4722
    %v5739 = vpack.c.b16 %v4739, %v4731
    %v5740 = vpack.c.b16 %v4740, %v4732
    %v5741 = vpack.c.b16 %v4741, %v4733
    %v5742 = vpack.c.b16 %v4742, %v4734
    %v5743 = vpack.c.b16 %v4743, %v4735
    %v5744 = vpack.c.b16 %v4744, %v4736
    %v5745 = vpack.c.b16 %v4745, %v4737
    %v5746 = vpack.c.b16 %v4746, %v4738
    %v5747 = vpack.c.b16 %v4755, %v4747
    %v5748 = vpack.c.b16 %v4756, %v4748
    %v5749 = vpack.c.b16 %v4757, %v4749
    %v5750 = vpack.c.b16 %v4758, %v4750
    %v5751 = vpack.c.b16 %v4759, %v4751
    %v5752 = vpack.c.b16 %v4760, %v4752
    %v5753 = vpack.c.b16 %v4761, %v4753
    %v5754 = vpack.c.b16 %v4762, %v4754
    %v5755 = vpack.c.b16 %v4771, %v4763
    %v5756 = vpack.c.b16 %v4772, %v4764
    %v5757 = vpack.c.b16 %v4773, %v4765
    %v5758 = vpack.c.b16 %v4774, %v4766
    %v5759 = vpack.c.b16 %v4775, %v4767
    %v5760 = vpack.c.b16 %v4776, %v4768
    %v5761 = vpack.c.b16 %v4777, %v4769
    %v5762 = vpack.c.b16 %v4778, %v4770
    %v5763 = vpack.c.b16 %v4787, %v4779
    %v5764 = vpack.c.b16 %v4788, %v4780
    %v5765 = vpack.c.b16 %v4789, %v4781
    %v5766 = vpack.c.b16 %v4790, %v4782
    %v5767 = vpack.c.b16 %v4791, %v4783
    %v5768 = vpack.c.b16 %v4792, %v4784
    %v5769 = vpack.c.b16 %v4793, %v4785
    %v5770 = vpack.c.b16 %v4794, %v4786
    %v5771 = vpack.c.b16 %v4803, %v4795
    %v5772 = vpack.c.b16 %v4804, %v4796
    %v5773 = vpack.c.b16 %v4805, %v4797
    %v5774 = vpack.c.b16 %v4806, %v4798
    %v5775 = vpack.c.b16 %v4807, %v4799
    %v5776 = vpack.c.b16 %v4808, %v4800
    %v5777 = vpack.c.b16 %v4809, %v4801
    %v5778 = vpack.c.b16 %v4810, %v4802
    %v5779 = vpack.c.b16 %v4819, %v4811
    %v5780 = vpack.c.b16 %v4820, %v4812
    %v5781 = vpack.c.b16 %v4821, %v4813
    %v5782 = vpack.c.b16 %v4822, %v4814
    %v5783 = vpack.c.b16 %v4823, %v4815
    %v5784 = vpack.c.b16 %v4824, %v4816
    %v5785 = vpack.c.b16 %v4825, %v4817
    %v5786 = vpack.c.b16 %v4826, %v4818
    %v5787 = vpack.c.b16 %v4835, %v4827
    %v5788 = vpack.c.b16 %v4836, %v4828
    %v5789 = vpack.c.b16 %v4837, %v4829
    %v5790 = vpack.c.b16 %v4838, %v4830
    %v5791 = vpack.c.b16 %v4839, %v4831
    %v5792 = vpack.c.b16 %v4840, %v4832
    %v5793 = vpack.c.b16 %v4841, %v4833
    %v5794 = vpack.c.b16 %v4842, %v4834
    %v5795 = vpack.c.b16 %v4851, %v4843
    %v5796 = vpack.c.b16 %v4852, %v4844
    %v5797 = vpack.c.b16 %v4853, %v4845
    %v5798 = vpack.c.b16 %v4854, %v4846
    %v5799 = vpack.c.b16 %v4855, %v4847
    %v5800 = vpack.c.b16 %v4856, %v4848
    %v5801 = vpack.c.b16 %v4857, %v4849
    %v5802 = vpack.c.b16 %v4858, %v4850
    %v5803 = vpack.c.b16 %v4867, %v4859
    %v5804 = vpack.c.b16 %v4868, %v4860
    %v5805 = vpack.c.b16 %v4869, %v4861
    %v5806 = vpack.c.b16 %v4870, %v4862
    %v5807 = vpack.c.b16 %v4871, %v4863
    %v5808 = vpack.c.b16 %v4872, %v4864
    %v5809 = vpack.c.b16 %v4873, %v4865
    %v5810 = vpack.c.b16 %v4874, %v4866
    %v5811 = vpack.c.b16 %v4883, %v4875
    %v5812 = vpack.c.b16 %v4884, %v4876
    %v5813 = vpack.c.b16 %v4885, %v4877
    %v5814 = vpack.c.b16 %v4886, %v4878
    %v5815 = vpack.c.b16 %v4887, %v4879
    %v5816 = vpack.c.b16 %v4888, %v4880
    %v5817 = vpack.c.b16 %v4889, %v4881
    %v5818 = vpack.c.b16 %v4890, %v4882
    %v5819 = vpack.c.b16 %v4899, %v4891
    %v5820 = vpack.c.b16 %v4900, %v4892
    %v5821 = vpack.c.b16 %v4901, %v4893
    %v5822 = vpack.c.b16 %v4902, %v4894
    %v5823 = vpack.c.b16 %v4903, %v4895
    %v5824 = vpack.c.b16 %v4904, %v4896
    %v5825 = vpack.c.b16 %v4905, %v4897
    %v5826 = vpack.c.b16 %v4906, %v4898
    %v5827 = vpack.c.b16 %v4915, %v4907
    %v5828 = vpack.c.b16 %v4916, %v4908
    %v5829 = vpack.c.b16 %v4917, %v4909
    %v5830 = vpack.c.b16 %v4918, %v4910
    %v5831 = vpack.c.b16 %v4919, %v4911
    %v5832 = vpack.c.b16 %v4920, %v4912
    %v5833 = vpack.c.b16 %v4921, %v4913
    %v5834 = vpack.c.b16 %v4922, %v4914
    %v5835 = vpack.c.b16 %v4931, %v4923
    %v5836 = vpack.c.b16 %v4932, %v4924
    %v5837 = vpack.c.b16 %v4933, %v4925
    %v5838 = vpack.c.b16 %v4934, %v4926
    %v5839 = vpack.c.b16 %v4935, %v4927
    %v5840 = vpack.c.b16 %v4936, %v4928
    %v5841 = vpack.c.b16 %v4937, %v4929
    %v5842 = vpack.c.b16 %v4938, %v4930
    %v5843 = vpack.c.b16 %v4947, %v4939
    %v5844 = vpack.c.b16 %v4948, %v4940
    %v5845 = vpack.c.b16 %v4949, %v4941
    %v5846 = vpack.c.b16 %v4950, %v4942
    %v5847 = vpack.c.b16 %v4951, %v4943
    %v5848 = vpack.c.b16 %v4952, %v4944
    %v5849 = vpack.c.b16 %v4953, %v4945
    %v5850 = vpack.c.b16 %v4954, %v4946
    %v5851 = vpack.c.b16 %v4963, %v4955
    %v5852 = vpack.c.b16 %v4964, %v4956
    %v5853 = vpack.c.b16 %v4965, %v4957
    %v5854 = vpack.c.b16 %v4966, %v4958
    %v5855 = vpack.c.b16 %v4967, %v4959
    %v5856 = vpack.c.b16 %v4968, %v4960
    %v5857 = vpack.c.b16 %v4969, %v4961
    %v5858 = vpack.c.b16 %v4970, %v4962
    %v5859 = vpack.c.b16 %v4979, %v4971
    %v5860 = vpack.c.b16 %v4980, %v4972
    %v5861 = vpack.c.b16 %v4981, %v4973
    %v5862 = vpack.c.b16 %v4982, %v4974
    %v5863 = vpack.c.b16 %v4983, %v4975
    %v5864 = vpack.c.b16 %v4984, %v4976
    %v5865 = vpack.c.b16 %v4985, %v4977
    %v5866 = vpack.c.b16 %v4986, %v4978
    %v5867 = vpack.c.b16 %v4995, %v4987
    %v5868 = vpack.c.b16 %v4996, %v4988
    %v5869 = vpack.c.b16 %v4997, %v4989
    %v5870 = vpack.c.b16 %v4998, %v4990
    %v5871 = vpack.c.b16 %v4999, %v4991
    %v5872 = vpack.c.b16 %v5000, %v4992
    %v5873 = vpack.c.b16 %v5001, %v4993
    %v5874 = vpack.c.b16 %v5002, %v4994
    %v5875 = vpack.c.b16 %v5011, %v5003
    %v5876 = vpack.c.b16 %v5012, %v5004
    %v5877 = vpack.c.b16 %v5013, %v5005
    %v5878 = vpack.c.b16 %v5014, %v5006
    %v5879 = vpack.c.b16 %v5015, %v5007
    %v5880 = vpack.c.b16 %v5016, %v5008
    %v5881 = vpack.c.b16 %v5017, %v5009
    %v5882 = vpack.c.b16 %v5018, %v5010
    %v5883 = vpack.c.b16 %v5027, %v5019
    %v5884 = vpack.c.b16 %v5028, %v5020
    %v5885 = vpack.c.b16 %v5029, %v5021
    %v5886 = vpack.c.b16 %v5030, %v5022
    %v5887 = vpack.c.b16 %v5031, %v5023
    %v5888 = vpack.c.b16 %v5032, %v5024
    %v5889 = vpack.c.b16 %v5033, %v5025
    %v5890 = vpack.c.b16 %v5034, %v5026
    %v5891 = vpack.c.b16 %v5043, %v5035
    %v5892 = vpack.c.b16 %v5044, %v5036
    %v5893 = vpack.c.b16 %v5045, %v5037
    %v5894 = vpack.c.b16 %v5046, %v5038
    %v5895 = vpack.c.b16 %v5047, %v5039
    %v5896 = vpack.c.b16 %v5048, %v5040
    %v5897 = vpack.c.b16 %v5049, %v5041
    %v5898 = vpack.c.b16 %v5050, %v5042
    %v5899 = vpack.c.b16 %v5059, %v5051
    %v5900 = vpack.c.b16 %v5060, %v5052
    %v5901 = vpack.c.b16 %v5061, %v5053
    %v5902 = vpack.c.b16 %v5062, %v5054
    %v5903 = vpack.c.b16 %v5063, %v5055
    %v5904 = vpack.c.b16 %v5064, %v5056
    %v5905 = vpack.c.b16 %v5065, %v5057
    %v5906 = vpack.c.b16 %v5066, %v5058
    %v5907 = vpack.c.b16 %v5075, %v5067
    %v5908 = vpack.c.b16 %v5076, %v5068
    %v5909 = vpack.c.b16 %v5077, %v5069
    %v5910 = vpack.c.b16 %v5078, %v5070
    %v5911 = vpack.c.b16 %v5079, %v5071
    %v5912 = vpack.c.b16 %v5080, %v5072
    %v5913 = vpack.c.b16 %v5081, %v5073
    %v5914 = vpack.c.b16 %v5082, %v5074
    %v5915 = vpack.c.b16 %v5091, %v5083
    %v5916 = vpack.c.b16 %v5092, %v5084
    %v5917 = vpack.c.b16 %v5093, %v5085
    %v5918 = vpack.c.b16 %v5094, %v5086
    %v5919 = vpack.c.b16 %v5095, %v5087
    %v5920 = vpack.c.b16 %v5096, %v5088
    %v5921 = vpack.c.b16 %v5097, %v5089
    %v5922 = vpack.c.b16 %v5098, %v5090
    %v5923 = vpack.c.b16 %v5107, %v5099
    %v5924 = vpack.c.b16 %v5108, %v5100
    %v5925 = vpack.c.b16 %v5109, %v5101
    %v5926 = vpack.c.b16 %v5110, %v5102
    %v5927 = vpack.c.b16 %v5111, %v5103
    %v5928 = vpack.c.b16 %v5112, %v5104
    %v5929 = vpack.c.b16 %v5113, %v5105
    %v5930 = vpack.c.b16 %v5114, %v5106
    %v5931 = vpack.c.b16 %v5123, %v5115
    %v5932 = vpack.c.b16 %v5124, %v5116
    %v5933 = vpack.c.b16 %v5125, %v5117
    %v5934 = vpack.c.b16 %v5126, %v5118
    %v5935 = vpack.c.b16 %v5127, %v5119
    %v5936 = vpack.c.b16 %v5128, %v5120
    %v5937 = vpack.c.b16 %v5129, %v5121
    %v5938 = vpack.c.b16 %v5130, %v5122
    %v5939 = vpack.c.b16 %v5139, %v5131
    %v5940 = vpack.c.b16 %v5140, %v5132
    %v5941 = vpack.c.b16 %v5141, %v5133
    %v5942 = vpack.c.b16 %v5142, %v5134
    %v5943 = vpack.c.b16 %v5143, %v5135
    %v5944 = vpack.c.b16 %v5144, %v5136
    %v5945 = vpack.c.b16 %v5145, %v5137
    %v5946 = vpack.c.b16 %v5146, %v5138
    %v5947 = vpack.c.b16 %v5155, %v5147
    %v5948 = vpack.c.b16 %v5156, %v5148
    %v5949 = vpack.c.b16 %v5157, %v5149
    %v5950 = vpack.c.b16 %v5158, %v5150
    %v5951 = vpack.c.b16 %v5159, %v5151
    %v5952 = vpack.c.b16 %v5160, %v5152
    %v5953 = vpack.c.b16 %v5161, %v5153
    %v5954 = vpack.c.b16 %v5162, %v5154
    %v5955 = vpack.c.b16 %v5171, %v5163
    %v5956 = vpack.c.b16 %v5172, %v5164
    %v5957 = vpack.c.b16 %v5173, %v5165
    %v5958 = vpack.c.b16 %v5174, %v5166
    %v5959 = vpack.c.b16 %v5175, %v5167
    %v5960 = vpack.c.b16 %v5176, %v5168
    %v5961 = vpack.c.b16 %v5177, %v5169
    %v5962 = vpack.c.b16 %v5178, %v5170
    %v5963 = vpack.c.b16 %v5187, %v5179
    %v5964 = vpack.c.b16 %v5188, %v5180
    %v5965 = vpack.c.b16 %v5189, %v5181
    %v5966 = vpack.c.b16 %v5190, %v5182
    %v5967 = vpack.c.b16 %v5191, %v5183
    %v5968 = vpack.c.b16 %v5192, %v5184
    %v5969 = vpack.c.b16 %v5193, %v5185
    %v5970 = vpack.c.b16 %v5194, %v5186
    %v5971 = vpack.c.b16 %v5203, %v5195
    %v5972 = vpack.c.b16 %v5204, %v5196
    %v5973 = vpack.c.b16 %v5205, %v5197
    %v5974 = vpack.c.b16 %v5206, %v5198
    %v5975 = vpack.c.b16 %v5207, %v5199
    %v5976 = vpack.c.b16 %v5208, %v5200
    %v5977 = vpack.c.b16 %v5209, %v5201
    %v5978 = vpack.c.b16 %v5210, %v5202
    %v5979 = vpack.c.b16 %v5219, %v5211
    %v5980 = vpack.c.b16 %v5220, %v5212
    %v5981 = vpack.c.b16 %v5221, %v5213
    %v5982 = vpack.c.b16 %v5222, %v5214
    %v5983 = vpack.c.b16 %v5223, %v5215
    %v5984 = vpack.c.b16 %v5224, %v5216
    %v5985 = vpack.c.b16 %v5225, %v5217
    %v5986 = vpack.c.b16 %v5226, %v5218
    %v5987 = vpack.c.b16 %v5235, %v5227
    %v5988 = vpack.c.b16 %v5236, %v5228
    %v5989 = vpack.c.b16 %v5237, %v5229
    %v5990 = vpack.c.b16 %v5238, %v5230
    %v5991 = vpack.c.b16 %v5239, %v5231
    %v5992 = vpack.c.b16 %v5240, %v5232
    %v5993 = vpack.c.b16 %v5241, %v5233
    %v5994 = vpack.c.b16 %v5242, %v5234
    %v5995 = vpack.c.b16 %v5251, %v5243
    %v5996 = vpack.c.b16 %v5252, %v5244
    %v5997 = vpack.c.b16 %v5253, %v5245
    %v5998 = vpack.c.b16 %v5254, %v5246
    %v5999 = vpack.c.b16 %v5255, %v5247
    %v6000 = vpack.c.b16 %v5256, %v5248
    %v6001 = vpack.c.b16 %v5257, %v5249
    %v6002 = vpack.c.b16 %v5258, %v5250
    %v6003 = vpack.c.b16 %v5267, %v5259
    %v6004 = vpack.c.b16 %v5268, %v5260
    %v6005 = vpack.c.b16 %v5269, %v5261
    %v6006 = vpack.c.b16 %v5270, %v5262
    %v6007 = vpack.c.b16 %v5271, %v5263
    %v6008 = vpack.c.b16 %v5272, %v5264
    %v6009 = vpack.c.b16 %v5273, %v5265
    %v6010 = vpack.c.b16 %v5274, %v5266
    %v6011 = vpack.c.b16 %v5283, %v5275
    %v6012 = vpack.c.b16 %v5284, %v5276
    %v6013 = vpack.c.b16 %v5285, %v5277
    %v6014 = vpack.c.b16 %v5286, %v5278
    %v6015 = vpack.c.b16 %v5287, %v5279
    %v6016 = vpack.c.b16 %v5288, %v5280
    %v6017 = vpack.c.b16 %v5289, %v5281
    %v6018 = vpack.c.b16 %v5290, %v5282
    %v6019 = vpack.c.b16 %v5299, %v5291
    %v6020 = vpack.c.b16 %v5300, %v5292
    %v6021 = vpack.c.b16 %v5301, %v5293
    %v6022 = vpack.c.b16 %v5302, %v5294
    %v6023 = vpack.c.b16 %v5303, %v5295
    %v6024 = vpack.c.b16 %v5304, %v5296
    %v6025 = vpack.c.b16 %v5305, %v5297
    %v6026 = vpack.c.b16 %v5306, %v5298
    %v6027 = vpack.c.b16 %v5315, %v5307
    %v6028 = vpack.c.b16 %v5316, %v5308
    %v6029 = vpack.c.b16 %v5317, %v5309
    %v6030 = vpack.c.b16 %v5318, %v5310
    %v6031 = vpack.c.b16 %v5319, %v5311
    %v6032 = vpack.c.b16 %v5320, %v5312
    %v6033 = vpack.c.b16 %v5321, %v5313
    %v6034 = vpack.c.b16 %v5322, %v5314
    %v6035 = vpack.c.b16 %v5331, %v5323
    %v6036 = vpack.c.b16 %v5332, %v5324
    %v6037 = vpack.c.b16 %v5333, %v5325
    %v6038 = vpack.c.b16 %v5334, %v5326
    %v6039 = vpack.c.b16 %v5335, %v5327
    %v6040 = vpack.c.b16 %v5336, %v5328
    %v6041 = vpack.c.b16 %v5337, %v5329
    %v6042 = vpack.c.b16 %v5338, %v5330
    %v6043 = vpack.c.b16 %v5347, %v5339
    %v6044 = vpack.c.b16 %v5348, %v5340
    %v6045 = vpack.c.b16 %v5349, %v5341
    %v6046 = vpack.c.b16 %v5350, %v5342
    %v6047 = vpack.c.b16 %v5351, %v5343
    %v6048 = vpack.c.b16 %v5352, %v5344
    %v6049 = vpack.c.b16 %v5353, %v5345
    %v6050 = vpack.c.b16 %v5354, %v5346
    %v6051 = vpack.c.b16 %v5363, %v5355
    %v6052 = vpack.c.b16 %v5364, %v5356
    %v6053 = vpack.c.b16 %v5365, %v5357
    %v6054 = vpack.c.b16 %v5366, %v5358
    %v6055 = vpack.c.b16 %v5367, %v5359
    %v6056 = vpack.c.b16 %v5368, %v5360
    %v6057 = vpack.c.b16 %v5369, %v5361
    %v6058 = vpack.c.b16 %v5370, %v5362
    %v6059 = vpack.c.b16 %v5379, %v5371
    %v6060 = vpack.c.b16 %v5380, %v5372
    %v6061 = vpack.c.b16 %v5381, %v5373
    %v6062 = vpack.c.b16 %v5382, %v5374
    %v6063 = vpack.c.b16 %v5383, %v5375
    %v6064 = vpack.c.b16 %v5384, %v5376
    %v6065 = vpack.c.b16 %v5385, %v5377
    %v6066 = vpack.c.b16 %v5386, %v5378
    %v6067 = vpack.c.b16 %v5395, %v5387
    %v6068 = vpack.c.b16 %v5396, %v5388
    %v6069 = vpack.c.b16 %v5397, %v5389
    %v6070 = vpack.c.b16 %v5398, %v5390
    %v6071 = vpack.c.b16 %v5399, %v5391
    %v6072 = vpack.c.b16 %v5400, %v5392
    %v6073 = vpack.c.b16 %v5401, %v5393
    %v6074 = vpack.c.b16 %v5402, %v5394
    %v6075 = vpack.c.b16 %v5411, %v5403
    %v6076 = vpack.c.b16 %v5412, %v5404
    %v6077 = vpack.c.b16 %v5413, %v5405
    %v6078 = vpack.c.b16 %v5414, %v5406
    %v6079 = vpack.c.b16 %v5415, %v5407
    %v6080 = vpack.c.b16 %v5416, %v5408
    %v6081 = vpack.c.b16 %v5417, %v5409
    %v6082 = vpack.c.b16 %v5418, %v5410
    %v6083 = vpack.c.b16 %v5427, %v5419
    %v6084 = vpack.c.b16 %v5428, %v5420
    %v6085 = vpack.c.b16 %v5429, %v5421
    %v6086 = vpack.c.b16 %v5430, %v5422
    %v6087 = vpack.c.b16 %v5431, %v5423
    %v6088 = vpack.c.b16 %v5432, %v5424
    %v6089 = vpack.c.b16 %v5433, %v5425
    %v6090 = vpack.c.b16 %v5434, %v5426
    %v6091 = vpack.c.b16 %v5443, %v5435
    %v6092 = vpack.c.b16 %v5444, %v5436
    %v6093 = vpack.c.b16 %v5445, %v5437
    %v6094 = vpack.c.b16 %v5446, %v5438
    %v6095 = vpack.c.b16 %v5447, %v5439
    %v6096 = vpack.c.b16 %v5448, %v5440
    %v6097 = vpack.c.b16 %v5449, %v5441
    %v6098 = vpack.c.b16 %v5450, %v5442
    %v6099 = vpack.c.b16 %v5459, %v5451
    %v6100 = vpack.c.b16 %v5460, %v5452
    %v6101 = vpack.c.b16 %v5461, %v5453
    %v6102 = vpack.c.b16 %v5462, %v5454
    %v6103 = vpack.c.b16 %v5463, %v5455
    %v6104 = vpack.c.b16 %v5464, %v5456
    %v6105 = vpack.c.b16 %v5465, %v5457
    %v6106 = vpack.c.b16 %v5466, %v5458
    %v6107 = vpack.c.b16 %v5475, %v5467
    %v6108 = vpack.c.b16 %v5476, %v5468
    %v6109 = vpack.c.b16 %v5477, %v5469
    %v6110 = vpack.c.b16 %v5478, %v5470
    %v6111 = vpack.c.b16 %v5479, %v5471
    %v6112 = vpack.c.b16 %v5480, %v5472
    %v6113 = vpack.c.b16 %v5481, %v5473
    %v6114 = vpack.c.b16 %v5482, %v5474
    %v6115 = vpack.c.b16 %v5491, %v5483
    %v6116 = vpack.c.b16 %v5492, %v5484
    %v6117 = vpack.c.b16 %v5493, %v5485
    %v6118 = vpack.c.b16 %v5494, %v5486
    %v6119 = vpack.c.b16 %v5495, %v5487
    %v6120 = vpack.c.b16 %v5496, %v5488
    %v6121 = vpack.c.b16 %v5497, %v5489
    %v6122 = vpack.c.b16 %v5498, %v5490
    %v6123 = vpack.c.b16 %v5507, %v5499
    %v6124 = vpack.c.b16 %v5508, %v5500
    %v6125 = vpack.c.b16 %v5509, %v5501
    %v6126 = vpack.c.b16 %v5510, %v5502
    %v6127 = vpack.c.b16 %v5511, %v5503
    %v6128 = vpack.c.b16 %v5512, %v5504
    %v6129 = vpack.c.b16 %v5513, %v5505
    %v6130 = vpack.c.b16 %v5514, %v5506
    %v6131 = vpack.c.b16 %v5523, %v5515
    %v6132 = vpack.c.b16 %v5524, %v5516
    %v6133 = vpack.c.b16 %v5525, %v5517
    %v6134 = vpack.c.b16 %v5526, %v5518
    %v6135 = vpack.c.b16 %v5527, %v5519
    %v6136 = vpack.c.b16 %v5528, %v5520
    %v6137 = vpack.c.b16 %v5529, %v5521
    %v6138 = vpack.c.b16 %v5530, %v5522
    %v6139 = vpack.c.b16 %v5539, %v5531
    %v6140 = vpack.c.b16 %v5540, %v5532
    %v6141 = vpack.c.b16 %v5541, %v5533
    %v6142 = vpack.c.b16 %v5542, %v5534
    %v6143 = vpack.c.b16 %v5543, %v5535
    %v6144 = vpack.c.b16 %v5544, %v5536
    %v6145 = vpack.c.b16 %v5545, %v5537
    %v6146 = vpack.c.b16 %v5546, %v5538
    %v6147 = vpack.c.b16 %v5555, %v5547
    %v6148 = vpack.c.b16 %v5556, %v5548
    %v6149 = vpack.c.b16 %v5557, %v5549
    %v6150 = vpack.c.b16 %v5558, %v5550
    %v6151 = vpack.c.b16 %v5559, %v5551
    %v6152 = vpack.c.b16 %v5560, %v5552
    %v6153 = vpack.c.b16 %v5561, %v5553
    %v6154 = vpack.c.b16 %v5562, %v5554
    %v6155 = vpack.c.b16 %v5571, %v5563
    %v6156 = vpack.c.b16 %v5572, %v5564
    %v6157 = vpack.c.b16 %v5573, %v5565
    %v6158 = vpack.c.b16 %v5574, %v5566
    %v6159 = vpack.c.b16 %v5575, %v5567
    %v6160 = vpack.c.b16 %v5576, %v5568
    %v6161 = vpack.c.b16 %v5577, %v5569
    %v6162 = vpack.c.b16 %v5578, %v5570
    %v6163 = vpack.c.b16 %v5587, %v5579
    %v6164 = vpack.c.b16 %v5588, %v5580
    %v6165 = vpack.c.b16 %v5589, %v5581
    %v6166 = vpack.c.b16 %v5590, %v5582
    %v6167 = vpack.c.b16 %v5591, %v5583
    %v6168 = vpack.c.b16 %v5592, %v5584
    %v6169 = vpack.c.b16 %v5593, %v5585
    %v6170 = vpack.c.b16 %v5594, %v5586
    %v6171 = vpack.c.b16 %v5603, %v5595
    %v6172 = vpack.c.b16 %v5604, %v5596
    %v6173 = vpack.c.b16 %v5605, %v5597
    %v6174 = vpack.c.b16 %v5606, %v5598
    %v6175 = vpack.c.b16 %v5607, %v5599
    %v6176 = vpack.c.b16 %v5608, %v5600
    %v6177 = vpack.c.b16 %v5609, %v5601
    %v6178 = vpack.c.b16 %v5610, %v5602
    %v6179 = vpack.c.b16 %v5619, %v5611
    %v6180 = vpack.c.b16 %v5620, %v5612
    %v6181 = vpack.c.b16 %v5621, %v5613
    %v6182 = vpack.c.b16 %v5622, %v5614
    %v6183 = vpack.c.b16 %v5623, %v5615
    %v6184 = vpack.c.b16 %v5624, %v5616
    %v6185 = vpack.c.b16 %v5625, %v5617
    %v6186 = vpack.c.b16 %v5626, %v5618
    %v6187 = vpack.c.b16 %v5635, %v5627
    %v6188 = vpack.c.b16 %v5636, %v5628
    %v6189 = vpack.c.b16 %v5637, %v5629
    %v6190 = vpack.c.b16 %v5638, %v5630
    %v6191 = vpack.c.b16 %v5639, %v5631
    %v6192 = vpack.c.b16 %v5640, %v5632
    %v6193 = vpack.c.b16 %v5641, %v5633
    %v6194 = vpack.c.b16 %v5642, %v5634
    %v6195 = vpack.c.b16 %v5651, %v5643
    %v6196 = vpack.c.b16 %v5652, %v5644
    %v6197 = vpack.c.b16 %v5653, %v5645
    %v6198 = vpack.c.b16 %v5654, %v5646
    %v6199 = vpack.c.b16 %v5655, %v5647
    %v6200 = vpack.c.b16 %v5656, %v5648
    %v6201 = vpack.c.b16 %v5657, %v5649
    %v6202 = vpack.c.b16 %v5658, %v5650
    %v6203 = vpack.c.b16 %v5667, %v5659
    %v6204 = vpack.c.b16 %v5668, %v5660
    %v6205 = vpack.c.b16 %v5669, %v5661
    %v6206 = vpack.c.b16 %v5670, %v5662
    %v6207 = vpack.c.b16 %v5671, %v5663
    %v6208 = vpack.c.b16 %v5672, %v5664
    %v6209 = vpack.c.b16 %v5673, %v5665
    %v6210 = vpack.c.b16 %v5674, %v5666
    %v6211 = vpack.c.b16 %v5683, %v5675
    %v6212 = vpack.c.b16 %v5684, %v5676
    %v6213 = vpack.c.b16 %v5685, %v5677
    %v6214 = vpack.c.b16 %v5686, %v5678
    %v6215 = vpack.c.b16 %v5687, %v5679
    %v6216 = vpack.c.b16 %v5688, %v5680
    %v6217 = vpack.c.b16 %v5689, %v5681
    %v6218 = vpack.c.b16 %v5690, %v5682
    %v6219 = vpack.c.b16 %v5699, %v5691
    %v6220 = vpack.c.b16 %v5700, %v5692
    %v6221 = vpack.c.b16 %v5701, %v5693
    %v6222 = vpack.c.b16 %v5702, %v5694
    %v6223 = vpack.c.b16 %v5703, %v5695
    %v6224 = vpack.c.b16 %v5704, %v5696
    %v6225 = vpack.c.b16 %v5705, %v5697
    %v6226 = vpack.c.b16 %v5706, %v5698
    %v6227 = vpack.c.b16 %v5715, %v5707
    %v6228 = vpack.c.b16 %v5716, %v5708
    %v6229 = vpack.c.b16 %v5717, %v5709
    %v6230 = vpack.c.b16 %v5718, %v5710
    %v6231 = vpack.c.b16 %v5719, %v5711
    %v6232 = vpack.c.b16 %v5720, %v5712
    %v6233 = vpack.c.b16 %v5721, %v5713
    %v6234 = vpack.c.b16 %v5722, %v5714
    %6747 = vmatprep.subr.bf16.mxu0 %v5780
    %6748 = vmatpush1.bf16.msra.mxu0 %v5779
    %6749 = vmatprep.subr.bf16.mxu0 %v5772
    %6750 = vmatpush1.bf16.msra.mxu0 %v5771
    %6751 = vmatprep.subr.bf16.mxu0 %v5764
    %6752 = vmatpush1.bf16.msra.mxu0 %v5763
    %6753 = vmatprep.subr.bf16.mxu0 %v5756
    %6754 = vmatpush1.bf16.msra.mxu0 %v5755
    %6755 = vmatprep.subr.bf16.mxu0 %v5748
    %6756 = vmatpush1.bf16.msra.mxu0 %v5747
    %6757 = vmatprep.subr.bf16.mxu0 %v5740
    %6758 = vmatpush1.bf16.msra.mxu0 %v5739
    %6759 = vmatprep.subr.bf16.mxu0 %v5732
    %6760 = vmatpush1.bf16.msra.mxu0 %v5731
    %6761 = vmatprep.subr.bf16.mxu0 %v5724
    %6762 = vmatpush1.bf16.msra.mxu0 %v5723
    %6763 = vmatprep.subr.bf16.mxu0 %v5844
    %6764 = vmatpush2.bf16.msra.mxu0 %v5843
    %6765 = vmatprep.subr.bf16.mxu0 %v5836
    %6766 = vmatpush2.bf16.msra.mxu0 %v5835
    %6767 = vmatprep.subr.bf16.mxu0 %v5828
    %6768 = vmatpush2.bf16.msra.mxu0 %v5827
    %6769 = vmatprep.subr.bf16.mxu0 %v5820
    %6770 = vmatpush2.bf16.msra.mxu0 %v5819
    %6771 = vmatprep.subr.bf16.mxu0 %v5812
    %6772 = vmatpush2.bf16.msra.mxu0 %v5811
    %6773 = vmatprep.subr.bf16.mxu0 %v5804
    %6774 = vmatpush2.bf16.msra.mxu0 %v5803
    %6775 = vmatprep.subr.bf16.mxu0 %v5796
    %6776 = vmatpush2.bf16.msra.mxu0 %v5795
    %6777 = vmatprep.subr.bf16.mxu0 %v5788
    %6778 = vmatpush2.bf16.msra.mxu0 %v5787
    %6779 = vmatprep.mubr.bf16.mxu0 %v3626
    %6780 = vmatmul.mubr.bf16.gmra.mxu0 %v3625
    %v6781 = vpop.f32.mrf.mxu0
    %v6782 = vadd.f32 %v4150, %v6781
    %v6783 = vpop.f32.mrf.mxu0
    %v6784 = vadd.f32 %v4154, %v6783
    %v6785 = vpop.f32.mrf.mxu0
    %v6786 = vadd.f32 %v4150, %v6785
    %v6787 = vpop.f32.mrf.mxu0
    %v6788 = vadd.f32 %v4154, %v6787
    %6789 = vdwg.mxu0
    %6790 = vmatprep.subr.bf16.mxu0 %v5908
    %6791 = vmatpush1.bf16.msra.mxu0 %v5907
    %6792 = vmatprep.subr.bf16.mxu0 %v5900
    %6793 = vmatpush1.bf16.msra.mxu0 %v5899
    %6794 = vmatprep.subr.bf16.mxu0 %v5892
    %6795 = vmatpush1.bf16.msra.mxu0 %v5891
    %6796 = vmatprep.subr.bf16.mxu0 %v5884
    %6797 = vmatpush1.bf16.msra.mxu0 %v5883
    %6798 = vmatprep.subr.bf16.mxu0 %v5876
    %6799 = vmatpush1.bf16.msra.mxu0 %v5875
    %6800 = vmatprep.subr.bf16.mxu0 %v5868
    %6801 = vmatpush1.bf16.msra.mxu0 %v5867
    %6802 = vmatprep.subr.bf16.mxu0 %v5860
    %6803 = vmatpush1.bf16.msra.mxu0 %v5859
    %6804 = vmatprep.subr.bf16.mxu0 %v5852
    %6805 = vmatpush1.bf16.msra.mxu0 %v5851
    %6806 = vmatprep.subr.bf16.mxu0 %v5972
    %6807 = vmatpush2.bf16.msra.mxu0 %v5971
    %6808 = vmatprep.subr.bf16.mxu0 %v5964
    %6809 = vmatpush2.bf16.msra.mxu0 %v5963
    %6810 = vmatprep.subr.bf16.mxu0 %v5956
    %6811 = vmatpush2.bf16.msra.mxu0 %v5955
    %6812 = vmatprep.subr.bf16.mxu0 %v5948
    %6813 = vmatpush2.bf16.msra.mxu0 %v5947
    %6814 = vmatprep.subr.bf16.mxu0 %v5940
    %6815 = vmatpush2.bf16.msra.mxu0 %v5939
    %6816 = vmatprep.subr.bf16.mxu0 %v5932
    %6817 = vmatpush2.bf16.msra.mxu0 %v5931
    %6818 = vmatprep.subr.bf16.mxu0 %v5924
    %6819 = vmatpush2.bf16.msra.mxu0 %v5923
    %6820 = vmatprep.subr.bf16.mxu0 %v5916
    %6821 = vmatpush2.bf16.msra.mxu0 %v5915
    %6822 = vmatprep.mubr.bf16.mxu0 %v3628
    %6823 = vmatmul.mubr.bf16.gmra.mxu0 %v3627
    %v6824 = vpop.f32.mrf.mxu0
    %v6825 = vadd.f32 %v6782, %v6824
    %v6826 = vpop.f32.mrf.mxu0
    %v6827 = vadd.f32 %v6784, %v6826
    %v6828 = vpop.f32.mrf.mxu0
    %v6829 = vadd.f32 %v6786, %v6828
    %v6830 = vpop.f32.mrf.mxu0
    %v6831 = vadd.f32 %v6788, %v6830
    %6832 = vdwg.mxu0
    %6833 = vmatprep.subr.bf16.mxu0 %v6036
    %6834 = vmatpush1.bf16.msra.mxu0 %v6035
    %6835 = vmatprep.subr.bf16.mxu0 %v6028
    %6836 = vmatpush1.bf16.msra.mxu0 %v6027
    %6837 = vmatprep.subr.bf16.mxu0 %v6020
    %6838 = vmatpush1.bf16.msra.mxu0 %v6019
    %6839 = vmatprep.subr.bf16.mxu0 %v6012
    %6840 = vmatpush1.bf16.msra.mxu0 %v6011
    %6841 = vmatprep.subr.bf16.mxu0 %v6004
    %6842 = vmatpush1.bf16.msra.mxu0 %v6003
    %6843 = vmatprep.subr.bf16.mxu0 %v5996
    %6844 = vmatpush1.bf16.msra.mxu0 %v5995
    %6845 = vmatprep.subr.bf16.mxu0 %v5988
    %6846 = vmatpush1.bf16.msra.mxu0 %v5987
    %6847 = vmatprep.subr.bf16.mxu0 %v5980
    %6848 = vmatpush1.bf16.msra.mxu0 %v5979
    %6849 = vmatprep.subr.bf16.mxu0 %v6100
    %6850 = vmatpush2.bf16.msra.mxu0 %v6099
    %6851 = vmatprep.subr.bf16.mxu0 %v6092
    %6852 = vmatpush2.bf16.msra.mxu0 %v6091
    %6853 = vmatprep.subr.bf16.mxu0 %v6084
    %6854 = vmatpush2.bf16.msra.mxu0 %v6083
    %6855 = vmatprep.subr.bf16.mxu0 %v6076
    %6856 = vmatpush2.bf16.msra.mxu0 %v6075
    %6857 = vmatprep.subr.bf16.mxu0 %v6068
    %6858 = vmatpush2.bf16.msra.mxu0 %v6067
    %6859 = vmatprep.subr.bf16.mxu0 %v6060
    %6860 = vmatpush2.bf16.msra.mxu0 %v6059
    %6861 = vmatprep.subr.bf16.mxu0 %v6052
    %6862 = vmatpush2.bf16.msra.mxu0 %v6051
    %6863 = vmatprep.subr.bf16.mxu0 %v6044
    %6864 = vmatpush2.bf16.msra.mxu0 %v6043
    %6865 = vmatprep.mubr.bf16.mxu0 %v3630
    %6866 = vmatmul.mubr.bf16.gmra.mxu0 %v3629
    %v6867 = vpop.f32.mrf.mxu0
    %v6868 = vadd.f32 %v6825, %v6867
    %v6869 = vpop.f32.mrf.mxu0
    %v6870 = vadd.f32 %v6827, %v6869
    %v6871 = vpop.f32.mrf.mxu0
    %v6872 = vadd.f32 %v6829, %v6871
    %v6873 = vpop.f32.mrf.mxu0
    %v6874 = vadd.f32 %v6831, %v6873
    %6875 = vdwg.mxu0
    %6876 = vmatprep.subr.bf16.mxu0 %v6164
    %6877 = vmatpush1.bf16.msra.mxu0 %v6163
    %6878 = vmatprep.subr.bf16.mxu0 %v6156
    %6879 = vmatpush1.bf16.msra.mxu0 %v6155
    %6880 = vmatprep.subr.bf16.mxu0 %v6148
    %6881 = vmatpush1.bf16.msra.mxu0 %v6147
    %6882 = vmatprep.subr.bf16.mxu0 %v6140
    %6883 = vmatpush1.bf16.msra.mxu0 %v6139
    %6884 = vmatprep.subr.bf16.mxu0 %v6132
    %6885 = vmatpush1.bf16.msra.mxu0 %v6131
    %6886 = vmatprep.subr.bf16.mxu0 %v6124
    %6887 = vmatpush1.bf16.msra.mxu0 %v6123
    %6888 = vmatprep.subr.bf16.mxu0 %v6116
    %6889 = vmatpush1.bf16.msra.mxu0 %v6115
    %6890 = vmatprep.subr.bf16.mxu0 %v6108
    %6891 = vmatpush1.bf16.msra.mxu0 %v6107
    %6892 = vmatprep.subr.bf16.mxu0 %v6228
    %6893 = vmatpush2.bf16.msra.mxu0 %v6227
    %6894 = vmatprep.subr.bf16.mxu0 %v6220
    %6895 = vmatpush2.bf16.msra.mxu0 %v6219
    %6896 = vmatprep.subr.bf16.mxu0 %v6212
    %6897 = vmatpush2.bf16.msra.mxu0 %v6211
    %6898 = vmatprep.subr.bf16.mxu0 %v6204
    %6899 = vmatpush2.bf16.msra.mxu0 %v6203
    %6900 = vmatprep.subr.bf16.mxu0 %v6196
    %6901 = vmatpush2.bf16.msra.mxu0 %v6195
    %6902 = vmatprep.subr.bf16.mxu0 %v6188
    %6903 = vmatpush2.bf16.msra.mxu0 %v6187
    %6904 = vmatprep.subr.bf16.mxu0 %v6180
    %6905 = vmatpush2.bf16.msra.mxu0 %v6179
    %6906 = vmatprep.subr.bf16.mxu0 %v6172
    %6907 = vmatpush2.bf16.msra.mxu0 %v6171
    %6908 = vmatprep.mubr.bf16.mxu0 %v3632
    %6909 = vmatmul.mubr.bf16.gmra.mxu0 %v3631
    %v6910 = vpop.f32.mrf.mxu0
    %v6911 = vadd.f32 %v6868, %v6910
    %v6912 = vpop.f32.mrf.mxu0
    %v6913 = vadd.f32 %v6870, %v6912
    %v6914 = vpop.f32.mrf.mxu0
    %v6915 = vadd.f32 %v6872, %v6914
    %v6916 = vpop.f32.mrf.mxu0
    %v6917 = vadd.f32 %v6874, %v6916
    %6918 = vdwg.mxu0
    %6919 = vmatprep.subr.bf16.mxu0 %v5782
    %6920 = vmatpush1.bf16.msra.mxu0 %v5781
    %6921 = vmatprep.subr.bf16.mxu0 %v5774
    %6922 = vmatpush1.bf16.msra.mxu0 %v5773
    %6923 = vmatprep.subr.bf16.mxu0 %v5766
    %6924 = vmatpush1.bf16.msra.mxu0 %v5765
    %6925 = vmatprep.subr.bf16.mxu0 %v5758
    %6926 = vmatpush1.bf16.msra.mxu0 %v5757
    %6927 = vmatprep.subr.bf16.mxu0 %v5750
    %6928 = vmatpush1.bf16.msra.mxu0 %v5749
    %6929 = vmatprep.subr.bf16.mxu0 %v5742
    %6930 = vmatpush1.bf16.msra.mxu0 %v5741
    %6931 = vmatprep.subr.bf16.mxu0 %v5734
    %6932 = vmatpush1.bf16.msra.mxu0 %v5733
    %6933 = vmatprep.subr.bf16.mxu0 %v5726
    %6934 = vmatpush1.bf16.msra.mxu0 %v5725
    %6935 = vmatprep.subr.bf16.mxu0 %v5846
    %6936 = vmatpush2.bf16.msra.mxu0 %v5845
    %6937 = vmatprep.subr.bf16.mxu0 %v5838
    %6938 = vmatpush2.bf16.msra.mxu0 %v5837
    %6939 = vmatprep.subr.bf16.mxu0 %v5830
    %6940 = vmatpush2.bf16.msra.mxu0 %v5829
    %6941 = vmatprep.subr.bf16.mxu0 %v5822
    %6942 = vmatpush2.bf16.msra.mxu0 %v5821
    %6943 = vmatprep.subr.bf16.mxu0 %v5814
    %6944 = vmatpush2.bf16.msra.mxu0 %v5813
    %6945 = vmatprep.subr.bf16.mxu0 %v5806
    %6946 = vmatpush2.bf16.msra.mxu0 %v5805
    %6947 = vmatprep.subr.bf16.mxu0 %v5798
    %6948 = vmatpush2.bf16.msra.mxu0 %v5797
    %6949 = vmatprep.subr.bf16.mxu0 %v5790
    %6950 = vmatpush2.bf16.msra.mxu0 %v5789
    %6951 = vmatprep.mubr.bf16.mxu0 %v3626
    %6952 = vmatmul.mubr.bf16.gmra.mxu0 %v3625
    %v6953 = vpop.f32.mrf.mxu0
    %v6954 = vadd.f32 %v4158, %v6953
    %v6955 = vpop.f32.mrf.mxu0
    %v6956 = vadd.f32 %v4162, %v6955
    %v6957 = vpop.f32.mrf.mxu0
    %v6958 = vadd.f32 %v4158, %v6957
    %v6959 = vpop.f32.mrf.mxu0
    %v6960 = vadd.f32 %v4162, %v6959
    %6961 = vdwg.mxu0
    %6962 = vmatprep.subr.bf16.mxu0 %v5910
    %6963 = vmatpush1.bf16.msra.mxu0 %v5909
    %6964 = vmatprep.subr.bf16.mxu0 %v5902
    %6965 = vmatpush1.bf16.msra.mxu0 %v5901
    %6966 = vmatprep.subr.bf16.mxu0 %v5894
    %6967 = vmatpush1.bf16.msra.mxu0 %v5893
    %6968 = vmatprep.subr.bf16.mxu0 %v5886
    %6969 = vmatpush1.bf16.msra.mxu0 %v5885
    %6970 = vmatprep.subr.bf16.mxu0 %v5878
    %6971 = vmatpush1.bf16.msra.mxu0 %v5877
    %6972 = vmatprep.subr.bf16.mxu0 %v5870
    %6973 = vmatpush1.bf16.msra.mxu0 %v5869
    %6974 = vmatprep.subr.bf16.mxu0 %v5862
    %6975 = vmatpush1.bf16.msra.mxu0 %v5861
    %6976 = vmatprep.subr.bf16.mxu0 %v5854
    %6977 = vmatpush1.bf16.msra.mxu0 %v5853
    %6978 = vmatprep.subr.bf16.mxu0 %v5974
    %6979 = vmatpush2.bf16.msra.mxu0 %v5973
    %6980 = vmatprep.subr.bf16.mxu0 %v5966
    %6981 = vmatpush2.bf16.msra.mxu0 %v5965
    %6982 = vmatprep.subr.bf16.mxu0 %v5958
    %6983 = vmatpush2.bf16.msra.mxu0 %v5957
    %6984 = vmatprep.subr.bf16.mxu0 %v5950
    %6985 = vmatpush2.bf16.msra.mxu0 %v5949
    %6986 = vmatprep.subr.bf16.mxu0 %v5942
    %6987 = vmatpush2.bf16.msra.mxu0 %v5941
    %6988 = vmatprep.subr.bf16.mxu0 %v5934
    %6989 = vmatpush2.bf16.msra.mxu0 %v5933
    %6990 = vmatprep.subr.bf16.mxu0 %v5926
    %6991 = vmatpush2.bf16.msra.mxu0 %v5925
    %6992 = vmatprep.subr.bf16.mxu0 %v5918
    %6993 = vmatpush2.bf16.msra.mxu0 %v5917
    %6994 = vmatprep.mubr.bf16.mxu0 %v3628
    %6995 = vmatmul.mubr.bf16.gmra.mxu0 %v3627
    %v6996 = vpop.f32.mrf.mxu0
    %v6997 = vadd.f32 %v6954, %v6996
    %v6998 = vpop.f32.mrf.mxu0
    %v6999 = vadd.f32 %v6956, %v6998
    %v7000 = vpop.f32.mrf.mxu0
    %v7001 = vadd.f32 %v6958, %v7000
    %v7002 = vpop.f32.mrf.mxu0
    %v7003 = vadd.f32 %v6960, %v7002
    %7004 = vdwg.mxu0
    %7005 = vmatprep.subr.bf16.mxu0 %v6038
    %7006 = vmatpush1.bf16.msra.mxu0 %v6037
    %7007 = vmatprep.subr.bf16.mxu0 %v6030
    %7008 = vmatpush1.bf16.msra.mxu0 %v6029
    %7009 = vmatprep.subr.bf16.mxu0 %v6022
    %7010 = vmatpush1.bf16.msra.mxu0 %v6021
    %7011 = vmatprep.subr.bf16.mxu0 %v6014
    %7012 = vmatpush1.bf16.msra.mxu0 %v6013
    %7013 = vmatprep.subr.bf16.mxu0 %v6006
    %7014 = vmatpush1.bf16.msra.mxu0 %v6005
    %7015 = vmatprep.subr.bf16.mxu0 %v5998
    %7016 = vmatpush1.bf16.msra.mxu0 %v5997
    %7017 = vmatprep.subr.bf16.mxu0 %v5990
    %7018 = vmatpush1.bf16.msra.mxu0 %v5989
    %7019 = vmatprep.subr.bf16.mxu0 %v5982
    %7020 = vmatpush1.bf16.msra.mxu0 %v5981
    %7021 = vmatprep.subr.bf16.mxu0 %v6102
    %7022 = vmatpush2.bf16.msra.mxu0 %v6101
    %7023 = vmatprep.subr.bf16.mxu0 %v6094
    %7024 = vmatpush2.bf16.msra.mxu0 %v6093
    %7025 = vmatprep.subr.bf16.mxu0 %v6086
    %7026 = vmatpush2.bf16.msra.mxu0 %v6085
    %7027 = vmatprep.subr.bf16.mxu0 %v6078
    %7028 = vmatpush2.bf16.msra.mxu0 %v6077
    %7029 = vmatprep.subr.bf16.mxu0 %v6070
    %7030 = vmatpush2.bf16.msra.mxu0 %v6069
    %7031 = vmatprep.subr.bf16.mxu0 %v6062
    %7032 = vmatpush2.bf16.msra.mxu0 %v6061
    %7033 = vmatprep.subr.bf16.mxu0 %v6054
    %7034 = vmatpush2.bf16.msra.mxu0 %v6053
    %7035 = vmatprep.subr.bf16.mxu0 %v6046
    %7036 = vmatpush2.bf16.msra.mxu0 %v6045
    %7037 = vmatprep.mubr.bf16.mxu0 %v3630
    %7038 = vmatmul.mubr.bf16.gmra.mxu0 %v3629
    %v7039 = vpop.f32.mrf.mxu0
    %v7040 = vadd.f32 %v6997, %v7039
    %v7041 = vpop.f32.mrf.mxu0
    %v7042 = vadd.f32 %v6999, %v7041
    %v7043 = vpop.f32.mrf.mxu0
    %v7044 = vadd.f32 %v7001, %v7043
    %v7045 = vpop.f32.mrf.mxu0
    %v7046 = vadd.f32 %v7003, %v7045
    %7047 = vdwg.mxu0
    %7048 = vmatprep.subr.bf16.mxu0 %v6166
    %7049 = vmatpush1.bf16.msra.mxu0 %v6165
    %7050 = vmatprep.subr.bf16.mxu0 %v6158
    %7051 = vmatpush1.bf16.msra.mxu0 %v6157
    %7052 = vmatprep.subr.bf16.mxu0 %v6150
    %7053 = vmatpush1.bf16.msra.mxu0 %v6149
    %7054 = vmatprep.subr.bf16.mxu0 %v6142
    %7055 = vmatpush1.bf16.msra.mxu0 %v6141
    %7056 = vmatprep.subr.bf16.mxu0 %v6134
    %7057 = vmatpush1.bf16.msra.mxu0 %v6133
    %7058 = vmatprep.subr.bf16.mxu0 %v6126
    %7059 = vmatpush1.bf16.msra.mxu0 %v6125
    %7060 = vmatprep.subr.bf16.mxu0 %v6118
    %7061 = vmatpush1.bf16.msra.mxu0 %v6117
    %7062 = vmatprep.subr.bf16.mxu0 %v6110
    %7063 = vmatpush1.bf16.msra.mxu0 %v6109
    %7064 = vmatprep.subr.bf16.mxu0 %v6230
    %7065 = vmatpush2.bf16.msra.mxu0 %v6229
    %7066 = vmatprep.subr.bf16.mxu0 %v6222
    %7067 = vmatpush2.bf16.msra.mxu0 %v6221
    %7068 = vmatprep.subr.bf16.mxu0 %v6214
    %7069 = vmatpush2.bf16.msra.mxu0 %v6213
    %7070 = vmatprep.subr.bf16.mxu0 %v6206
    %7071 = vmatpush2.bf16.msra.mxu0 %v6205
    %7072 = vmatprep.subr.bf16.mxu0 %v6198
    %7073 = vmatpush2.bf16.msra.mxu0 %v6197
    %7074 = vmatprep.subr.bf16.mxu0 %v6190
    %7075 = vmatpush2.bf16.msra.mxu0 %v6189
    %7076 = vmatprep.subr.bf16.mxu0 %v6182
    %7077 = vmatpush2.bf16.msra.mxu0 %v6181
    %7078 = vmatprep.subr.bf16.mxu0 %v6174
    %7079 = vmatpush2.bf16.msra.mxu0 %v6173
    %7080 = vmatprep.mubr.bf16.mxu0 %v3632
    %7081 = vmatmul.mubr.bf16.gmra.mxu0 %v3631
    %v7082 = vpop.f32.mrf.mxu0
    %v7083 = vadd.f32 %v7040, %v7082
    %v7084 = vpop.f32.mrf.mxu0
    %v7085 = vadd.f32 %v7042, %v7084
    %v7086 = vpop.f32.mrf.mxu0
    %v7087 = vadd.f32 %v7044, %v7086
    %v7088 = vpop.f32.mrf.mxu0
    %v7089 = vadd.f32 %v7046, %v7088
    %7090 = vdwg.mxu0
    %7091 = vmatprep.subr.bf16.mxu0 %v5784
    %7092 = vmatpush1.bf16.msra.mxu0 %v5783
    %7093 = vmatprep.subr.bf16.mxu0 %v5776
    %7094 = vmatpush1.bf16.msra.mxu0 %v5775
    %7095 = vmatprep.subr.bf16.mxu0 %v5768
    %7096 = vmatpush1.bf16.msra.mxu0 %v5767
    %7097 = vmatprep.subr.bf16.mxu0 %v5760
    %7098 = vmatpush1.bf16.msra.mxu0 %v5759
    %7099 = vmatprep.subr.bf16.mxu0 %v5752
    %7100 = vmatpush1.bf16.msra.mxu0 %v5751
    %7101 = vmatprep.subr.bf16.mxu0 %v5744
    %7102 = vmatpush1.bf16.msra.mxu0 %v5743
    %7103 = vmatprep.subr.bf16.mxu0 %v5736
    %7104 = vmatpush1.bf16.msra.mxu0 %v5735
    %7105 = vmatprep.subr.bf16.mxu0 %v5728
    %7106 = vmatpush1.bf16.msra.mxu0 %v5727
    %7107 = vmatprep.subr.bf16.mxu0 %v5848
    %7108 = vmatpush2.bf16.msra.mxu0 %v5847
    %7109 = vmatprep.subr.bf16.mxu0 %v5840
    %7110 = vmatpush2.bf16.msra.mxu0 %v5839
    %7111 = vmatprep.subr.bf16.mxu0 %v5832
    %7112 = vmatpush2.bf16.msra.mxu0 %v5831
    %7113 = vmatprep.subr.bf16.mxu0 %v5824
    %7114 = vmatpush2.bf16.msra.mxu0 %v5823
    %7115 = vmatprep.subr.bf16.mxu0 %v5816
    %7116 = vmatpush2.bf16.msra.mxu0 %v5815
    %7117 = vmatprep.subr.bf16.mxu0 %v5808
    %7118 = vmatpush2.bf16.msra.mxu0 %v5807
    %7119 = vmatprep.subr.bf16.mxu0 %v5800
    %7120 = vmatpush2.bf16.msra.mxu0 %v5799
    %7121 = vmatprep.subr.bf16.mxu0 %v5792
    %7122 = vmatpush2.bf16.msra.mxu0 %v5791
    %7123 = vmatprep.mubr.bf16.mxu0 %v3626
    %7124 = vmatmul.mubr.bf16.gmra.mxu0 %v3625
    %v7125 = vpop.f32.mrf.mxu0
    %v7126 = vadd.f32 %v4166, %v7125
    %v7127 = vpop.f32.mrf.mxu0
    %v7128 = vadd.f32 %v4170, %v7127
    %v7129 = vpop.f32.mrf.mxu0
    %v7130 = vadd.f32 %v4166, %v7129
    %v7131 = vpop.f32.mrf.mxu0
    %v7132 = vadd.f32 %v4170, %v7131
    %7133 = vdwg.mxu0
    %7134 = vmatprep.subr.bf16.mxu0 %v5912
    %7135 = vmatpush1.bf16.msra.mxu0 %v5911
    %7136 = vmatprep.subr.bf16.mxu0 %v5904
    %7137 = vmatpush1.bf16.msra.mxu0 %v5903
    %7138 = vmatprep.subr.bf16.mxu0 %v5896
    %7139 = vmatpush1.bf16.msra.mxu0 %v5895
    %7140 = vmatprep.subr.bf16.mxu0 %v5888
    %7141 = vmatpush1.bf16.msra.mxu0 %v5887
    %7142 = vmatprep.subr.bf16.mxu0 %v5880
    %7143 = vmatpush1.bf16.msra.mxu0 %v5879
    %7144 = vmatprep.subr.bf16.mxu0 %v5872
    %7145 = vmatpush1.bf16.msra.mxu0 %v5871
    %7146 = vmatprep.subr.bf16.mxu0 %v5864
    %7147 = vmatpush1.bf16.msra.mxu0 %v5863
    %7148 = vmatprep.subr.bf16.mxu0 %v5856
    %7149 = vmatpush1.bf16.msra.mxu0 %v5855
    %7150 = vmatprep.subr.bf16.mxu0 %v5976
    %7151 = vmatpush2.bf16.msra.mxu0 %v5975
    %7152 = vmatprep.subr.bf16.mxu0 %v5968
    %7153 = vmatpush2.bf16.msra.mxu0 %v5967
    %7154 = vmatprep.subr.bf16.mxu0 %v5960
    %7155 = vmatpush2.bf16.msra.mxu0 %v5959
    %7156 = vmatprep.subr.bf16.mxu0 %v5952
    %7157 = vmatpush2.bf16.msra.mxu0 %v5951
    %7158 = vmatprep.subr.bf16.mxu0 %v5944
    %7159 = vmatpush2.bf16.msra.mxu0 %v5943
    %7160 = vmatprep.subr.bf16.mxu0 %v5936
    %7161 = vmatpush2.bf16.msra.mxu0 %v5935
    %7162 = vmatprep.subr.bf16.mxu0 %v5928
    %7163 = vmatpush2.bf16.msra.mxu0 %v5927
    %7164 = vmatprep.subr.bf16.mxu0 %v5920
    %7165 = vmatpush2.bf16.msra.mxu0 %v5919
    %7166 = vmatprep.mubr.bf16.mxu0 %v3628
    %7167 = vmatmul.mubr.bf16.gmra.mxu0 %v3627
    %v7168 = vpop.f32.mrf.mxu0
    %v7169 = vadd.f32 %v7126, %v7168
    %v7170 = vpop.f32.mrf.mxu0
    %v7171 = vadd.f32 %v7128, %v7170
    %v7172 = vpop.f32.mrf.mxu0
    %v7173 = vadd.f32 %v7130, %v7172
    %v7174 = vpop.f32.mrf.mxu0
    %v7175 = vadd.f32 %v7132, %v7174
    %7176 = vdwg.mxu0
    %7177 = vmatprep.subr.bf16.mxu0 %v6040
    %7178 = vmatpush1.bf16.msra.mxu0 %v6039
    %7179 = vmatprep.subr.bf16.mxu0 %v6032
    %7180 = vmatpush1.bf16.msra.mxu0 %v6031
    %7181 = vmatprep.subr.bf16.mxu0 %v6024
    %7182 = vmatpush1.bf16.msra.mxu0 %v6023
    %7183 = vmatprep.subr.bf16.mxu0 %v6016
    %7184 = vmatpush1.bf16.msra.mxu0 %v6015
    %7185 = vmatprep.subr.bf16.mxu0 %v6008
    %7186 = vmatpush1.bf16.msra.mxu0 %v6007
    %7187 = vmatprep.subr.bf16.mxu0 %v6000
    %7188 = vmatpush1.bf16.msra.mxu0 %v5999
    %7189 = vmatprep.subr.bf16.mxu0 %v5992
    %7190 = vmatpush1.bf16.msra.mxu0 %v5991
    %7191 = vmatprep.subr.bf16.mxu0 %v5984
    %7192 = vmatpush1.bf16.msra.mxu0 %v5983
    %7193 = vmatprep.subr.bf16.mxu0 %v6104
    %7194 = vmatpush2.bf16.msra.mxu0 %v6103
    %7195 = vmatprep.subr.bf16.mxu0 %v6096
    %7196 = vmatpush2.bf16.msra.mxu0 %v6095
    %7197 = vmatprep.subr.bf16.mxu0 %v6088
    %7198 = vmatpush2.bf16.msra.mxu0 %v6087
    %7199 = vmatprep.subr.bf16.mxu0 %v6080
    %7200 = vmatpush2.bf16.msra.mxu0 %v6079
    %7201 = vmatprep.subr.bf16.mxu0 %v6072
    %7202 = vmatpush2.bf16.msra.mxu0 %v6071
    %7203 = vmatprep.subr.bf16.mxu0 %v6064
    %7204 = vmatpush2.bf16.msra.mxu0 %v6063
    %7205 = vmatprep.subr.bf16.mxu0 %v6056
    %7206 = vmatpush2.bf16.msra.mxu0 %v6055
    %7207 = vmatprep.subr.bf16.mxu0 %v6048
    %7208 = vmatpush2.bf16.msra.mxu0 %v6047
    %7209 = vmatprep.mubr.bf16.mxu0 %v3630
    %7210 = vmatmul.mubr.bf16.gmra.mxu0 %v3629
    %v7211 = vpop.f32.mrf.mxu0
    %v7212 = vadd.f32 %v7169, %v7211
    %v7213 = vpop.f32.mrf.mxu0
    %v7214 = vadd.f32 %v7171, %v7213
    %v7215 = vpop.f32.mrf.mxu0
    %v7216 = vadd.f32 %v7173, %v7215
    %v7217 = vpop.f32.mrf.mxu0
    %v7218 = vadd.f32 %v7175, %v7217
    %7219 = vdwg.mxu0
    %7220 = vmatprep.subr.bf16.mxu0 %v6168
    %7221 = vmatpush1.bf16.msra.mxu0 %v6167
    %7222 = vmatprep.subr.bf16.mxu0 %v6160
    %7223 = vmatpush1.bf16.msra.mxu0 %v6159
    %7224 = vmatprep.subr.bf16.mxu0 %v6152
    %7225 = vmatpush1.bf16.msra.mxu0 %v6151
    %7226 = vmatprep.subr.bf16.mxu0 %v6144
    %7227 = vmatpush1.bf16.msra.mxu0 %v6143
    %7228 = vmatprep.subr.bf16.mxu0 %v6136
    %7229 = vmatpush1.bf16.msra.mxu0 %v6135
    %7230 = vmatprep.subr.bf16.mxu0 %v6128
    %7231 = vmatpush1.bf16.msra.mxu0 %v6127
    %7232 = vmatprep.subr.bf16.mxu0 %v6120
    %7233 = vmatpush1.bf16.msra.mxu0 %v6119
    %7234 = vmatprep.subr.bf16.mxu0 %v6112
    %7235 = vmatpush1.bf16.msra.mxu0 %v6111
    %7236 = vmatprep.subr.bf16.mxu0 %v6232
    %7237 = vmatpush2.bf16.msra.mxu0 %v6231
    %7238 = vmatprep.subr.bf16.mxu0 %v6224
    %7239 = vmatpush2.bf16.msra.mxu0 %v6223
    %7240 = vmatprep.subr.bf16.mxu0 %v6216
    %7241 = vmatpush2.bf16.msra.mxu0 %v6215
    %7242 = vmatprep.subr.bf16.mxu0 %v6208
    %7243 = vmatpush2.bf16.msra.mxu0 %v6207
    %7244 = vmatprep.subr.bf16.mxu0 %v6200
    %7245 = vmatpush2.bf16.msra.mxu0 %v6199
    %7246 = vmatprep.subr.bf16.mxu0 %v6192
    %7247 = vmatpush2.bf16.msra.mxu0 %v6191
    %7248 = vmatprep.subr.bf16.mxu0 %v6184
    %7249 = vmatpush2.bf16.msra.mxu0 %v6183
    %7250 = vmatprep.subr.bf16.mxu0 %v6176
    %7251 = vmatpush2.bf16.msra.mxu0 %v6175
    %7252 = vmatprep.mubr.bf16.mxu0 %v3632
    %7253 = vmatmul.mubr.bf16.gmra.mxu0 %v3631
    %v7254 = vpop.f32.mrf.mxu0
    %v7255 = vadd.f32 %v7212, %v7254
    %v7256 = vpop.f32.mrf.mxu0
    %v7257 = vadd.f32 %v7214, %v7256
    %v7258 = vpop.f32.mrf.mxu0
    %v7259 = vadd.f32 %v7216, %v7258
    %v7260 = vpop.f32.mrf.mxu0
    %v7261 = vadd.f32 %v7218, %v7260
    %7262 = vdwg.mxu0
    %7263 = vmatprep.subr.bf16.mxu0 %v5786
    %7264 = vmatpush1.bf16.msra.mxu0 %v5785
    %7265 = vmatprep.subr.bf16.mxu0 %v5778
    %7266 = vmatpush1.bf16.msra.mxu0 %v5777
    %7267 = vmatprep.subr.bf16.mxu0 %v5770
    %7268 = vmatpush1.bf16.msra.mxu0 %v5769
    %7269 = vmatprep.subr.bf16.mxu0 %v5762
    %7270 = vmatpush1.bf16.msra.mxu0 %v5761
    %7271 = vmatprep.subr.bf16.mxu0 %v5754
    %7272 = vmatpush1.bf16.msra.mxu0 %v5753
    %7273 = vmatprep.subr.bf16.mxu0 %v5746
    %7274 = vmatpush1.bf16.msra.mxu0 %v5745
    %7275 = vmatprep.subr.bf16.mxu0 %v5738
    %7276 = vmatpush1.bf16.msra.mxu0 %v5737
    %7277 = vmatprep.subr.bf16.mxu0 %v5730
    %7278 = vmatpush1.bf16.msra.mxu0 %v5729
    %7279 = vmatprep.subr.bf16.mxu0 %v5850
    %7280 = vmatpush2.bf16.msra.mxu0 %v5849
    %7281 = vmatprep.subr.bf16.mxu0 %v5842
    %7282 = vmatpush2.bf16.msra.mxu0 %v5841
    %7283 = vmatprep.subr.bf16.mxu0 %v5834
    %7284 = vmatpush2.bf16.msra.mxu0 %v5833
    %7285 = vmatprep.subr.bf16.mxu0 %v5826
    %7286 = vmatpush2.bf16.msra.mxu0 %v5825
    %7287 = vmatprep.subr.bf16.mxu0 %v5818
    %7288 = vmatpush2.bf16.msra.mxu0 %v5817
    %7289 = vmatprep.subr.bf16.mxu0 %v5810
    %7290 = vmatpush2.bf16.msra.mxu0 %v5809
    %7291 = vmatprep.subr.bf16.mxu0 %v5802
    %7292 = vmatpush2.bf16.msra.mxu0 %v5801
    %7293 = vmatprep.subr.bf16.mxu0 %v5794
    %7294 = vmatpush2.bf16.msra.mxu0 %v5793
    %7295 = vmatprep.mubr.bf16.mxu0 %v3626
    %7296 = vmatmul.mubr.bf16.gmra.mxu0 %v3625
    %v7297 = vpop.f32.mrf.mxu0
    %v7298 = vadd.f32 %v4174, %v7297
    %v7299 = vpop.f32.mrf.mxu0
    %v7300 = vadd.f32 %v4178, %v7299
    %v7301 = vpop.f32.mrf.mxu0
    %v7302 = vadd.f32 %v4174, %v7301
    %v7303 = vpop.f32.mrf.mxu0
    %v7304 = vadd.f32 %v4178, %v7303
    %7305 = vdwg.mxu0
    %7306 = vmatprep.subr.bf16.mxu0 %v5914
    %7307 = vmatpush1.bf16.msra.mxu0 %v5913
    %7308 = vmatprep.subr.bf16.mxu0 %v5906
    %7309 = vmatpush1.bf16.msra.mxu0 %v5905
    %7310 = vmatprep.subr.bf16.mxu0 %v5898
    %7311 = vmatpush1.bf16.msra.mxu0 %v5897
    %7312 = vmatprep.subr.bf16.mxu0 %v5890
    %7313 = vmatpush1.bf16.msra.mxu0 %v5889
    %7314 = vmatprep.subr.bf16.mxu0 %v5882
    %7315 = vmatpush1.bf16.msra.mxu0 %v5881
    %7316 = vmatprep.subr.bf16.mxu0 %v5874
    %7317 = vmatpush1.bf16.msra.mxu0 %v5873
    %7318 = vmatprep.subr.bf16.mxu0 %v5866
    %7319 = vmatpush1.bf16.msra.mxu0 %v5865
    %7320 = vmatprep.subr.bf16.mxu0 %v5858
    %7321 = vmatpush1.bf16.msra.mxu0 %v5857
    %7322 = vmatprep.subr.bf16.mxu0 %v5978
    %7323 = vmatpush2.bf16.msra.mxu0 %v5977
    %7324 = vmatprep.subr.bf16.mxu0 %v5970
    %7325 = vmatpush2.bf16.msra.mxu0 %v5969
    %7326 = vmatprep.subr.bf16.mxu0 %v5962
    %7327 = vmatpush2.bf16.msra.mxu0 %v5961
    %7328 = vmatprep.subr.bf16.mxu0 %v5954
    %7329 = vmatpush2.bf16.msra.mxu0 %v5953
    %7330 = vmatprep.subr.bf16.mxu0 %v5946
    %7331 = vmatpush2.bf16.msra.mxu0 %v5945
    %7332 = vmatprep.subr.bf16.mxu0 %v5938
    %7333 = vmatpush2.bf16.msra.mxu0 %v5937
    %7334 = vmatprep.subr.bf16.mxu0 %v5930
    %7335 = vmatpush2.bf16.msra.mxu0 %v5929
    %7336 = vmatprep.subr.bf16.mxu0 %v5922
    %7337 = vmatpush2.bf16.msra.mxu0 %v5921
    %7338 = vmatprep.mubr.bf16.mxu0 %v3628
    %7339 = vmatmul.mubr.bf16.gmra.mxu0 %v3627
    %v7340 = vpop.f32.mrf.mxu0
    %v7341 = vadd.f32 %v7298, %v7340
    %v7342 = vpop.f32.mrf.mxu0
    %v7343 = vadd.f32 %v7300, %v7342
    %v7344 = vpop.f32.mrf.mxu0
    %v7345 = vadd.f32 %v7302, %v7344
    %v7346 = vpop.f32.mrf.mxu0
    %v7347 = vadd.f32 %v7304, %v7346
    %7348 = vdwg.mxu0
    %7349 = vmatprep.subr.bf16.mxu0 %v6042
    %7350 = vmatpush1.bf16.msra.mxu0 %v6041
    %7351 = vmatprep.subr.bf16.mxu0 %v6034
    %7352 = vmatpush1.bf16.msra.mxu0 %v6033
    %7353 = vmatprep.subr.bf16.mxu0 %v6026
    %7354 = vmatpush1.bf16.msra.mxu0 %v6025
    %7355 = vmatprep.subr.bf16.mxu0 %v6018
    %7356 = vmatpush1.bf16.msra.mxu0 %v6017
    %7357 = vmatprep.subr.bf16.mxu0 %v6010
    %7358 = vmatpush1.bf16.msra.mxu0 %v6009
    %7359 = vmatprep.subr.bf16.mxu0 %v6002
    %7360 = vmatpush1.bf16.msra.mxu0 %v6001
    %7361 = vmatprep.subr.bf16.mxu0 %v5994
    %7362 = vmatpush1.bf16.msra.mxu0 %v5993
    %7363 = vmatprep.subr.bf16.mxu0 %v5986
    %7364 = vmatpush1.bf16.msra.mxu0 %v5985
    %7365 = vmatprep.subr.bf16.mxu0 %v6106
    %7366 = vmatpush2.bf16.msra.mxu0 %v6105
    %7367 = vmatprep.subr.bf16.mxu0 %v6098
    %7368 = vmatpush2.bf16.msra.mxu0 %v6097
    %7369 = vmatprep.subr.bf16.mxu0 %v6090
    %7370 = vmatpush2.bf16.msra.mxu0 %v6089
    %7371 = vmatprep.subr.bf16.mxu0 %v6082
    %7372 = vmatpush2.bf16.msra.mxu0 %v6081
    %7373 = vmatprep.subr.bf16.mxu0 %v6074
    %7374 = vmatpush2.bf16.msra.mxu0 %v6073
    %7375 = vmatprep.subr.bf16.mxu0 %v6066
    %7376 = vmatpush2.bf16.msra.mxu0 %v6065
    %7377 = vmatprep.subr.bf16.mxu0 %v6058
    %7378 = vmatpush2.bf16.msra.mxu0 %v6057
    %7379 = vmatprep.subr.bf16.mxu0 %v6050
    %7380 = vmatpush2.bf16.msra.mxu0 %v6049
    %7381 = vmatprep.mubr.bf16.mxu0 %v3630
    %7382 = vmatmul.mubr.bf16.gmra.mxu0 %v3629
    %v7383 = vpop.f32.mrf.mxu0
    %v7384 = vadd.f32 %v7341, %v7383
    %v7385 = vpop.f32.mrf.mxu0
    %v7386 = vadd.f32 %v7343, %v7385
    %v7387 = vpop.f32.mrf.mxu0
    %v7388 = vadd.f32 %v7345, %v7387
    %v7389 = vpop.f32.mrf.mxu0
    %v7390 = vadd.f32 %v7347, %v7389
    %7391 = vdwg.mxu0
    %7392 = vmatprep.subr.bf16.mxu0 %v6170
    %7393 = vmatpush1.bf16.msra.mxu0 %v6169
    %7394 = vmatprep.subr.bf16.mxu0 %v6162
    %7395 = vmatpush1.bf16.msra.mxu0 %v6161
    %7396 = vmatprep.subr.bf16.mxu0 %v6154
    %7397 = vmatpush1.bf16.msra.mxu0 %v6153
    %7398 = vmatprep.subr.bf16.mxu0 %v6146
    %7399 = vmatpush1.bf16.msra.mxu0 %v6145
    %7400 = vmatprep.subr.bf16.mxu0 %v6138
    %7401 = vmatpush1.bf16.msra.mxu0 %v6137
    %7402 = vmatprep.subr.bf16.mxu0 %v6130
    %7403 = vmatpush1.bf16.msra.mxu0 %v6129
    %7404 = vmatprep.subr.bf16.mxu0 %v6122
    %7405 = vmatpush1.bf16.msra.mxu0 %v6121
    %7406 = vmatprep.subr.bf16.mxu0 %v6114
    %7407 = vmatpush1.bf16.msra.mxu0 %v6113
    %7408 = vmatprep.subr.bf16.mxu0 %v6234
    %7409 = vmatpush2.bf16.msra.mxu0 %v6233
    %7410 = vmatprep.subr.bf16.mxu0 %v6226
    %7411 = vmatpush2.bf16.msra.mxu0 %v6225
    %7412 = vmatprep.subr.bf16.mxu0 %v6218
    %7413 = vmatpush2.bf16.msra.mxu0 %v6217
    %7414 = vmatprep.subr.bf16.mxu0 %v6210
    %7415 = vmatpush2.bf16.msra.mxu0 %v6209
    %7416 = vmatprep.subr.bf16.mxu0 %v6202
    %7417 = vmatpush2.bf16.msra.mxu0 %v6201
    %7418 = vmatprep.subr.bf16.mxu0 %v6194
    %7419 = vmatpush2.bf16.msra.mxu0 %v6193
    %7420 = vmatprep.subr.bf16.mxu0 %v6186
    %7421 = vmatpush2.bf16.msra.mxu0 %v6185
    %7422 = vmatprep.subr.bf16.mxu0 %v6178
    %7423 = vmatpush2.bf16.msra.mxu0 %v6177
    %7424 = vmatprep.mubr.bf16.mxu0 %v3632
    %7425 = vmatmul.mubr.bf16.gmra.mxu0 %v3631
    %v7426 = vpop.f32.mrf.mxu0
    %v7427 = vadd.f32 %v7384, %v7426
    %v7428 = vpop.f32.mrf.mxu0
    %v7429 = vadd.f32 %v7386, %v7428
    %v7430 = vpop.f32.mrf.mxu0
    %v7431 = vadd.f32 %v7388, %v7430
    %v7432 = vpop.f32.mrf.mxu0
    %v7433 = vadd.f32 %v7390, %v7432
    %7434 = vdwg.mxu0
    %v7435 = vtanh.pop %v6911
    %v7436 = vtanh.pop %v6913
    %v7437 = vtanh.pop %v7083
    %v7438 = vtanh.pop %v7085
    %v7439 = vtanh.pop %v7255
    %v7440 = vtanh.pop %v7257
    %v7441 = vtanh.pop %v7427
    %v7442 = vtanh.pop %v7429
    %v7443 = vtanh.pop %v6915
    %v7444 = vtanh.pop %v6917
    %v7445 = vtanh.pop %v7087
    %v7446 = vtanh.pop %v7089
    %v7447 = vtanh.pop %v7259
    %v7448 = vtanh.pop %v7261
    %v7449 = vtanh.pop %v7431
    %v7450 = vtanh.pop %v7433
    %7451 = vst [vmem:[%s14] sm:$0xff] %v7435
    %7452 = vst [vmem:[%s14 + $0x8] sm:$0xff] %v7436
    %7453 = vst [vmem:[%s14 + $0x10] sm:$0xff] %v7437
    %7454 = vst [vmem:[%s14 + $0x18] sm:$0xff] %v7438
    %7455 = vst [vmem:[%s14 + $0x20] sm:$0xff] %v7439
    %7456 = vst [vmem:[%s14 + $0x28] sm:$0xff] %v7440
    %7457 = vst [vmem:[%s14 + $0x30] sm:$0xff] %v7441
    %7458 = vst [vmem:[%s14 + $0x38] sm:$0xff] %v7442
    %7459 = vst [vmem:[%s14 + $0x40] sm:$0xff] %v7443
    %7460 = vst [vmem:[%s14 + $0x48] sm:$0xff] %v7444
    %7461 = vst [vmem:[%s14 + $0x50] sm:$0xff] %v7445
    %7462 = vst [vmem:[%s14 + $0x58] sm:$0xff] %v7446
    %7463 = vst [vmem:[%s14 + $0x60] sm:$0xff] %v7447
    %7464 = vst [vmem:[%s14 + $0x68] sm:$0xff] %v7448
    %7465 = vst [vmem:[%s14 + $0x70] sm:$0xff] %v7449
    %7466 = vst [vmem:[%s14 + $0x78] sm:$0xff] %v7450
    // Predicated region
    $region114: #{generator_forward.1} parent=1 // pred_check
      _
    $region115: #{generator_forward.1} parent=1 // pred_check_branch
      %7468 = sbr.rel (0) target = $region117
    $region116: #{generator_forward.1} parent=1 // pred_region
      _
    $region117: #{generator_forward.1} parent=1 // pred_fallthru
      _
    // Predicated region
    $region118: #{generator_forward.1} parent=1 // pred_check
      _
    $region119: #{generator_forward.1} parent=1 // pred_check_branch
      %7470 = sbr.rel (0) target = $region121
    $region120: #{generator_forward.1} parent=1 // pred_region
      _
    $region121: #{generator_forward.1} parent=1 // pred_fallthru
      _
    %7471 = vsyncpa [#allocation3], 1
    %7472 = vsyncpa [#allocation5], 1
    %7473 = vsyncpa [#allocation8], 1
    %7474 = vsyncpa [#allocation11], 1
    %7475 = vsyncpa [#allocation14], 1
    %7476 = vsyncpa [#allocation17], 1
    %7477 = vsyncpa [#allocation20], 1
    %7478 = vsyncpa [#allocation23], 1

</llo_original>
